<compile_context>
chip_gen: v7x
topology: tpu7x:2x2x1
jax: 0.10.0
libtpu: 0.0.40
codegen_flags: <defaults>
</compile_context>

<pallas_src>
import functools

import jax
import jax.numpy as jnp
from jax import lax
from jax.experimental import pallas as pl
from jax.experimental.pallas import tpu as pltpu

EPS = 1e-5                 # nn.BatchNorm2d default eps
LANES = 128                # channel dim padded to a multiple of the 128-wide lane axis
PADL = 8                   # left spatial pad (>= dilation) keeps interior stores sublane aligned
MXU_DTYPE = jnp.bfloat16   # matmul input dtype (f32 accumulation on the MXU)
ACT_DTYPE = jnp.bfloat16   # dtype of the y1 / y2 intermediates written to HBM
SUB_ROWS = 256             # target output rows per vreg-resident f32 accumulator sub-block


# ------------------------------ small helpers ------------------------------ #
def _round_up(x, m):
    return (x + m - 1) // m * m


def _nbytes(shape, dtype):
    n = 1
    for s in shape:
        n *= int(s)
    return n * jnp.dtype(dtype).itemsize


def _vmem_limit(resident_bytes):
    # resident_bytes already accounts for double-buffering of pipelined blocks + scratch.
    need = int(resident_bytes) + (4 << 20)
    try:
        cap = int(pltpu.get_tpu_info().vmem_capacity_bytes)
    except Exception:
        cap = 64 << 20          # v7x physical VMEM as a conservative fallback
    return int(min(max(need, 16 << 20), int(0.9 * cap)))


def _largest_divisor_leq(n, target):
    best = 1
    for t in range(1, int(n) + 1):
        if n % t == 0 and t <= target:
            best = t
    return best


def _pick_tiles(H, W, tile_h=None):
    if tile_h is None:
        tile_h = _largest_divisor_leq(H, max(1, 2048 // max(int(W), 1)))
    sub_h = _largest_divisor_leq(tile_h, max(1, SUB_ROWS // max(int(W), 1)))
    return int(tile_h), int(sub_h)


def _prep_weight(w_oihw, cp):
    # (Cout, Cin, 3, 3) -> (3, 3*Cp, Cp) bf16; K index = kw*Cp + cin (matches the lhs concat).
    co, ci = int(w_oihw.shape[0]), int(w_oihw.shape[1])
    w = jnp.transpose(w_oihw, (2, 3, 1, 0))                      # (kh, kw, ci, co)
    w = jnp.pad(w, ((0, 0), (0, 0), (0, cp - ci), (0, cp - co)))
    return w.reshape(3, 3 * cp, cp).astype(MXU_DTYPE)


def _pad_vec(v, cp):
    return jnp.pad(v.astype(jnp.float32), (0, cp - int(v.shape[0])))


def _bn_scale_shift(stats, rows_per_tile, gamma, beta):
    # stats: (N, nH, 2, Cp) per-tile [mean, M2]; Chan/Welford combine across equal-size tiles.
    cp = stats.shape[-1]
    means = stats[:, :, 0, :].reshape(-1, cp)
    m2s = stats[:, :, 1, :].reshape(-1, cp)
    n_tiles = int(means.shape[0])
    count = n_tiles * rows_per_tile
    gmean = jnp.mean(means, axis=0)
    m2 = jnp.sum(m2s, axis=0) + rows_per_tile * jnp.sum((means - gmean) ** 2, axis=0)
    var = jnp.maximum(m2 / count, 0.0)                 # biased batch variance (training mode)
    scale = gamma * lax.rsqrt(var + EPS)
    shift = beta - gmean * scale
    return scale.reshape(1, cp), shift.reshape(1, cp)


# ------------------------------ kernel pieces ------------------------------ #
def _conv_subblock(src, base_row, sub_h, w_out, d, pad_l, w_ref, bias):
    """conv3x3 for sub_h output rows: 3 MXU matmuls (kw folded into K=3*Cp), f32 acc in vregs."""
    cp = w_ref.shape[-1]
    rows = sub_h * w_out
    acc = None
    for kh in range(3):
        taps = [src[pl.ds(base_row + kh * d, sub_h),
                    pl.ds(pad_l + (kw - 1) * d, w_out), :] for kw in range(3)]
        lhs = jnp.concatenate(taps, axis=-1).reshape(rows, 3 * cp)   # free view if W % 8 == 0
        part = jnp.dot(lhs, w_ref[kh], preferred_element_type=jnp.float32)
        acc = part if acc is None else acc + part      # chained -> MRB accumulation on v7x
    return acc + bias


def _subblock_stats(acc):
    # Per-sub-block (count, mean, M2) in f32 (centered second moment, not raw sum of squares).
    n = float(acc.shape[0])
    mean = jnp.sum(acc, axis=0, keepdims=True) * (1.0 / n)
    dev = acc - mean
    m2 = jnp.sum(dev * dev, axis=0, keepdims=True)
    return n, mean, m2


def _combine_stats(a, b):
    na, ma, m2a = a
    nb, mb, m2b = b
    n = na + nb
    delta = mb - ma
    mean = ma + delta * (nb / n)
    m2 = m2a + m2b + delta * delta * (na * nb / n)
    return n, mean, m2


def _conv_bias_stats_kernel(x_ref, w_ref, b_ref, y_ref, stats_ref, *, tile_h, sub_h, d, pad_l):
    # x_ref: (Hp, Wp, Cp) bf16 padded image (resident across row tiles of this batch element)
    # y_ref: (tile_h, W, Cp) bf16 conv+bias output tile; stats_ref: (2, Cp) f32 [mean, M2].
    w_out = y_ref.shape[1]
    cp = y_ref.shape[2]
    row0 = pl.multiple_of(pl.program_id(1) * tile_h, tile_h)
    bias = b_ref[...]
    stats = None
    for rr in range(0, tile_h, sub_h):
        acc = _conv_subblock(x_ref, row0 + rr, sub_h, w_out, d, pad_l, w_ref, bias)
        y_ref[pl.ds(rr, sub_h), :, :] = acc.reshape(sub_h, w_out, cp).astype(y_ref.dtype)
        sb = _subblock_stats(acc)
        stats = sb if stats is None else _combine_stats(stats, sb)
    stats_ref[...] = jnp.concatenate([stats[1], stats[2]], axis=0)


def _bn_relu_conv_bias_stats_kernel(y1_ref, sc_ref, sh_ref, w_ref, b_ref,
                                    y2_ref, stats_ref, h1_buf, *,
                                    tile_h, sub_h, d, pad_l, img_h):
    # Fused: h1 = relu(bn1(y1)) is built into a per-row-tile bf16 scratch (with a d-row halo
    # recomputed from the neighbouring tiles' y1 rows), then conv3x3(h1)+bias with per-tile
    # Welford BN partial statistics.  No full-image scratch, no cross-step carried state.
    w_out = y2_ref.shape[1]
    cp = y2_ref.shape[2]
    rows_buf = h1_buf.shape[0]
    row0 = pl.multiple_of(pl.program_id(1) * tile_h, tile_h)
    sc = sc_ref[...]
    sh = sh_ref[...]

    # (a) zero only the left/right padding-border columns of the scratch (interior is rewritten).
    h1_buf[:, pl.ds(0, pad_l), :] = jnp.zeros((rows_buf, pad_l, cp), h1_buf.dtype)
    h1_buf[:, pl.ds(pad_l + w_out, d), :] = jnp.zeros((rows_buf, d, cp), h1_buf.dtype)

    # (b) interior rows: h1 = relu(bn1(y1)) for this tile, cast to bf16 once at fill time.
    for rr in range(0, tile_h, sub_h):
        y = y1_ref[pl.ds(row0 + rr, sub_h), :, :].astype(jnp.float32)
        h1_buf[pl.ds(d + rr, sub_h), pl.ds(pad_l, w_out), :] = (
            jnp.maximum(y * sc + sh, 0.0).astype(h1_buf.dtype))

    # (c) halo rows (top/bottom d rows), zeroed outside the image.
    for r in range(d):
        for dst, g in ((r, row0 - d + r), (d + tile_h + r, row0 + tile_h + r)):
            gc = jnp.clip(g, 0, img_h - 1)
            yrow = y1_ref[pl.ds(gc, 1), :, :].astype(jnp.float32)          # (1, W, Cp)
            v = jnp.maximum(yrow * sc + sh, 0.0)
            v = jnp.where(jnp.logical_and(g >= 0, g < img_h), v, 0.0)
            h1_buf[pl.ds(dst, 1), pl.ds(pad_l, w_out), :] = v.astype(h1_buf.dtype)

    # (d) conv2 + bias over the scratch, vreg-resident f32 accumulators per sub-block.
    bias = b_ref[...]
    stats = None
    for rr in range(0, tile_h, sub_h):
        acc = _conv_subblock(h1_buf, rr, sub_h, w_out, d, pad_l, w_ref, bias)
        y2_ref[pl.ds(rr, sub_h), :, :] = acc.reshape(sub_h, w_out, cp).astype(y2_ref.dtype)
        sb = _subblock_stats(acc)
        stats = sb if stats is None else _combine_stats(stats, sb)
    stats_ref[...] = jnp.concatenate([stats[1], stats[2]], axis=0)


def _bn_residual_relu_kernel(y2_ref, sc_ref, sh_ref, res_ref, out_ref):
    co = out_ref.shape[-1]
    y = y2_ref[...][:, :, :co].astype(jnp.float32)
    out_ref[...] = jnp.maximum(y * sc_ref[...] + sh_ref[...] + res_ref[...].astype(jnp.float32),
                               0.0)


def _bn_relu_kernel(y2_ref, sc_ref, sh_ref, out_ref):
    co = out_ref.shape[-1]
    y = y2_ref[...][:, :, :co].astype(jnp.float32)
    out_ref[...] = jnp.maximum(y * sc_ref[...] + sh_ref[...], 0.0)


# ----------------------------- pallas_call glue ----------------------------- #
def _conv_call(kernel, inputs, in_specs, *, N, H, W, Cp, tile_h, resident_bytes,
               scratch_shapes=()):
    nH = H // tile_h
    out_shape = (jax.ShapeDtypeStruct((N, H, W, Cp), ACT_DTYPE),
                 jax.ShapeDtypeStruct((N, nH, 2, Cp), jnp.float32))
    out_specs = (pl.BlockSpec((None, tile_h, W, Cp), lambda n, h: (n, h, 0, 0)),
                 pl.BlockSpec((None, None, 2, Cp), lambda n, h: (n, h, 0, 0)))
    flops = 2 * N * H * W * 9 * Cp * Cp
    bytes_accessed = (sum(_nbytes(a.shape, a.dtype) for a in inputs)
                      + _nbytes((N, H, W, Cp), ACT_DTYPE)
                      + _nbytes((N, nH, 2, Cp), jnp.float32))
    return pl.pallas_call(
        kernel,
        out_shape=out_shape,
        grid_spec=pltpu.PrefetchScalarGridSpec(
            num_scalar_prefetch=0,
            grid=(N, nH),
            in_specs=list(in_specs),
            out_specs=out_specs,
            scratch_shapes=list(scratch_shapes)),
        compiler_params=pltpu.CompilerParams(
            # no carried state across either axis -> both megacore-shardable
            dimension_semantics=("parallel", "parallel"),
            vmem_limit_bytes=_vmem_limit(resident_bytes)),
        cost_estimate=pl.CostEstimate(flops=flops, transcendentals=0,
                                      bytes_accessed=bytes_accessed),
    )(*inputs)


def residual_block_forward(x_nchw, params, dilation=(1, 1), residual=True, tile_h=None):
    """Forward pass of ResidualBlock with the module defaults (stride=1, downsample=None)."""
    N, Ci, H, W = (int(s) for s in x_nchw.shape)
    Co = int(params["w1"].shape[0])
    d1, d2 = int(dilation[0]), int(dilation[1])
    assert d1 <= PADL and d2 <= PADL, "dilation larger than the built-in spatial pad"
    assert params["w1"].shape[1] == Ci and params["w2"].shape[1] == Co
    if residual:
        assert Ci == Co, "residual add without downsample requires Cin == Cout"
    Cp = _round_up(max(Ci, Co), LANES)
    tile_h, sub_h = _pick_tiles(H, W, tile_h)
    assert H % tile_h == 0, "tile_h must divide H"
    nH = H // tile_h
    rows_per_tile = tile_h * W

    x_nhwc = jnp.transpose(x_nchw, (0, 2, 3, 1)).astype(jnp.float32)

    # conv1 input: channels padded to 128 lanes, spatial zero pad (top/bot d1, left PADL,
    # right d1), bf16 so the resident image block and tap loads are half-size MXU inputs.
    x_pad = jnp.pad(x_nhwc, ((0, 0), (d1, d1), (PADL, d1), (0, Cp - Ci))).astype(MXU_DTYPE)

    w1 = _prep_weight(params["w1"], Cp)
    b1 = _pad_vec(params["b1"], Cp).reshape(1, Cp)
    w2 = _prep_weight(params["w2"], Cp)
    b2 = _pad_vec(params["b2"], Cp).reshape(1, Cp)
    g1, be1 = _pad_vec(params["g1"], Cp), _pad_vec(params["beta1"], Cp)
    g2, be2 = _pad_vec(params["g2"], Cp), _pad_vec(params["beta2"], Cp)

    # ---- pass 1: conv1 + bias (bf16 out), per-tile Welford BN partial stats --------------- #
    k1 = functools.partial(_conv_bias_stats_kernel, tile_h=tile_h, sub_h=sub_h, d=d1, pad_l=PADL)
    in_specs1 = [
        pl.BlockSpec((None,) + tuple(x_pad.shape[1:]), lambda n, h: (n, 0, 0, 0)),
        pl.BlockSpec(w1.shape, lambda n, h: (0, 0, 0)),
        pl.BlockSpec(b1.shape, lambda n, h: (0, 0)),
    ]
    resident1 = 2 * (_nbytes(x_pad.shape[1:], MXU_DTYPE) + _nbytes(w1.shape, MXU_DTYPE)
                     + _nbytes(b1.shape, jnp.float32)
                     + _nbytes((tile_h, W, Cp), ACT_DTYPE) + _nbytes((2, Cp), jnp.float32))
    y1, stats1 = _conv_call(k1, (x_pad, w1, b1), in_specs1,
                            N=N, H=H, W=W, Cp=Cp, tile_h=tile_h, resident_bytes=resident1)
    scale1, shift1 = _bn_scale_shift(stats1, rows_per_tile, g1, be1)

    # ---- pass 2: fused bn1+relu (per-tile bf16 halo scratch) + conv2 + bias + stats -------- #
    k2 = functools.partial(_bn_relu_conv_bias_stats_kernel, tile_h=tile_h, sub_h=sub_h,
                           d=d2, pad_l=PADL, img_h=H)
    h1_shape = (tile_h + 2 * d2, PADL + W + d2, Cp)
    in_specs2 = [
        pl.BlockSpec((None, H, W, Cp), lambda n, h: (n, 0, 0, 0)),
        pl.BlockSpec((1, Cp), lambda n, h: (0, 0)),
        pl.BlockSpec((1, Cp), lambda n, h: (0, 0)),
        pl.BlockSpec(w2.shape, lambda n, h: (0, 0, 0)),
        pl.BlockSpec(b2.shape, lambda n, h: (0, 0)),
    ]
    resident2 = (2 * (_nbytes((H, W, Cp), ACT_DTYPE) + 2 * _nbytes((1, Cp), jnp.float32)
                      + _nbytes(w2.shape, MXU_DTYPE) + _nbytes(b2.shape, jnp.float32)
                      + _nbytes((tile_h, W, Cp), ACT_DTYPE) + _nbytes((2, Cp), jnp.float32))
                 + _nbytes(h1_shape, MXU_DTYPE))
    y2, stats2 = _conv_call(k2, (y1, scale1, shift1, w2, b2), in_specs2,
                            N=N, H=H, W=W, Cp=Cp, tile_h=tile_h, resident_bytes=resident2,
                            scratch_shapes=[pltpu.VMEM(h1_shape, MXU_DTYPE)])
    scale2, shift2 = _bn_scale_shift(stats2, rows_per_tile, g2, be2)

    # ---- pass 3: bn2 + residual + relu (unpadded residual and output, memory-bound) -------- #
    sc2 = scale2[:, :Co]
    sh2 = shift2[:, :Co]
    y2_spec = pl.BlockSpec((None, tile_h, W, Cp), lambda n, h: (n, h, 0, 0))
    out_spec = pl.BlockSpec((None, tile_h, W, Co), lambda n, h: (n, h, 0, 0))
    vec_spec = pl.BlockSpec((1, Co), lambda n, h: (0, 0))
    if residual:
        kernel3 = _bn_residual_relu_kernel
        inputs3 = (y2, sc2, sh2, x_nhwc)
        in_specs3 = [y2_spec, vec_spec, vec_spec,
                     pl.BlockSpec((None, tile_h, W, Ci), lambda n, h: (n, h, 0, 0))]
        res_bytes = _nbytes((tile_h, W, Ci), jnp.float32)
    else:
        kernel3 = _bn_relu_kernel
        inputs3 = (y2, sc2, sh2)
        in_specs3 = [y2_spec, vec_spec, vec_spec]
        res_bytes = 0
    resident3 = 2 * (_nbytes((tile_h, W, Cp), ACT_DTYPE) + 2 * _nbytes((1, Co), jnp.float32)
                     + res_bytes + _nbytes((tile_h, W, Co), jnp.float32))
    out = pl.pallas_call(
        kernel3,
        out_shape=jax.ShapeDtypeStruct((N, H, W, Co), jnp.float32),
        grid_spec=pltpu.PrefetchScalarGridSpec(
            num_scalar_prefetch=0, grid=(N, nH),
            in_specs=in_specs3, out_specs=out_spec),
        compiler_params=pltpu.CompilerParams(
            dimension_semantics=("parallel", "parallel"),
            vmem_limit_bytes=_vmem_limit(resident3)),
    )(*inputs3)

    return jnp.transpose(out, (0, 3, 1, 2))   # NHWC (real Co channels) -> NCHW


# ----------------------------- pure-JAX reference --------------------------- #
def reference_forward(x, p, dilation=(1, 1), residual=True):
    def conv(x, w, b, d):
        y = lax.conv_general_dilated(x, w, window_strides=(1, 1),
                                     padding=((d, d), (d, d)), rhs_dilation=(d, d),
                                     dimension_numbers=("NCHW", "OIHW", "NCHW"))
        return y + b[None, :, None, None]

    def bn(x, g, beta):
        mean = jnp.mean(x, axis=(0, 2, 3), keepdims=True)
        var = jnp.mean((x - mean) ** 2, axis=(0, 2, 3), keepdims=True)
        return (g[None, :, None, None] * (x - mean) * lax.rsqrt(var + EPS)
                + beta[None, :, None, None])

    out = jnp.maximum(bn(conv(x, p["w1"], p["b1"], dilation[0]), p["g1"], p["beta1"]), 0.0)
    out = bn(conv(out, p["w2"], p["b2"], dilation[1]), p["g2"], p["beta2"])
    if residual:
        out = out + x
    return jnp.maximum(out, 0.0)


# ----------------------------------- main ----------------------------------- #
if __name__ == "__main__":
    key = jax.random.PRNGKey(0)
    ks = jax.random.split(key, 9)
    N, C, H, W = 2, 4, 16, 16   # in_channels == out_channels (residual path, no downsample)

    params = {
        "w1": 0.2 * jax.random.normal(ks[0], (C, C, 3, 3), jnp.float32),
        "b1": 0.1 * jax.random.normal(ks[1], (C,), jnp.float32),
        "g1": 1.0 + 0.1 * jax.random.normal(ks[2], (C,), jnp.float32),
        "beta1": 0.1 * jax.random.normal(ks[3], (C,), jnp.float32),
        "w2": 0.2 * jax.random.normal(ks[4], (C, C, 3, 3), jnp.float32),
        "b2": 0.1 * jax.random.normal(ks[5], (C,), jnp.float32),
        "g2": 1.0 + 0.1 * jax.random.normal(ks[6], (C,), jnp.float32),
        "beta2": 0.1 * jax.random.normal(ks[7], (C,), jnp.float32),
    }
    x = jax.random.normal(ks[8], (N, C, H, W), jnp.float32)

    # tile_h=4 exercises the multi-row-tile path (halo recompute + per-tile BN partial stats).
    fwd = jax.jit(functools.partial(residual_block_forward, tile_h=4))
    out = jax.block_until_ready(fwd(x, params))
    ref = reference_forward(x, params)

    assert out.shape == (N, C, H, W) and out.dtype == jnp.float32
    # Intentional numerics (documented per review): MXU inputs and the y1/y2/h1 intermediates
    # are bf16; accumulation and BN statistics are f32.  Tolerance sized for that bf16 chain.
    assert bool(jnp.allclose(out, ref, atol=1e-1, rtol=5e-2)), "mismatch vs reference"
    print("KERNEL_OK")
</pallas_src>

<mosaic_0001>
module attributes {stable_mosaic.version = 11 : i64} {
  func.func @_conv_bias_stats_kernel(%arg0: i32, %arg1: i32, %arg2: memref<1x18x25x128xbf16, #tpu.memory_space<vmem>>, %arg3: memref<3x384x128xbf16, #tpu.memory_space<vmem>>, %arg4: memref<1x128xf32, #tpu.memory_space<vmem>>, %arg5: memref<1x4x16x128xbf16, #tpu.memory_space<vmem>>, %arg6: memref<1x1x2x128xf32, #tpu.memory_space<vmem>>) attributes {dimension_semantics = [#tpu.dimension_semantics<parallel>, #tpu.dimension_semantics<parallel>], iteration_bounds = array<i64: 2, 4>, scalar_prefetch = 0 : i64, scratch_operands = 0 : i64, tpu.core_type = #tpu.core_type<tc>, window_params = [{transform_indices = @transform_0, window_bounds = array<i64: 1, 18, 25, 128>}, {pipeline_mode = #tpu.pipeline_mode<synchronous>, transform_indices = @transform_1, window_bounds = array<i64: 3, 384, 128>}, {pipeline_mode = #tpu.pipeline_mode<synchronous>, transform_indices = @transform_2, window_bounds = array<i64: 1, 128>}, {transform_indices = @transform_3, window_bounds = array<i64: 1, 4, 16, 128>}, {transform_indices = @transform_4, window_bounds = array<i64: 1, 1, 2, 128>}]} {
    %c4_i32 = arith.constant 4 : i32
    %0 = arith.muli %arg1, %c4_i32 : i32
    %1 = tpu.assume_multiple %0, 4 : i32
    %c0 = arith.constant 0 : index
    %c0_0 = arith.constant 0 : index
    %2 = vector.load %arg4[%c0, %c0_0] : memref<1x128xf32, #tpu.memory_space<vmem>>, vector<1x128xf32>
    %c0_i32 = arith.constant 0 : i32
    %3 = arith.addi %1, %c0_i32 : i32
    %c0_i32_1 = arith.constant 0 : i32
    %4 = arith.addi %3, %c0_i32_1 : i32
    %c0_2 = arith.constant 0 : index
    %5 = arith.index_cast %4 : i32 to index
    %c7 = arith.constant 7 : index
    %c0_3 = arith.constant 0 : index
    %6 = vector.load %arg2[%c0_2, %5, %c7, %c0_3] : memref<1x18x25x128xbf16, #tpu.memory_space<vmem>>, vector<1x4x16x128xbf16>
    %7 = vector.shape_cast %6 : vector<1x4x16x128xbf16> to vector<4x16x128xbf16>
    %c0_i32_4 = arith.constant 0 : i32
    %8 = arith.addi %3, %c0_i32_4 : i32
    %c0_5 = arith.constant 0 : index
    %9 = arith.index_cast %8 : i32 to index
    %c8 = arith.constant 8 : index
    %c0_6 = arith.constant 0 : index
    %10 = vector.load %arg2[%c0_5, %9, %c8, %c0_6] : memref<1x18x25x128xbf16, #tpu.memory_space<vmem>>, vector<1x4x16x128xbf16>
    %11 = vector.shape_cast %10 : vector<1x4x16x128xbf16> to vector<4x16x128xbf16>
    %c0_i32_7 = arith.constant 0 : i32
    %12 = arith.addi %3, %c0_i32_7 : i32
    %c0_8 = arith.constant 0 : index
    %13 = arith.index_cast %12 : i32 to index
    %c9 = arith.constant 9 : index
    %c0_9 = arith.constant 0 : index
    %14 = vector.load %arg2[%c0_8, %13, %c9, %c0_9] : memref<1x18x25x128xbf16, #tpu.memory_space<vmem>>, vector<1x4x16x128xbf16>
    %15 = vector.shape_cast %14 : vector<1x4x16x128xbf16> to vector<4x16x128xbf16>
    %16 = tpu.concatenate %7, %11, %15 in 2 : vector<4x16x128xbf16>, vector<4x16x128xbf16>, vector<4x16x128xbf16> -> vector<4x16x384xbf16>
    %17 = vector.shape_cast %16 : vector<4x16x384xbf16> to vector<64x384xbf16>
    %c0_10 = arith.constant 0 : index
    %c0_11 = arith.constant 0 : index
    %c0_12 = arith.constant 0 : index
    %18 = vector.load %arg3[%c0_10, %c0_11, %c0_12] : memref<3x384x128xbf16, #tpu.memory_space<vmem>>, vector<1x384x128xbf16>
    %19 = vector.shape_cast %18 : vector<1x384x128xbf16> to vector<384x128xbf16>
    %cst = arith.constant dense<0.000000e+00> : vector<64x128xf32>
    %20 = tpu.matmul %17, %19, %cst {dimension_numbers = #tpu.dot_dimension_numbers<[1], [0], [0], [1], [0, 0, 1, 1], [], []>} : vector<64x384xbf16>, vector<384x128xbf16>, vector<64x128xf32> -> vector<64x128xf32>
    %c1_i32 = arith.constant 1 : i32
    %21 = arith.addi %3, %c1_i32 : i32
    %c0_13 = arith.constant 0 : index
    %22 = arith.index_cast %21 : i32 to index
    %c7_14 = arith.constant 7 : index
    %c0_15 = arith.constant 0 : index
    %23 = vector.load %arg2[%c0_13, %22, %c7_14, %c0_15] : memref<1x18x25x128xbf16, #tpu.memory_space<vmem>>, vector<1x4x16x128xbf16>
    %24 = vector.shape_cast %23 : vector<1x4x16x128xbf16> to vector<4x16x128xbf16>
    %c1_i32_16 = arith.constant 1 : i32
    %25 = arith.addi %3, %c1_i32_16 : i32
    %c0_17 = arith.constant 0 : index
    %26 = arith.index_cast %25 : i32 to index
    %c8_18 = arith.constant 8 : index
    %c0_19 = arith.constant 0 : index
    %27 = vector.load %arg2[%c0_17, %26, %c8_18, %c0_19] : memref<1x18x25x128xbf16, #tpu.memory_space<vmem>>, vector<1x4x16x128xbf16>
    %28 = vector.shape_cast %27 : vector<1x4x16x128xbf16> to vector<4x16x128xbf16>
    %c1_i32_20 = arith.constant 1 : i32
    %29 = arith.addi %3, %c1_i32_20 : i32
    %c0_21 = arith.constant 0 : index
    %30 = arith.index_cast %29 : i32 to index
    %c9_22 = arith.constant 9 : index
    %c0_23 = arith.constant 0 : index
    %31 = vector.load %arg2[%c0_21, %30, %c9_22, %c0_23] : memref<1x18x25x128xbf16, #tpu.memory_space<vmem>>, vector<1x4x16x128xbf16>
    %32 = vector.shape_cast %31 : vector<1x4x16x128xbf16> to vector<4x16x128xbf16>
    %33 = tpu.concatenate %24, %28, %32 in 2 : vector<4x16x128xbf16>, vector<4x16x128xbf16>, vector<4x16x128xbf16> -> vector<4x16x384xbf16>
    %34 = vector.shape_cast %33 : vector<4x16x384xbf16> to vector<64x384xbf16>
    %c1 = arith.constant 1 : index
    %c0_24 = arith.constant 0 : index
    %c0_25 = arith.constant 0 : index
    %35 = vector.load %arg3[%c1, %c0_24, %c0_25] : memref<3x384x128xbf16, #tpu.memory_space<vmem>>, vector<1x384x128xbf16>
    %36 = vector.shape_cast %35 : vector<1x384x128xbf16> to vector<384x128xbf16>
    %cst_26 = arith.constant dense<0.000000e+00> : vector<64x128xf32>
    %37 = tpu.matmul %34, %36, %cst_26 {dimension_numbers = #tpu.dot_dimension_numbers<[1], [0], [0], [1], [0, 0, 1, 1], [], []>} : vector<64x384xbf16>, vector<384x128xbf16>, vector<64x128xf32> -> vector<64x128xf32>
    %38 = arith.addf %20, %37 : vector<64x128xf32>
    %c2_i32 = arith.constant 2 : i32
    %39 = arith.addi %3, %c2_i32 : i32
    %c0_27 = arith.constant 0 : index
    %40 = arith.index_cast %39 : i32 to index
    %c7_28 = arith.constant 7 : index
    %c0_29 = arith.constant 0 : index
    %41 = vector.load %arg2[%c0_27, %40, %c7_28, %c0_29] : memref<1x18x25x128xbf16, #tpu.memory_space<vmem>>, vector<1x4x16x128xbf16>
    %42 = vector.shape_cast %41 : vector<1x4x16x128xbf16> to vector<4x16x128xbf16>
    %c2_i32_30 = arith.constant 2 : i32
    %43 = arith.addi %3, %c2_i32_30 : i32
    %c0_31 = arith.constant 0 : index
    %44 = arith.index_cast %43 : i32 to index
    %c8_32 = arith.constant 8 : index
    %c0_33 = arith.constant 0 : index
    %45 = vector.load %arg2[%c0_31, %44, %c8_32, %c0_33] : memref<1x18x25x128xbf16, #tpu.memory_space<vmem>>, vector<1x4x16x128xbf16>
    %46 = vector.shape_cast %45 : vector<1x4x16x128xbf16> to vector<4x16x128xbf16>
    %c2_i32_34 = arith.constant 2 : i32
    %47 = arith.addi %3, %c2_i32_34 : i32
    %c0_35 = arith.constant 0 : index
    %48 = arith.index_cast %47 : i32 to index
    %c9_36 = arith.constant 9 : index
    %c0_37 = arith.constant 0 : index
    %49 = vector.load %arg2[%c0_35, %48, %c9_36, %c0_37] : memref<1x18x25x128xbf16, #tpu.memory_space<vmem>>, vector<1x4x16x128xbf16>
    %50 = vector.shape_cast %49 : vector<1x4x16x128xbf16> to vector<4x16x128xbf16>
    %51 = tpu.concatenate %42, %46, %50 in 2 : vector<4x16x128xbf16>, vector<4x16x128xbf16>, vector<4x16x128xbf16> -> vector<4x16x384xbf16>
    %52 = vector.shape_cast %51 : vector<4x16x384xbf16> to vector<64x384xbf16>
    %c2 = arith.constant 2 : index
    %c0_38 = arith.constant 0 : index
    %c0_39 = arith.constant 0 : index
    %53 = vector.load %arg3[%c2, %c0_38, %c0_39] : memref<3x384x128xbf16, #tpu.memory_space<vmem>>, vector<1x384x128xbf16>
    %54 = vector.shape_cast %53 : vector<1x384x128xbf16> to vector<384x128xbf16>
    %cst_40 = arith.constant dense<0.000000e+00> : vector<64x128xf32>
    %55 = tpu.matmul %52, %54, %cst_40 {dimension_numbers = #tpu.dot_dimension_numbers<[1], [0], [0], [1], [0, 0, 1, 1], [], []>} : vector<64x384xbf16>, vector<384x128xbf16>, vector<64x128xf32> -> vector<64x128xf32>
    %56 = arith.addf %38, %55 : vector<64x128xf32>
    %57 = vector.broadcast %2 : vector<1x128xf32> to vector<64x128xf32>
    %58 = arith.addf %56, %57 : vector<64x128xf32>
    %59 = vector.shape_cast %58 : vector<64x128xf32> to vector<4x16x128xf32>
    %60 = arith.truncf %59 : vector<4x16x128xf32> to vector<4x16x128xbf16>
    %c0_41 = arith.constant 0 : index
    %c0_42 = arith.constant 0 : index
    %c0_43 = arith.constant 0 : index
    %c0_44 = arith.constant 0 : index
    %61 = vector.load %arg5[%c0_41, %c0_42, %c0_43, %c0_44] : memref<1x4x16x128xbf16, #tpu.memory_space<vmem>>, vector<1x4x16x128xbf16>
    %62 = vector.shape_cast %61 : vector<1x4x16x128xbf16> to vector<4x16x128xbf16>
    %63 = vector.shape_cast %60 : vector<4x16x128xbf16> to vector<1x4x16x128xbf16>
    tpu.vector_store %arg5[%c0_41, %c0_42, %c0_43, %c0_44], %63 {strides = array<i32>} : memref<1x4x16x128xbf16, #tpu.memory_space<vmem>>, vector<1x4x16x128xbf16>,
    %cst_45 = arith.constant dense<0.000000e+00> : vector<128xf32>
    %64 = vector.multi_reduction <add>, %58, %cst_45 [0] : vector<64x128xf32> to vector<128xf32>
    %65 = vector.shape_cast %64 : vector<128xf32> to vector<1x128xf32>
    %cst_46 = arith.constant 1.562500e-02 : f32
    %66 = vector.broadcast %cst_46 : f32 to vector<1x128xf32>
    %67 = arith.mulf %65, %66 : vector<1x128xf32>
    %68 = vector.broadcast %67 : vector<1x128xf32> to vector<64x128xf32>
    %69 = arith.subf %58, %68 : vector<64x128xf32>
    %70 = arith.mulf %69, %69 : vector<64x128xf32>
    %cst_47 = arith.constant dense<0.000000e+00> : vector<128xf32>
    %71 = vector.multi_reduction <add>, %70, %cst_47 [0] : vector<64x128xf32> to vector<128xf32>
    %72 = vector.shape_cast %71 : vector<128xf32> to vector<1x128xf32>
    %73 = tpu.concatenate %67, %72 in 0 : vector<1x128xf32>, vector<1x128xf32> -> vector<2x128xf32>
    %c0_48 = arith.constant 0 : index
    %c0_49 = arith.constant 0 : index
    %c0_50 = arith.constant 0 : index
    %c0_51 = arith.constant 0 : index
    %74 = vector.load %arg6[%c0_48, %c0_49, %c0_50, %c0_51] : memref<1x1x2x128xf32, #tpu.memory_space<vmem>>, vector<1x1x2x128xf32>
    %75 = vector.shape_cast %74 : vector<1x1x2x128xf32> to vector<2x128xf32>
    %76 = vector.shape_cast %73 : vector<2x128xf32> to vector<1x1x2x128xf32>
    tpu.vector_store %arg6[%c0_48, %c0_49, %c0_50, %c0_51], %76 {strides = array<i32>} : memref<1x1x2x128xf32, #tpu.memory_space<vmem>>, vector<1x1x2x128xf32>,
    return
  }
  func.func @transform_0(%arg0: i32, %arg1: i32) -> (i32, i32, i32, i32) {
    %c0_i32 = arith.constant 0 : i32
    %c0_i32_0 = arith.constant 0 : i32
    %c0_i32_1 = arith.constant 0 : i32
    %c0_i32_2 = arith.constant 0 : i32
    return %arg0, %c0_i32, %c0_i32_0, %c0_i32_1 : i32, i32, i32, i32
  }
  func.func @transform_1(%arg0: i32, %arg1: i32) -> (i32, i32, i32) {
    %c0_i32 = arith.constant 0 : i32
    %c0_i32_0 = arith.constant 0 : i32
    %c0_i32_1 = arith.constant 0 : i32
    %c0_i32_2 = arith.constant 0 : i32
    return %c0_i32, %c0_i32_0, %c0_i32_1 : i32, i32, i32
  }
  func.func @transform_2(%arg0: i32, %arg1: i32) -> (i32, i32) {
    %c0_i32 = arith.constant 0 : i32
    %c0_i32_0 = arith.constant 0 : i32
    %c0_i32_1 = arith.constant 0 : i32
    return %c0_i32, %c0_i32_0 : i32, i32
  }
  func.func @transform_3(%arg0: i32, %arg1: i32) -> (i32, i32, i32, i32) {
    %c0_i32 = arith.constant 0 : i32
    %c0_i32_0 = arith.constant 0 : i32
    %c0_i32_1 = arith.constant 0 : i32
    return %arg0, %arg1, %c0_i32, %c0_i32_0 : i32, i32, i32, i32
  }
  func.func @transform_4(%arg0: i32, %arg1: i32) -> (i32, i32, i32, i32) {
    %c0_i32 = arith.constant 0 : i32
    %c0_i32_0 = arith.constant 0 : i32
    %c0_i32_1 = arith.constant 0 : i32
    return %arg0, %arg1, %c0_i32, %c0_i32_0 : i32, i32, i32, i32
  }
}

module attributes {stable_mosaic.version = 11 : i64} {
  func.func @_bn_residual_relu_kernel(%arg0: i32, %arg1: i32, %arg2: memref<1x4x16x128xbf16, #tpu.memory_space<vmem>>, %arg3: memref<1x4xf32, #tpu.memory_space<vmem>>, %arg4: memref<1x4xf32, #tpu.memory_space<vmem>>, %arg5: memref<1x4x16x4xf32, #tpu.memory_space<vmem>>, %arg6: memref<1x4x16x4xf32, #tpu.memory_space<vmem>>) attributes {dimension_semantics = [#tpu.dimension_semantics<parallel>, #tpu.dimension_semantics<parallel>], iteration_bounds = array<i64: 2, 4>, scalar_prefetch = 0 : i64, scratch_operands = 0 : i64, tpu.core_type = #tpu.core_type<tc>, window_params = [{transform_indices = @transform_0, window_bounds = array<i64: 1, 4, 16, 128>}, {pipeline_mode = #tpu.pipeline_mode<synchronous>, transform_indices = @transform_1, window_bounds = array<i64: 1, 4>}, {pipeline_mode = #tpu.pipeline_mode<synchronous>, transform_indices = @transform_2, window_bounds = array<i64: 1, 4>}, {transform_indices = @transform_3, window_bounds = array<i64: 1, 4, 16, 4>}, {transform_indices = @transform_4, window_bounds = array<i64: 1, 4, 16, 4>}]} {
    %c0 = arith.constant 0 : index
    %c0_0 = arith.constant 0 : index
    %c0_1 = arith.constant 0 : index
    %c0_2 = arith.constant 0 : index
    %0 = vector.load %arg2[%c0, %c0_0, %c0_1, %c0_2] : memref<1x4x16x128xbf16, #tpu.memory_space<vmem>>, vector<1x4x16x128xbf16>
    %1 = vector.shape_cast %0 : vector<1x4x16x128xbf16> to vector<4x16x128xbf16>
    %2 = vector.extract_strided_slice %1 {offsets = [0, 0, 0], sizes = [4, 16, 4], strides = [1, 1, 1]} : vector<4x16x128xbf16> to vector<4x16x4xbf16>
    %3 = arith.extf %2 : vector<4x16x4xbf16> to vector<4x16x4xf32>
    %c0_3 = arith.constant 0 : index
    %c0_4 = arith.constant 0 : index
    %4 = vector.load %arg3[%c0_3, %c0_4] : memref<1x4xf32, #tpu.memory_space<vmem>>, vector<1x4xf32>
    %5 = vector.shape_cast %4 : vector<1x4xf32> to vector<1x1x4xf32>
    %6 = vector.broadcast %5 : vector<1x1x4xf32> to vector<4x16x4xf32>
    %7 = arith.mulf %3, %6 : vector<4x16x4xf32>
    %c0_5 = arith.constant 0 : index
    %c0_6 = arith.constant 0 : index
    %8 = vector.load %arg4[%c0_5, %c0_6] : memref<1x4xf32, #tpu.memory_space<vmem>>, vector<1x4xf32>
    %9 = vector.shape_cast %8 : vector<1x4xf32> to vector<1x1x4xf32>
    %10 = vector.broadcast %9 : vector<1x1x4xf32> to vector<4x16x4xf32>
    %11 = arith.addf %7, %10 : vector<4x16x4xf32>
    %c0_7 = arith.constant 0 : index
    %c0_8 = arith.constant 0 : index
    %c0_9 = arith.constant 0 : index
    %c0_10 = arith.constant 0 : index
    %12 = vector.load %arg5[%c0_7, %c0_8, %c0_9, %c0_10] : memref<1x4x16x4xf32, #tpu.memory_space<vmem>>, vector<1x4x16x4xf32>
    %13 = vector.shape_cast %12 : vector<1x4x16x4xf32> to vector<4x16x4xf32>
    %14 = arith.addf %11, %13 : vector<4x16x4xf32>
    %cst = arith.constant 0.000000e+00 : f32
    %15 = vector.broadcast %cst : f32 to vector<4x16x4xf32>
    %16 = arith.maximumf %14, %15 : vector<4x16x4xf32>
    %c0_11 = arith.constant 0 : index
    %c0_12 = arith.constant 0 : index
    %c0_13 = arith.constant 0 : index
    %c0_14 = arith.constant 0 : index
    %17 = vector.load %arg6[%c0_11, %c0_12, %c0_13, %c0_14] : memref<1x4x16x4xf32, #tpu.memory_space<vmem>>, vector<1x4x16x4xf32>
    %18 = vector.shape_cast %17 : vector<1x4x16x4xf32> to vector<4x16x4xf32>
    %19 = vector.shape_cast %16 : vector<4x16x4xf32> to vector<1x4x16x4xf32>
    tpu.vector_store %arg6[%c0_11, %c0_12, %c0_13, %c0_14], %19 {strides = array<i32>} : memref<1x4x16x4xf32, #tpu.memory_space<vmem>>, vector<1x4x16x4xf32>,
    return
  }
  func.func @transform_0(%arg0: i32, %arg1: i32) -> (i32, i32, i32, i32) {
    %c0_i32 = arith.constant 0 : i32
    %c0_i32_0 = arith.constant 0 : i32
    %c0_i32_1 = arith.constant 0 : i32
    return %arg0, %arg1, %c0_i32, %c0_i32_0 : i32, i32, i32, i32
  }
  func.func @transform_1(%arg0: i32, %arg1: i32) -> (i32, i32) {
    %c0_i32 = arith.constant 0 : i32
    %c0_i32_0 = arith.constant 0 : i32
    %c0_i32_1 = arith.constant 0 : i32
    return %c0_i32, %c0_i32_0 : i32, i32
  }
  func.func @transform_2(%arg0: i32, %arg1: i32) -> (i32, i32) {
    %c0_i32 = arith.constant 0 : i32
    %c0_i32_0 = arith.constant 0 : i32
    %c0_i32_1 = arith.constant 0 : i32
    return %c0_i32, %c0_i32_0 : i32, i32
  }
  func.func @transform_3(%arg0: i32, %arg1: i32) -> (i32, i32, i32, i32) {
    %c0_i32 = arith.constant 0 : i32
    %c0_i32_0 = arith.constant 0 : i32
    %c0_i32_1 = arith.constant 0 : i32
    return %arg0, %arg1, %c0_i32, %c0_i32_0 : i32, i32, i32, i32
  }
  func.func @transform_4(%arg0: i32, %arg1: i32) -> (i32, i32, i32, i32) {
    %c0_i32 = arith.constant 0 : i32
    %c0_i32_0 = arith.constant 0 : i32
    %c0_i32_1 = arith.constant 0 : i32
    return %arg0, %arg1, %c0_i32, %c0_i32_0 : i32, i32, i32, i32
  }
}

module attributes {stable_mosaic.version = 11 : i64} {
  func.func @_bn_relu_conv_bias_stats_kernel(%arg0: i32, %arg1: i32, %arg2: memref<1x16x16x128xbf16, #tpu.memory_space<vmem>>, %arg3: memref<1x128xf32, #tpu.memory_space<vmem>>, %arg4: memref<1x128xf32, #tpu.memory_space<vmem>>, %arg5: memref<3x384x128xbf16, #tpu.memory_space<vmem>>, %arg6: memref<1x128xf32, #tpu.memory_space<vmem>>, %arg7: memref<1x4x16x128xbf16, #tpu.memory_space<vmem>>, %arg8: memref<1x1x2x128xf32, #tpu.memory_space<vmem>>, %arg9: memref<6x25x128xbf16, #tpu.memory_space<vmem>>) attributes {dimension_semantics = [#tpu.dimension_semantics<parallel>, #tpu.dimension_semantics<parallel>], iteration_bounds = array<i64: 2, 4>, scalar_prefetch = 0 : i64, scratch_operands = 1 : i64, tpu.core_type = #tpu.core_type<tc>, window_params = [{transform_indices = @transform_0, window_bounds = array<i64: 1, 16, 16, 128>}, {pipeline_mode = #tpu.pipeline_mode<synchronous>, transform_indices = @transform_1, window_bounds = array<i64: 1, 128>}, {pipeline_mode = #tpu.pipeline_mode<synchronous>, transform_indices = @transform_2, window_bounds = array<i64: 1, 128>}, {pipeline_mode = #tpu.pipeline_mode<synchronous>, transform_indices = @transform_3, window_bounds = array<i64: 3, 384, 128>}, {pipeline_mode = #tpu.pipeline_mode<synchronous>, transform_indices = @transform_4, window_bounds = array<i64: 1, 128>}, {transform_indices = @transform_5, window_bounds = array<i64: 1, 4, 16, 128>}, {transform_indices = @transform_6, window_bounds = array<i64: 1, 1, 2, 128>}]} {
    %c4_i32 = arith.constant 4 : i32
    %0 = arith.muli %arg1, %c4_i32 : i32
    %1 = tpu.assume_multiple %0, 4 : i32
    %c0 = arith.constant 0 : index
    %c0_0 = arith.constant 0 : index
    %2 = vector.load %arg3[%c0, %c0_0] : memref<1x128xf32, #tpu.memory_space<vmem>>, vector<1x128xf32>
    %c0_1 = arith.constant 0 : index
    %c0_2 = arith.constant 0 : index
    %3 = vector.load %arg4[%c0_1, %c0_2] : memref<1x128xf32, #tpu.memory_space<vmem>>, vector<1x128xf32>
    %cst = arith.constant 0.000000e+00 : bf16
    %4 = vector.broadcast %cst : bf16 to vector<6x8x128xbf16>
    %c0_3 = arith.constant 0 : index
    %c0_4 = arith.constant 0 : index
    %c0_5 = arith.constant 0 : index
    %5 = vector.load %arg9[%c0_3, %c0_4, %c0_5] : memref<6x25x128xbf16, #tpu.memory_space<vmem>>, vector<6x8x128xbf16>
    tpu.vector_store %arg9[%c0_3, %c0_4, %c0_5], %4 {strides = array<i32>} : memref<6x25x128xbf16, #tpu.memory_space<vmem>>, vector<6x8x128xbf16>,
    %cst_6 = arith.constant 0.000000e+00 : bf16
    %6 = vector.broadcast %cst_6 : bf16 to vector<6x1x128xbf16>
    %c0_7 = arith.constant 0 : index
    %c24 = arith.constant 24 : index
    %c0_8 = arith.constant 0 : index
    %7 = vector.load %arg9[%c0_7, %c24, %c0_8] : memref<6x25x128xbf16, #tpu.memory_space<vmem>>, vector<6x1x128xbf16>
    tpu.vector_store %arg9[%c0_7, %c24, %c0_8], %6 {strides = array<i32>} : memref<6x25x128xbf16, #tpu.memory_space<vmem>>, vector<6x1x128xbf16>,
    %c0_i32 = arith.constant 0 : i32
    %8 = arith.addi %1, %c0_i32 : i32
    %c0_9 = arith.constant 0 : index
    %9 = arith.index_cast %8 : i32 to index
    %c0_10 = arith.constant 0 : index
    %c0_11 = arith.constant 0 : index
    %10 = vector.load %arg2[%c0_9, %9, %c0_10, %c0_11] : memref<1x16x16x128xbf16, #tpu.memory_space<vmem>>, vector<1x4x16x128xbf16>
    %11 = vector.shape_cast %10 : vector<1x4x16x128xbf16> to vector<4x16x128xbf16>
    %12 = arith.extf %11 : vector<4x16x128xbf16> to vector<4x16x128xf32>
    %13 = vector.shape_cast %2 : vector<1x128xf32> to vector<1x1x128xf32>
    %14 = vector.broadcast %13 : vector<1x1x128xf32> to vector<4x16x128xf32>
    %15 = arith.mulf %12, %14 : vector<4x16x128xf32>
    %16 = vector.shape_cast %3 : vector<1x128xf32> to vector<1x1x128xf32>
    %17 = vector.broadcast %16 : vector<1x1x128xf32> to vector<4x16x128xf32>
    %18 = arith.addf %15, %17 : vector<4x16x128xf32>
    %cst_12 = arith.constant 0.000000e+00 : f32
    %19 = vector.broadcast %cst_12 : f32 to vector<4x16x128xf32>
    %20 = arith.maximumf %18, %19 : vector<4x16x128xf32>
    %21 = arith.truncf %20 : vector<4x16x128xf32> to vector<4x16x128xbf16>
    %c1 = arith.constant 1 : index
    %c8 = arith.constant 8 : index
    %c0_13 = arith.constant 0 : index
    %22 = vector.load %arg9[%c1, %c8, %c0_13] : memref<6x25x128xbf16, #tpu.memory_space<vmem>>, vector<4x16x128xbf16>
    tpu.vector_store %arg9[%c1, %c8, %c0_13], %21 {strides = array<i32>} : memref<6x25x128xbf16, #tpu.memory_space<vmem>>, vector<4x16x128xbf16>,
    %c1_i32 = arith.constant 1 : i32
    %23 = arith.subi %1, %c1_i32 : i32
    %c0_i32_14 = arith.constant 0 : i32
    %24 = arith.addi %23, %c0_i32_14 : i32
    %c4_i32_15 = arith.constant 4 : i32
    %25 = arith.addi %1, %c4_i32_15 : i32
    %c0_i32_16 = arith.constant 0 : i32
    %26 = arith.addi %25, %c0_i32_16 : i32
    %c0_i32_17 = arith.constant 0 : i32
    %c15_i32 = arith.constant 15 : i32
    %27 = arith.maxsi %c0_i32_17, %24 : i32
    %28 = arith.minsi %c15_i32, %27 : i32
    %c0_18 = arith.constant 0 : index
    %29 = arith.index_cast %28 : i32 to index
    %c0_19 = arith.constant 0 : index
    %c0_20 = arith.constant 0 : index
    %30 = vector.load %arg2[%c0_18, %29, %c0_19, %c0_20] : memref<1x16x16x128xbf16, #tpu.memory_space<vmem>>, vector<1x1x16x128xbf16>
    %31 = vector.shape_cast %30 : vector<1x1x16x128xbf16> to vector<1x16x128xbf16>
    %32 = arith.extf %31 : vector<1x16x128xbf16> to vector<1x16x128xf32>
    %33 = vector.shape_cast %2 : vector<1x128xf32> to vector<1x1x128xf32>
    %34 = vector.broadcast %33 : vector<1x1x128xf32> to vector<1x16x128xf32>
    %35 = arith.mulf %32, %34 : vector<1x16x128xf32>
    %36 = vector.shape_cast %3 : vector<1x128xf32> to vector<1x1x128xf32>
    %37 = vector.broadcast %36 : vector<1x1x128xf32> to vector<1x16x128xf32>
    %38 = arith.addf %35, %37 : vector<1x16x128xf32>
    %cst_21 = arith.constant 0.000000e+00 : f32
    %39 = vector.broadcast %cst_21 : f32 to vector<1x16x128xf32>
    %40 = arith.maximumf %38, %39 : vector<1x16x128xf32>
    %c0_i32_22 = arith.constant 0 : i32
    %41 = arith.cmpi sge, %24, %c0_i32_22 : i32
    %c16_i32 = arith.constant 16 : i32
    %42 = arith.cmpi slt, %24, %c16_i32 : i32
    %43 = arith.andi %41, %42 : i1
    %cst_23 = arith.constant 0.000000e+00 : f32
    %44 = vector.broadcast %cst_23 : f32 to vector<1x16x128xf32>
    %45 = arith.select %43, %40, %44 : vector<1x16x128xf32>
    %46 = arith.truncf %45 : vector<1x16x128xf32> to vector<1x16x128xbf16>
    %c0_24 = arith.constant 0 : index
    %c8_25 = arith.constant 8 : index
    %c0_26 = arith.constant 0 : index
    %47 = vector.load %arg9[%c0_24, %c8_25, %c0_26] : memref<6x25x128xbf16, #tpu.memory_space<vmem>>, vector<1x16x128xbf16>
    tpu.vector_store %arg9[%c0_24, %c8_25, %c0_26], %46 {strides = array<i32>} : memref<6x25x128xbf16, #tpu.memory_space<vmem>>, vector<1x16x128xbf16>,
    %c0_i32_27 = arith.constant 0 : i32
    %c15_i32_28 = arith.constant 15 : i32
    %48 = arith.maxsi %c0_i32_27, %26 : i32
    %49 = arith.minsi %c15_i32_28, %48 : i32
    %c0_29 = arith.constant 0 : index
    %50 = arith.index_cast %49 : i32 to index
    %c0_30 = arith.constant 0 : index
    %c0_31 = arith.constant 0 : index
    %51 = vector.load %arg2[%c0_29, %50, %c0_30, %c0_31] : memref<1x16x16x128xbf16, #tpu.memory_space<vmem>>, vector<1x1x16x128xbf16>
    %52 = vector.shape_cast %51 : vector<1x1x16x128xbf16> to vector<1x16x128xbf16>
    %53 = arith.extf %52 : vector<1x16x128xbf16> to vector<1x16x128xf32>
    %54 = vector.shape_cast %2 : vector<1x128xf32> to vector<1x1x128xf32>
    %55 = vector.broadcast %54 : vector<1x1x128xf32> to vector<1x16x128xf32>
    %56 = arith.mulf %53, %55 : vector<1x16x128xf32>
    %57 = vector.shape_cast %3 : vector<1x128xf32> to vector<1x1x128xf32>
    %58 = vector.broadcast %57 : vector<1x1x128xf32> to vector<1x16x128xf32>
    %59 = arith.addf %56, %58 : vector<1x16x128xf32>
    %cst_32 = arith.constant 0.000000e+00 : f32
    %60 = vector.broadcast %cst_32 : f32 to vector<1x16x128xf32>
    %61 = arith.maximumf %59, %60 : vector<1x16x128xf32>
    %c0_i32_33 = arith.constant 0 : i32
    %62 = arith.cmpi sge, %26, %c0_i32_33 : i32
    %c16_i32_34 = arith.constant 16 : i32
    %63 = arith.cmpi slt, %26, %c16_i32_34 : i32
    %64 = arith.andi %62, %63 : i1
    %cst_35 = arith.constant 0.000000e+00 : f32
    %65 = vector.broadcast %cst_35 : f32 to vector<1x16x128xf32>
    %66 = arith.select %64, %61, %65 : vector<1x16x128xf32>
    %67 = arith.truncf %66 : vector<1x16x128xf32> to vector<1x16x128xbf16>
    %c5 = arith.constant 5 : index
    %c8_36 = arith.constant 8 : index
    %c0_37 = arith.constant 0 : index
    %68 = vector.load %arg9[%c5, %c8_36, %c0_37] : memref<6x25x128xbf16, #tpu.memory_space<vmem>>, vector<1x16x128xbf16>
    tpu.vector_store %arg9[%c5, %c8_36, %c0_37], %67 {strides = array<i32>} : memref<6x25x128xbf16, #tpu.memory_space<vmem>>, vector<1x16x128xbf16>,
    %c0_38 = arith.constant 0 : index
    %c0_39 = arith.constant 0 : index
    %69 = vector.load %arg6[%c0_38, %c0_39] : memref<1x128xf32, #tpu.memory_space<vmem>>, vector<1x128xf32>
    %c0_40 = arith.constant 0 : index
    %c7 = arith.constant 7 : index
    %c0_41 = arith.constant 0 : index
    %70 = vector.load %arg9[%c0_40, %c7, %c0_41] : memref<6x25x128xbf16, #tpu.memory_space<vmem>>, vector<4x16x128xbf16>
    %c0_42 = arith.constant 0 : index
    %c8_43 = arith.constant 8 : index
    %c0_44 = arith.constant 0 : index
    %71 = vector.load %arg9[%c0_42, %c8_43, %c0_44] : memref<6x25x128xbf16, #tpu.memory_space<vmem>>, vector<4x16x128xbf16>
    %c0_45 = arith.constant 0 : index
    %c9 = arith.constant 9 : index
    %c0_46 = arith.constant 0 : index
    %72 = vector.load %arg9[%c0_45, %c9, %c0_46] : memref<6x25x128xbf16, #tpu.memory_space<vmem>>, vector<4x16x128xbf16>
    %73 = tpu.concatenate %70, %71, %72 in 2 : vector<4x16x128xbf16>, vector<4x16x128xbf16>, vector<4x16x128xbf16> -> vector<4x16x384xbf16>
    %74 = vector.shape_cast %73 : vector<4x16x384xbf16> to vector<64x384xbf16>
    %c0_47 = arith.constant 0 : index
    %c0_48 = arith.constant 0 : index
    %c0_49 = arith.constant 0 : index
    %75 = vector.load %arg5[%c0_47, %c0_48, %c0_49] : memref<3x384x128xbf16, #tpu.memory_space<vmem>>, vector<1x384x128xbf16>
    %76 = vector.shape_cast %75 : vector<1x384x128xbf16> to vector<384x128xbf16>
    %cst_50 = arith.constant dense<0.000000e+00> : vector<64x128xf32>
    %77 = tpu.matmul %74, %76, %cst_50 {dimension_numbers = #tpu.dot_dimension_numbers<[1], [0], [0], [1], [0, 0, 1, 1], [], []>} : vector<64x384xbf16>, vector<384x128xbf16>, vector<64x128xf32> -> vector<64x128xf32>
    %c1_51 = arith.constant 1 : index
    %c7_52 = arith.constant 7 : index
    %c0_53 = arith.constant 0 : index
    %78 = vector.load %arg9[%c1_51, %c7_52, %c0_53] : memref<6x25x128xbf16, #tpu.memory_space<vmem>>, vector<4x16x128xbf16>
    %c1_54 = arith.constant 1 : index
    %c8_55 = arith.constant 8 : index
    %c0_56 = arith.constant 0 : index
    %79 = vector.load %arg9[%c1_54, %c8_55, %c0_56] : memref<6x25x128xbf16, #tpu.memory_space<vmem>>, vector<4x16x128xbf16>
    %c1_57 = arith.constant 1 : index
    %c9_58 = arith.constant 9 : index
    %c0_59 = arith.constant 0 : index
    %80 = vector.load %arg9[%c1_57, %c9_58, %c0_59] : memref<6x25x128xbf16, #tpu.memory_space<vmem>>, vector<4x16x128xbf16>
    %81 = tpu.concatenate %78, %79, %80 in 2 : vector<4x16x128xbf16>, vector<4x16x128xbf16>, vector<4x16x128xbf16> -> vector<4x16x384xbf16>
    %82 = vector.shape_cast %81 : vector<4x16x384xbf16> to vector<64x384xbf16>
    %c1_60 = arith.constant 1 : index
    %c0_61 = arith.constant 0 : index
    %c0_62 = arith.constant 0 : index
    %83 = vector.load %arg5[%c1_60, %c0_61, %c0_62] : memref<3x384x128xbf16, #tpu.memory_space<vmem>>, vector<1x384x128xbf16>
    %84 = vector.shape_cast %83 : vector<1x384x128xbf16> to vector<384x128xbf16>
    %cst_63 = arith.constant dense<0.000000e+00> : vector<64x128xf32>
    %85 = tpu.matmul %82, %84, %cst_63 {dimension_numbers = #tpu.dot_dimension_numbers<[1], [0], [0], [1], [0, 0, 1, 1], [], []>} : vector<64x384xbf16>, vector<384x128xbf16>, vector<64x128xf32> -> vector<64x128xf32>
    %86 = arith.addf %77, %85 : vector<64x128xf32>
    %c2 = arith.constant 2 : index
    %c7_64 = arith.constant 7 : index
    %c0_65 = arith.constant 0 : index
    %87 = vector.load %arg9[%c2, %c7_64, %c0_65] : memref<6x25x128xbf16, #tpu.memory_space<vmem>>, vector<4x16x128xbf16>
    %c2_66 = arith.constant 2 : index
    %c8_67 = arith.constant 8 : index
    %c0_68 = arith.constant 0 : index
    %88 = vector.load %arg9[%c2_66, %c8_67, %c0_68] : memref<6x25x128xbf16, #tpu.memory_space<vmem>>, vector<4x16x128xbf16>
    %c2_69 = arith.constant 2 : index
    %c9_70 = arith.constant 9 : index
    %c0_71 = arith.constant 0 : index
    %89 = vector.load %arg9[%c2_69, %c9_70, %c0_71] : memref<6x25x128xbf16, #tpu.memory_space<vmem>>, vector<4x16x128xbf16>
    %90 = tpu.concatenate %87, %88, %89 in 2 : vector<4x16x128xbf16>, vector<4x16x128xbf16>, vector<4x16x128xbf16> -> vector<4x16x384xbf16>
    %91 = vector.shape_cast %90 : vector<4x16x384xbf16> to vector<64x384xbf16>
    %c2_72 = arith.constant 2 : index
    %c0_73 = arith.constant 0 : index
    %c0_74 = arith.constant 0 : index
    %92 = vector.load %arg5[%c2_72, %c0_73, %c0_74] : memref<3x384x128xbf16, #tpu.memory_space<vmem>>, vector<1x384x128xbf16>
    %93 = vector.shape_cast %92 : vector<1x384x128xbf16> to vector<384x128xbf16>
    %cst_75 = arith.constant dense<0.000000e+00> : vector<64x128xf32>
    %94 = tpu.matmul %91, %93, %cst_75 {dimension_numbers = #tpu.dot_dimension_numbers<[1], [0], [0], [1], [0, 0, 1, 1], [], []>} : vector<64x384xbf16>, vector<384x128xbf16>, vector<64x128xf32> -> vector<64x128xf32>
    %95 = arith.addf %86, %94 : vector<64x128xf32>
    %96 = vector.broadcast %69 : vector<1x128xf32> to vector<64x128xf32>
    %97 = arith.addf %95, %96 : vector<64x128xf32>
    %98 = vector.shape_cast %97 : vector<64x128xf32> to vector<4x16x128xf32>
    %99 = arith.truncf %98 : vector<4x16x128xf32> to vector<4x16x128xbf16>
    %c0_76 = arith.constant 0 : index
    %c0_77 = arith.constant 0 : index
    %c0_78 = arith.constant 0 : index
    %c0_79 = arith.constant 0 : index
    %100 = vector.load %arg7[%c0_76, %c0_77, %c0_78, %c0_79] : memref<1x4x16x128xbf16, #tpu.memory_space<vmem>>, vector<1x4x16x128xbf16>
    %101 = vector.shape_cast %100 : vector<1x4x16x128xbf16> to vector<4x16x128xbf16>
    %102 = vector.shape_cast %99 : vector<4x16x128xbf16> to vector<1x4x16x128xbf16>
    tpu.vector_store %arg7[%c0_76, %c0_77, %c0_78, %c0_79], %102 {strides = array<i32>} : memref<1x4x16x128xbf16, #tpu.memory_space<vmem>>, vector<1x4x16x128xbf16>,
    %cst_80 = arith.constant dense<0.000000e+00> : vector<128xf32>
    %103 = vector.multi_reduction <add>, %97, %cst_80 [0] : vector<64x128xf32> to vector<128xf32>
    %104 = vector.shape_cast %103 : vector<128xf32> to vector<1x128xf32>
    %cst_81 = arith.constant 1.562500e-02 : f32
    %105 = vector.broadcast %cst_81 : f32 to vector<1x128xf32>
    %106 = arith.mulf %104, %105 : vector<1x128xf32>
    %107 = vector.broadcast %106 : vector<1x128xf32> to vector<64x128xf32>
    %108 = arith.subf %97, %107 : vector<64x128xf32>
    %109 = arith.mulf %108, %108 : vector<64x128xf32>
    %cst_82 = arith.constant dense<0.000000e+00> : vector<128xf32>
    %110 = vector.multi_reduction <add>, %109, %cst_82 [0] : vector<64x128xf32> to vector<128xf32>
    %111 = vector.shape_cast %110 : vector<128xf32> to vector<1x128xf32>
    %112 = tpu.concatenate %106, %111 in 0 : vector<1x128xf32>, vector<1x128xf32> -> vector<2x128xf32>
    %c0_83 = arith.constant 0 : index
    %c0_84 = arith.constant 0 : index
    %c0_85 = arith.constant 0 : index
    %c0_86 = arith.constant 0 : index
    %113 = vector.load %arg8[%c0_83, %c0_84, %c0_85, %c0_86] : memref<1x1x2x128xf32, #tpu.memory_space<vmem>>, vector<1x1x2x128xf32>
    %114 = vector.shape_cast %113 : vector<1x1x2x128xf32> to vector<2x128xf32>
    %115 = vector.shape_cast %112 : vector<2x128xf32> to vector<1x1x2x128xf32>
    tpu.vector_store %arg8[%c0_83, %c0_84, %c0_85, %c0_86], %115 {strides = array<i32>} : memref<1x1x2x128xf32, #tpu.memory_space<vmem>>, vector<1x1x2x128xf32>,
    return
  }
  func.func @transform_0(%arg0: i32, %arg1: i32) -> (i32, i32, i32, i32) {
    %c0_i32 = arith.constant 0 : i32
    %c0_i32_0 = arith.constant 0 : i32
    %c0_i32_1 = arith.constant 0 : i32
    %c0_i32_2 = arith.constant 0 : i32
    return %arg0, %c0_i32, %c0_i32_0, %c0_i32_1 : i32, i32, i32, i32
  }
  func.func @transform_1(%arg0: i32, %arg1: i32) -> (i32, i32) {
    %c0_i32 = arith.constant 0 : i32
    %c0_i32_0 = arith.constant 0 : i32
    %c0_i32_1 = arith.constant 0 : i32
    return %c0_i32, %c0_i32_0 : i32, i32
  }
  func.func @transform_2(%arg0: i32, %arg1: i32) -> (i32, i32) {
    %c0_i32 = arith.constant 0 : i32
    %c0_i32_0 = arith.constant 0 : i32
    %c0_i32_1 = arith.constant 0 : i32
    return %c0_i32, %c0_i32_0 : i32, i32
  }
  func.func @transform_3(%arg0: i32, %arg1: i32) -> (i32, i32, i32) {
    %c0_i32 = arith.constant 0 : i32
    %c0_i32_0 = arith.constant 0 : i32
    %c0_i32_1 = arith.constant 0 : i32
    %c0_i32_2 = arith.constant 0 : i32
    return %c0_i32, %c0_i32_0, %c0_i32_1 : i32, i32, i32
  }
  func.func @transform_4(%arg0: i32, %arg1: i32) -> (i32, i32) {
    %c0_i32 = arith.constant 0 : i32
    %c0_i32_0 = arith.constant 0 : i32
    %c0_i32_1 = arith.constant 0 : i32
    return %c0_i32, %c0_i32_0 : i32, i32
  }
  func.func @transform_5(%arg0: i32, %arg1: i32) -> (i32, i32, i32, i32) {
    %c0_i32 = arith.constant 0 : i32
    %c0_i32_0 = arith.constant 0 : i32
    %c0_i32_1 = arith.constant 0 : i32
    return %arg0, %arg1, %c0_i32, %c0_i32_0 : i32, i32, i32, i32
  }
  func.func @transform_6(%arg0: i32, %arg1: i32) -> (i32, i32, i32, i32) {
    %c0_i32 = arith.constant 0 : i32
    %c0_i32_0 = arith.constant 0 : i32
    %c0_i32_1 = arith.constant 0 : i32
    return %arg0, %arg1, %c0_i32, %c0_i32_0 : i32, i32, i32, i32
  }
}

</mosaic_0001>

<llo_original>
// kernel: residual_block_forward.5
$region0: #{residual_block_forward.5}
  #allocation0 [shape = 'u32[]', space=smem, size = 0x4, offset = 0x4, fixed_abs, tag = 'smem constant byte address 0x4 - core index']
  #allocation1 [shape = 'u32[144,128]{1,0:T(1,128)}', space=vmem, size = 0x12000, scoped, tag = 'internal scratch']
  %s0 = inlined_call_operand.vmem [shape: bf16[2,16,16,128], index: 0, kind: input, shape index: {}]
  %s1 = inlined_call_operand.vmem [shape: f32[1,4], index: 1, kind: input, shape index: {}]
  %s2 = inlined_call_operand.vmem [shape: f32[1,4], index: 2, kind: input, shape index: {}]
  %s3 = inlined_call_operand.vmem [shape: f32[2,16,16,4], index: 3, kind: input, shape index: {}]
  %s4 = inlined_call_operand.vmem [shape: f32[2,16,16,4], index: 4, kind: output, shape index: {}]
  %s5 = sld [smem:[#allocation0]]
  $region49: #{residual_block_forward.5} parent=0
    _
  %s7 = ssub.s32 1, %s5
  %s8 = scalar_select 0, %s7, %s5
  loop: start=0, step=1, limit=10
  $region2: #{residual_block_forward.5} parent=0 // loop_pre_header
    _
  $region3: #{residual_block_forward.5} parent=0 // loop_header
    %s10 = sphi 0, %s14
    %p11 = scmp.ge.s32.totalorder %s10, 10
    %s17 = sphi 0, %s29
    %s18 = sphi 0, %s25
    %s19 = sphi 0, %s17
    %s20 = sphi 0, %s18
    %s21 = sphi 0, %s19
    %s22 = sphi 0, %s20
    %s34 = sphi 0, %s36
    %s37 = sphi 0, %s34
    %s38 = sphi 0, %s37
    %s54 = sphi 0, %s38
    %s58 = sphi 0, %s58
    %s60 = sphi 0, %s58
    %s61 = sphi 0, %s60
    %s75 = sphi 0, %s61
    %s79 = sphi 0, %s79
    %s81 = sphi 0, %s79
    %s82 = sphi 0, %s81
    %s96 = sphi 0, %s82
    %s104 = sphi 0, %s106
    %s107 = sphi 0, %s104
    %s108 = sphi 0, %s107
    %s124 = sphi 0, %s108
    %s132 = sphi 0, %s134
    %s135 = sphi 0, %s132
    %s136 = sphi 0, %s135
    %s152 = sphi 0, %s136
  $region4: #{residual_block_forward.5} parent=0 // loop_header_branch
    %13 = sbr.rel (%p11) target = $region8
  $region5: #{residual_block_forward.5} parent=0 // loop_body
    %s15 = ssub.s32 %s10, 1
    %s16 = ssub.s32 %s10, 2
    %s23 = sadd.s32 1, %s18
    %p24 = scmp.ge.s32.totalorder %s23, 4
    %s25 = scalar_select %p24, 0, %s23
    %s26 = sadd.s32 1, %s17
    %s27 = scalar_select %p24, %s26, %s17
    %p28 = scmp.ge.s32.totalorder %s27, 2
    %s29 = scalar_select %p28, 0, %s27
    %s30 = ssub.s32 %s17, %s29
    %s31 = ssub.s32 %s18, %s25
    %s32 = sor.u32 %s30, %s31
    %p33 = scmp.eq.s32.totalorder %s32, 0
    %s35 = sadd.s32 %s34, 1
    %s36 = scalar_select %p33, %s34, %s35
    %p39 = pneg %p33
    %p40 = scmp.eq.s32.totalorder %s10, 7
    %p41 = por %p39, %p40
    %p42 = scmp.ne.s32.totalorder %s34, %s37
    %p43 = scmp.eq.s32.totalorder %s10, 0
    %p44 = por %p42, %p43
    %p45 = scmp.ne.s32.totalorder %s34, %s37
    %p46 = scmp.eq.s32.totalorder %s15, 7
    %p47 = por %p45, %p46
    %p48 = scmp.ne.s32.totalorder %s37, %s38
    %p49 = scmp.eq.s32.totalorder %s15, 0
    %p50 = por %p48, %p49
    %p51 = scmp.ne.s32.totalorder %s37, %s38
    %p52 = scmp.eq.s32.totalorder %s16, 7
    %p53 = por %p51, %p52
    %p55 = scmp.ne.s32.totalorder %s38, %s54
    %p56 = scmp.eq.s32.totalorder %s16, 0
    %p57 = por %p55, %p56
    %s59 = sadd.s32 %s58, 1
    %p62 = scmp.eq.s32.totalorder %s10, 7
    %p63 = scmp.ne.s32.totalorder %s58, %s60
    %p64 = scmp.eq.s32.totalorder %s10, 0
    %p65 = por %p63, %p64
    %p66 = scmp.ne.s32.totalorder %s58, %s60
    %p67 = scmp.eq.s32.totalorder %s15, 7
    %p68 = por %p66, %p67
    %p69 = scmp.ne.s32.totalorder %s60, %s61
    %p70 = scmp.eq.s32.totalorder %s15, 0
    %p71 = por %p69, %p70
    %p72 = scmp.ne.s32.totalorder %s60, %s61
    %p73 = scmp.eq.s32.totalorder %s16, 7
    %p74 = por %p72, %p73
    %p76 = scmp.ne.s32.totalorder %s61, %s75
    %p77 = scmp.eq.s32.totalorder %s16, 0
    %p78 = por %p76, %p77
    %s80 = sadd.s32 %s79, 1
    %p83 = scmp.eq.s32.totalorder %s10, 7
    %p84 = scmp.ne.s32.totalorder %s79, %s81
    %p85 = scmp.eq.s32.totalorder %s10, 0
    %p86 = por %p84, %p85
    %p87 = scmp.ne.s32.totalorder %s79, %s81
    %p88 = scmp.eq.s32.totalorder %s15, 7
    %p89 = por %p87, %p88
    %p90 = scmp.ne.s32.totalorder %s81, %s82
    %p91 = scmp.eq.s32.totalorder %s15, 0
    %p92 = por %p90, %p91
    %p93 = scmp.ne.s32.totalorder %s81, %s82
    %p94 = scmp.eq.s32.totalorder %s16, 7
    %p95 = por %p93, %p94
    %p97 = scmp.ne.s32.totalorder %s82, %s96
    %p98 = scmp.eq.s32.totalorder %s16, 0
    %p99 = por %p97, %p98
    %s100 = ssub.s32 %s17, %s29
    %s101 = ssub.s32 %s18, %s25
    %s102 = sor.u32 %s100, %s101
    %p103 = scmp.eq.s32.totalorder %s102, 0
    %s105 = sadd.s32 %s104, 1
    %s106 = scalar_select %p103, %s104, %s105
    %p109 = pneg %p103
    %p110 = scmp.eq.s32.totalorder %s10, 7
    %p111 = por %p109, %p110
    %p112 = scmp.ne.s32.totalorder %s104, %s107
    %p113 = scmp.eq.s32.totalorder %s10, 0
    %p114 = por %p112, %p113
    %p115 = scmp.ne.s32.totalorder %s104, %s107
    %p116 = scmp.eq.s32.totalorder %s15, 7
    %p117 = por %p115, %p116
    %p118 = scmp.ne.s32.totalorder %s107, %s108
    %p119 = scmp.eq.s32.totalorder %s15, 0
    %p120 = por %p118, %p119
    %p121 = scmp.ne.s32.totalorder %s107, %s108
    %p122 = scmp.eq.s32.totalorder %s16, 7
    %p123 = por %p121, %p122
    %p125 = scmp.ne.s32.totalorder %s108, %s124
    %p126 = scmp.eq.s32.totalorder %s16, 0
    %p127 = por %p125, %p126
    %s128 = ssub.s32 %s17, %s29
    %s129 = ssub.s32 %s18, %s25
    %s130 = sor.u32 %s128, %s129
    %p131 = scmp.eq.s32.totalorder %s130, 0
    %s133 = sadd.s32 %s132, 1
    %s134 = scalar_select %p131, %s132, %s133
    %p137 = pneg %p131
    %p138 = scmp.eq.s32.totalorder %s10, 7
    %p139 = por %p137, %p138
    %p140 = scmp.ne.s32.totalorder %s132, %s135
    %p141 = scmp.eq.s32.totalorder %s10, 0
    %p142 = por %p140, %p141
    %p143 = scmp.ne.s32.totalorder %s132, %s135
    %p144 = scmp.eq.s32.totalorder %s15, 7
    %p145 = por %p143, %p144
    %p146 = scmp.ne.s32.totalorder %s135, %s136
    %p147 = scmp.eq.s32.totalorder %s15, 0
    %p148 = por %p146, %p147
    %p149 = scmp.ne.s32.totalorder %s135, %s136
    %p150 = scmp.eq.s32.totalorder %s16, 7
    %p151 = por %p149, %p150
    %p153 = scmp.ne.s32.totalorder %s136, %s152
    %p154 = scmp.eq.s32.totalorder %s16, 0
    %p155 = por %p153, %p154
    %p156 = scmp.le.s32.totalorder 1, %s10
    %p157 = scmp.lt.s32.totalorder %s10, 9
    %p158 = pnand %p156, %p157
    %p159 = pneg %p158
    // Predicated region
    $region9: #{residual_block_forward.5} parent=5 // pred_check
      _
    $region10: #{residual_block_forward.5} parent=5 // pred_check_branch
      %161 = sbr.rel (%p158) target = $region12
    $region11: #{residual_block_forward.5} parent=5 // pred_region
      %s162 = ssub.s32 %s10, 1
      // Predicated region
      $region13: #{residual_block_forward.5} parent=11 // pred_check
        %p163 = pneg %p71
      $region14: #{residual_block_forward.5} parent=11 // pred_check_branch
        %165 = sbr.rel (%p163) target = $region16
      $region15: #{residual_block_forward.5} parent=11 // pred_region
        _
      $region16: #{residual_block_forward.5} parent=11 // pred_fallthru
        _
      // Predicated region
      $region17: #{residual_block_forward.5} parent=11 // pred_check
        %p166 = pneg %p92
      $region18: #{residual_block_forward.5} parent=11 // pred_check_branch
        %168 = sbr.rel (%p166) target = $region20
      $region19: #{residual_block_forward.5} parent=11 // pred_region
        _
      $region20: #{residual_block_forward.5} parent=11 // pred_fallthru
        _
    $region12: #{residual_block_forward.5} parent=5 // pred_fallthru
      _
    %p169 = scmp.lt.s32.totalorder %s10, 8
    // Predicated region
    $region21: #{residual_block_forward.5} parent=5 // pred_check
      %p170 = pneg %p169
    $region22: #{residual_block_forward.5} parent=5 // pred_check_branch
      %172 = sbr.rel (%p170) target = $region24
    $region23: #{residual_block_forward.5} parent=5 // pred_region
      // Predicated region
      $region25: #{residual_block_forward.5} parent=23 // pred_check
        %p173 = pneg %p44
      $region26: #{residual_block_forward.5} parent=23 // pred_check_branch
        %175 = sbr.rel (%p173) target = $region28
      $region27: #{residual_block_forward.5} parent=23 // pred_region
        %s176 = smul.u32 4, %s18
        %p177 = scmp.lt.s32.totalorder %s17, 1
        %s178 = scalar_select %p177, %s17, 1
        %p179 = scmp.lt.s32.totalorder %s176, 15
        %s180 = scalar_select %p179, %s176, 15
        %s181 = smul.addr %s180, 2
        %s182 = smul.addr %s178, 32
        %s183 = sadd.s32 %s181, %s182
        %s184 = smul.addr %s183, 4
        %s185 = scalar_lea.vmem %s0, %s184
        %s186 = smul.u32 4, %s18
      $region28: #{residual_block_forward.5} parent=23 // pred_fallthru
        _
      // Predicated region
      $region29: #{residual_block_forward.5} parent=23 // pred_check
        %p187 = pneg %p114
      $region30: #{residual_block_forward.5} parent=23 // pred_check_branch
        %189 = sbr.rel (%p187) target = $region32
      $region31: #{residual_block_forward.5} parent=23 // pred_region
        %s190 = smul.u32 4, %s18
        %p191 = scmp.lt.s32.totalorder %s17, 1
        %s192 = scalar_select %p191, %s17, 1
        %p193 = scmp.lt.s32.totalorder %s190, 15
        %s194 = scalar_select %p193, %s190, 15
        %s195 = smul.addr %s194, 2
        %s196 = smul.addr %s192, 32
        %s197 = sadd.s32 %s195, %s196
        %s198 = smul.addr %s197, 8
        %s199 = scalar_lea.vmem %s3, %s198
        %s200 = smul.u32 4, %s18
      $region32: #{residual_block_forward.5} parent=23 // pred_fallthru
        _
    $region24: #{residual_block_forward.5} parent=5 // pred_fallthru
      _
    %p201 = scmp.le.s32.totalorder 1, %s10
    %p202 = scmp.lt.s32.totalorder %s10, 9
    %p203 = pnand %p201, %p202
    %p204 = pneg %p203
    // Predicated region
    $region33: #{residual_block_forward.5} parent=5 // pred_check
      _
    $region34: #{residual_block_forward.5} parent=5 // pred_check_branch
      %206 = sbr.rel (%p203) target = $region36
    $region35: #{residual_block_forward.5} parent=5 // pred_region
      %s207 = ssub.s32 %s10, 1
      %s208 = smul.u32 4, %s20
      %p209 = scmp.lt.s32.totalorder %s19, 1
      %s210 = scalar_select %p209, %s19, 1
      %p211 = scmp.lt.s32.totalorder %s208, 15
      %s212 = scalar_select %p211, %s208, 15
      %s213 = smul.addr %s212, 2
      %s214 = smul.addr %s210, 32
      %s215 = sadd.s32 %s213, %s214
      %s216 = smul.addr %s215, 4
      %s217 = scalar_lea.vmem %s0, %s216
      %p218 = pneg %p50
      %p219 = pneg %p47
      %p220 = pneg %p71
      %p221 = pneg %p68
      %p222 = pneg %p92
      %p223 = pneg %p89
      %s224 = smul.u32 4, %s20
      %p225 = scmp.lt.s32.totalorder %s19, 1
      %s226 = scalar_select %p225, %s19, 1
      %p227 = scmp.lt.s32.totalorder %s224, 15
      %s228 = scalar_select %p227, %s224, 15
      %s229 = smul.addr %s228, 2
      %s230 = smul.addr %s226, 32
      %s231 = sadd.s32 %s229, %s230
      %s232 = smul.addr %s231, 8
      %s233 = scalar_lea.vmem %s3, %s232
      %p234 = pneg %p120
      %p235 = pneg %p117
      %p236 = pneg %p148
      %p237 = pneg %p145
      %s238 = smul.u32 4, %s20
      %p239 = scmp.lt.s32.totalorder %s19, 1
      %s240 = scalar_select %p239, %s19, 1
      %p241 = scmp.lt.s32.totalorder %s238, 15
      %s242 = scalar_select %p241, %s238, 15
      %s243 = smul.addr %s242, 2
      %s244 = smul.addr %s240, 32
      %s245 = sadd.s32 %s243, %s244
      %s246 = smul.addr %s245, 8
      %s247 = scalar_lea.vmem %s4, %s246
      %s248 = smul.u32 4, %s20
      %p249 = scmp.lt.s32.totalorder %s19, 1
      %s250 = scalar_select %p249, %s19, 1
      %p251 = scmp.lt.s32.totalorder %s248, 15
      %s252 = scalar_select %p251, %s248, 15
      %s253 = smul.addr %s252, 2
      %s254 = smul.addr %s250, 32
      %s255 = sadd.s32 %s253, %s254
      %s256 = smul.addr %s255, 4
      %s257 = scalar_lea.vmem %s0, %s256
      %s258 = smul.u32 4, %s20
      %s259 = smul.u32 4, %s20
      %p260 = scmp.lt.s32.totalorder %s19, 1
      %s261 = scalar_select %p260, %s19, 1
      %p262 = scmp.lt.s32.totalorder %s259, 15
      %s263 = scalar_select %p262, %s259, 15
      %s264 = smul.addr %s263, 2
      %s265 = smul.addr %s261, 32
      %s266 = sadd.s32 %s264, %s265
      %s267 = smul.addr %s266, 8
      %s268 = scalar_lea.vmem %s3, %s267
      %s269 = smul.u32 4, %s20
      %s270 = smul.u32 4, %s20
      %p271 = scmp.lt.s32.totalorder %s19, 1
      %s272 = scalar_select %p271, %s19, 1
      %p273 = scmp.lt.s32.totalorder %s270, 15
      %s274 = scalar_select %p273, %s270, 15
      %s275 = smul.addr %s274, 2
      %s276 = smul.addr %s272, 32
      %s277 = sadd.s32 %s275, %s276
      %s278 = smul.addr %s277, 8
      %s279 = scalar_lea.vmem %s4, %s278
      %s280 = smul.u32 4, %s20
      %v281 = vld [vmem:[%s257] sm:$0xf]
      %v282 = vld [vmem:[%s257 + $0x4] sm:$0xf]
      %v283 = vld [vmem:[%s257 + $0x8] sm:$0xf]
      %v284 = vld [vmem:[%s257 + $0xc] sm:$0xf]
      %v285 = vld [vmem:[%s257 + $0x10] sm:$0xf]
      %v286 = vld [vmem:[%s257 + $0x14] sm:$0xf]
      %v287 = vld [vmem:[%s257 + $0x18] sm:$0xf]
      %v288 = vld [vmem:[%s257 + $0x1c] sm:$0xf]
      %v289 = vunpack.c.l.bf16 %v281
      %v290 = vunpack.c.l.bf16 %v282
      %v291 = vunpack.c.l.bf16 %v283
      %v292 = vunpack.c.l.bf16 %v284
      %v293 = vunpack.c.l.bf16 %v285
      %v294 = vunpack.c.l.bf16 %v286
      %v295 = vunpack.c.l.bf16 %v287
      %v296 = vunpack.c.l.bf16 %v288
      %v297 = vld [vmem:[%s1] sm:$0x1]
      %v299 = vlaneseq
      %v300 = vshrl.u32 %v299, 7
      %v301 = vsub.s32 0, %v300
      %v302 = vrot.slane %v297, %v301
      %v304 = vmul.f32 %v289, %v302
      %v305 = vmul.f32 %v290, %v302
      %v306 = vmul.f32 %v291, %v302
      %v307 = vmul.f32 %v292, %v302
      %v308 = vmul.f32 %v293, %v302
      %v309 = vmul.f32 %v294, %v302
      %v310 = vmul.f32 %v295, %v302
      %v311 = vmul.f32 %v296, %v302
      %v312 = vld [vmem:[%s2] sm:$0x1]
      %v314 = vlaneseq
      %v315 = vshrl.u32 %v314, 7
      %v316 = vsub.s32 0, %v315
      %v317 = vrot.slane %v312, %v316
      %v319 = vadd.f32 %v304, %v317
      %v320 = vadd.f32 %v305, %v317
      %v321 = vadd.f32 %v306, %v317
      %v322 = vadd.f32 %v307, %v317
      %v323 = vadd.f32 %v308, %v317
      %v324 = vadd.f32 %v309, %v317
      %v325 = vadd.f32 %v310, %v317
      %v326 = vadd.f32 %v311, %v317
      %v327 = vld [vmem:[%s268] sm:$0xff]
      %v328 = vld [vmem:[%s268 + $0x8] sm:$0xff]
      %v329 = vld [vmem:[%s268 + $0x10] sm:$0xff]
      %v330 = vld [vmem:[%s268 + $0x18] sm:$0xff]
      %v331 = vld [vmem:[%s268 + $0x20] sm:$0xff]
      %v332 = vld [vmem:[%s268 + $0x28] sm:$0xff]
      %v333 = vld [vmem:[%s268 + $0x30] sm:$0xff]
      %v334 = vld [vmem:[%s268 + $0x38] sm:$0xff]
      %v335 = vadd.f32 %v319, %v327
      %v336 = vadd.f32 %v320, %v328
      %v337 = vadd.f32 %v321, %v329
      %v338 = vadd.f32 %v322, %v330
      %v339 = vadd.f32 %v323, %v331
      %v340 = vadd.f32 %v324, %v332
      %v341 = vadd.f32 %v325, %v333
      %v342 = vadd.f32 %v326, %v334
      %v343 = vmax.f32 %v335, 0.0
      %v344 = vmax.f32 %v336, 0.0
      %v345 = vmax.f32 %v337, 0.0
      %v346 = vmax.f32 %v338, 0.0
      %v347 = vmax.f32 %v339, 0.0
      %v348 = vmax.f32 %v340, 0.0
      %v349 = vmax.f32 %v341, 0.0
      %v350 = vmax.f32 %v342, 0.0
      %vm351 = vcmask 31744
      %352 = vst.msk [vmem:[%s279] sm:$0xff] %vm351, %v343
      %353 = vst.msk [vmem:[%s279 + $0x8] sm:$0xff] %vm351, %v344
      %354 = vst.msk [vmem:[%s279 + $0x10] sm:$0xff] %vm351, %v345
      %355 = vst.msk [vmem:[%s279 + $0x18] sm:$0xff] %vm351, %v346
      %356 = vst.msk [vmem:[%s279 + $0x20] sm:$0xff] %vm351, %v347
      %357 = vst.msk [vmem:[%s279 + $0x28] sm:$0xff] %vm351, %v348
      %358 = vst.msk [vmem:[%s279 + $0x30] sm:$0xff] %vm351, %v349
      %359 = vst.msk [vmem:[%s279 + $0x38] sm:$0xff] %vm351, %v350
      %s360 = smul.u32 4, %s20
      %p361 = scmp.lt.s32.totalorder %s19, 1
      %s362 = scalar_select %p361, %s19, 1
      %p363 = scmp.lt.s32.totalorder %s360, 15
      %s364 = scalar_select %p363, %s360, 15
      %s365 = smul.addr %s364, 2
      %s366 = smul.addr %s362, 32
      %s367 = sadd.s32 %s365, %s366
      %s368 = smul.addr %s367, 8
      %s369 = scalar_lea.vmem %s4, %s368
      // Predicated region
      $region37: #{residual_block_forward.5} parent=35 // pred_check
        %p370 = pneg %p145
      $region38: #{residual_block_forward.5} parent=35 // pred_check_branch
        %372 = sbr.rel (%p370) target = $region40
      $region39: #{residual_block_forward.5} parent=35 // pred_region
        %s373 = smul.u32 4, %s20
      $region40: #{residual_block_forward.5} parent=35 // pred_fallthru
        _
    $region36: #{residual_block_forward.5} parent=5 // pred_fallthru
      _
    %p374 = scmp.le.s32.totalorder 2, %s10
    // Predicated region
    $region41: #{residual_block_forward.5} parent=5 // pred_check
      %p375 = pneg %p374
    $region42: #{residual_block_forward.5} parent=5 // pred_check_branch
      %377 = sbr.rel (%p375) target = $region44
    $region43: #{residual_block_forward.5} parent=5 // pred_region
      %s378 = ssub.s32 %s10, 2
      // Predicated region
      $region45: #{residual_block_forward.5} parent=43 // pred_check
        %p379 = pneg %p151
      $region46: #{residual_block_forward.5} parent=43 // pred_check_branch
        %381 = sbr.rel (%p379) target = $region48
      $region47: #{residual_block_forward.5} parent=43 // pred_region
        %s382 = smul.u32 4, %s22
        %p383 = scmp.lt.s32.totalorder %s21, 1
        %s384 = scalar_select %p383, %s21, 1
        %p385 = scmp.lt.s32.totalorder %s382, 15
        %s386 = scalar_select %p385, %s382, 15
        %s387 = smul.addr %s386, 2
        %s388 = smul.addr %s384, 32
        %s389 = sadd.s32 %s387, %s388
        %s390 = smul.addr %s389, 8
        %s391 = scalar_lea.vmem %s4, %s390
      $region48: #{residual_block_forward.5} parent=43 // pred_fallthru
        _
    $region44: #{residual_block_forward.5} parent=5 // pred_fallthru
      _
  $region6: #{residual_block_forward.5} parent=0 // loop_footer
    %s14 = sadd.s32 1, %s10
  $region7: #{residual_block_forward.5} parent=0 // loop_footer_branch
    %9 = sbr.rel target = $region3
  $region8: #{residual_block_forward.5} parent=0 // loop_exit
    _

// kernel: residual_block_forward.3
$region0: #{residual_block_forward.3}
  #allocation0 [shape = 'u32[]', space=smem, size = 0x4, offset = 0x4, fixed_abs, tag = 'smem constant byte address 0x4 - core index']
  #allocation1 [shape = 'u32[144,128]{1,0:T(1,128)}', space=vmem, size = 0x12000, scoped, tag = 'internal scratch']
  %s0 = inlined_call_operand.vmem [shape: bf16[2,18,25,128], index: 0, kind: input, shape index: {}]
  %s1 = inlined_call_operand.vmem [shape: bf16[3,384,128], index: 1, kind: input, shape index: {}]
  %s2 = inlined_call_operand.vmem [shape: f32[1,128], index: 2, kind: input, shape index: {}]
  %s3 = inlined_call_operand.vmem [shape: bf16[2,16,16,128], index: 3, kind: output, shape index: {0}]
  %s4 = inlined_call_operand.vmem [shape: f32[2,4,2,128], index: 4, kind: output, shape index: {1}]
  %5 = xla_tuple %s3, %s4
  %s6 = sld [smem:[#allocation0]]
  $region53: #{residual_block_forward.3} parent=0
    _
  %s8 = ssub.s32 1, %s6
  %s9 = scalar_select 0, %s8, %s6
  loop: start=0, step=1, limit=10
  $region2: #{residual_block_forward.3} parent=0 // loop_pre_header
    _
  $region3: #{residual_block_forward.3} parent=0 // loop_header
    %s11 = sphi 0, %s15
    %p12 = scmp.ge.s32.totalorder %s11, 10
    %s18 = sphi 0, %s30
    %s19 = sphi 0, %s26
    %s20 = sphi 0, %s18
    %s21 = sphi 0, %s19
    %s22 = sphi 0, %s20
    %s23 = sphi 0, %s21
    %s33 = sphi 0, %s35
    %s36 = sphi 0, %s33
    %s37 = sphi 0, %s36
    %s53 = sphi 0, %s37
    %s57 = sphi 0, %s57
    %s59 = sphi 0, %s57
    %s60 = sphi 0, %s59
    %s74 = sphi 0, %s60
    %s78 = sphi 0, %s78
    %s80 = sphi 0, %s78
    %s81 = sphi 0, %s80
    %s95 = sphi 0, %s81
    %s103 = sphi 0, %s105
    %s106 = sphi 0, %s103
    %s107 = sphi 0, %s106
    %s123 = sphi 0, %s107
    %s131 = sphi 0, %s133
    %s134 = sphi 0, %s131
    %s135 = sphi 0, %s134
    %s151 = sphi 0, %s135
  $region4: #{residual_block_forward.3} parent=0 // loop_header_branch
    %14 = sbr.rel (%p12) target = $region8
  $region5: #{residual_block_forward.3} parent=0 // loop_body
    %s16 = ssub.s32 %s11, 1
    %s17 = ssub.s32 %s11, 2
    %s24 = sadd.s32 1, %s19
    %p25 = scmp.ge.s32.totalorder %s24, 4
    %s26 = scalar_select %p25, 0, %s24
    %s27 = sadd.s32 1, %s18
    %s28 = scalar_select %p25, %s27, %s18
    %p29 = scmp.ge.s32.totalorder %s28, 2
    %s30 = scalar_select %p29, 0, %s28
    %s31 = ssub.s32 %s18, %s30
    %p32 = scmp.eq.s32.totalorder %s31, 0
    %s34 = sadd.s32 %s33, 1
    %s35 = scalar_select %p32, %s33, %s34
    %p38 = pneg %p32
    %p39 = scmp.eq.s32.totalorder %s11, 7
    %p40 = por %p38, %p39
    %p41 = scmp.ne.s32.totalorder %s33, %s36
    %p42 = scmp.eq.s32.totalorder %s11, 0
    %p43 = por %p41, %p42
    %p44 = scmp.ne.s32.totalorder %s33, %s36
    %p45 = scmp.eq.s32.totalorder %s16, 7
    %p46 = por %p44, %p45
    %p47 = scmp.ne.s32.totalorder %s36, %s37
    %p48 = scmp.eq.s32.totalorder %s16, 0
    %p49 = por %p47, %p48
    %p50 = scmp.ne.s32.totalorder %s36, %s37
    %p51 = scmp.eq.s32.totalorder %s17, 7
    %p52 = por %p50, %p51
    %p54 = scmp.ne.s32.totalorder %s37, %s53
    %p55 = scmp.eq.s32.totalorder %s17, 0
    %p56 = por %p54, %p55
    %s58 = sadd.s32 %s57, 1
    %p61 = scmp.eq.s32.totalorder %s11, 7
    %p62 = scmp.ne.s32.totalorder %s57, %s59
    %p63 = scmp.eq.s32.totalorder %s11, 0
    %p64 = por %p62, %p63
    %p65 = scmp.ne.s32.totalorder %s57, %s59
    %p66 = scmp.eq.s32.totalorder %s16, 7
    %p67 = por %p65, %p66
    %p68 = scmp.ne.s32.totalorder %s59, %s60
    %p69 = scmp.eq.s32.totalorder %s16, 0
    %p70 = por %p68, %p69
    %p71 = scmp.ne.s32.totalorder %s59, %s60
    %p72 = scmp.eq.s32.totalorder %s17, 7
    %p73 = por %p71, %p72
    %p75 = scmp.ne.s32.totalorder %s60, %s74
    %p76 = scmp.eq.s32.totalorder %s17, 0
    %p77 = por %p75, %p76
    %s79 = sadd.s32 %s78, 1
    %p82 = scmp.eq.s32.totalorder %s11, 7
    %p83 = scmp.ne.s32.totalorder %s78, %s80
    %p84 = scmp.eq.s32.totalorder %s11, 0
    %p85 = por %p83, %p84
    %p86 = scmp.ne.s32.totalorder %s78, %s80
    %p87 = scmp.eq.s32.totalorder %s16, 7
    %p88 = por %p86, %p87
    %p89 = scmp.ne.s32.totalorder %s80, %s81
    %p90 = scmp.eq.s32.totalorder %s16, 0
    %p91 = por %p89, %p90
    %p92 = scmp.ne.s32.totalorder %s80, %s81
    %p93 = scmp.eq.s32.totalorder %s17, 7
    %p94 = por %p92, %p93
    %p96 = scmp.ne.s32.totalorder %s81, %s95
    %p97 = scmp.eq.s32.totalorder %s17, 0
    %p98 = por %p96, %p97
    %s99 = ssub.s32 %s18, %s30
    %s100 = ssub.s32 %s19, %s26
    %s101 = sor.u32 %s99, %s100
    %p102 = scmp.eq.s32.totalorder %s101, 0
    %s104 = sadd.s32 %s103, 1
    %s105 = scalar_select %p102, %s103, %s104
    %p108 = pneg %p102
    %p109 = scmp.eq.s32.totalorder %s11, 7
    %p110 = por %p108, %p109
    %p111 = scmp.ne.s32.totalorder %s103, %s106
    %p112 = scmp.eq.s32.totalorder %s11, 0
    %p113 = por %p111, %p112
    %p114 = scmp.ne.s32.totalorder %s103, %s106
    %p115 = scmp.eq.s32.totalorder %s16, 7
    %p116 = por %p114, %p115
    %p117 = scmp.ne.s32.totalorder %s106, %s107
    %p118 = scmp.eq.s32.totalorder %s16, 0
    %p119 = por %p117, %p118
    %p120 = scmp.ne.s32.totalorder %s106, %s107
    %p121 = scmp.eq.s32.totalorder %s17, 7
    %p122 = por %p120, %p121
    %p124 = scmp.ne.s32.totalorder %s107, %s123
    %p125 = scmp.eq.s32.totalorder %s17, 0
    %p126 = por %p124, %p125
    %s127 = ssub.s32 %s18, %s30
    %s128 = ssub.s32 %s19, %s26
    %s129 = sor.u32 %s127, %s128
    %p130 = scmp.eq.s32.totalorder %s129, 0
    %s132 = sadd.s32 %s131, 1
    %s133 = scalar_select %p130, %s131, %s132
    %p136 = pneg %p130
    %p137 = scmp.eq.s32.totalorder %s11, 7
    %p138 = por %p136, %p137
    %p139 = scmp.ne.s32.totalorder %s131, %s134
    %p140 = scmp.eq.s32.totalorder %s11, 0
    %p141 = por %p139, %p140
    %p142 = scmp.ne.s32.totalorder %s131, %s134
    %p143 = scmp.eq.s32.totalorder %s16, 7
    %p144 = por %p142, %p143
    %p145 = scmp.ne.s32.totalorder %s134, %s135
    %p146 = scmp.eq.s32.totalorder %s16, 0
    %p147 = por %p145, %p146
    %p148 = scmp.ne.s32.totalorder %s134, %s135
    %p149 = scmp.eq.s32.totalorder %s17, 7
    %p150 = por %p148, %p149
    %p152 = scmp.ne.s32.totalorder %s135, %s151
    %p153 = scmp.eq.s32.totalorder %s17, 0
    %p154 = por %p152, %p153
    %p155 = scmp.le.s32.totalorder 1, %s11
    %p156 = scmp.lt.s32.totalorder %s11, 9
    %p157 = pnand %p155, %p156
    %p158 = pneg %p157
    // Predicated region
    $region9: #{residual_block_forward.3} parent=5 // pred_check
      _
    $region10: #{residual_block_forward.3} parent=5 // pred_check_branch
      %160 = sbr.rel (%p157) target = $region12
    $region11: #{residual_block_forward.3} parent=5 // pred_region
      %s161 = ssub.s32 %s11, 1
      // Predicated region
      $region13: #{residual_block_forward.3} parent=11 // pred_check
        %p162 = pneg %p70
      $region14: #{residual_block_forward.3} parent=11 // pred_check_branch
        %164 = sbr.rel (%p162) target = $region16
      $region15: #{residual_block_forward.3} parent=11 // pred_region
        _
      $region16: #{residual_block_forward.3} parent=11 // pred_fallthru
        _
      // Predicated region
      $region17: #{residual_block_forward.3} parent=11 // pred_check
        %p165 = pneg %p91
      $region18: #{residual_block_forward.3} parent=11 // pred_check_branch
        %167 = sbr.rel (%p165) target = $region20
      $region19: #{residual_block_forward.3} parent=11 // pred_region
        _
      $region20: #{residual_block_forward.3} parent=11 // pred_fallthru
        _
    $region12: #{residual_block_forward.3} parent=5 // pred_fallthru
      _
    %p168 = scmp.lt.s32.totalorder %s11, 8
    // Predicated region
    $region21: #{residual_block_forward.3} parent=5 // pred_check
      %p169 = pneg %p168
    $region22: #{residual_block_forward.3} parent=5 // pred_check_branch
      %171 = sbr.rel (%p169) target = $region24
    $region23: #{residual_block_forward.3} parent=5 // pred_region
      // Predicated region
      $region25: #{residual_block_forward.3} parent=23 // pred_check
        %p172 = pneg %p43
      $region26: #{residual_block_forward.3} parent=23 // pred_check_branch
        %174 = sbr.rel (%p172) target = $region28
      $region27: #{residual_block_forward.3} parent=23 // pred_region
        %p175 = scmp.lt.s32.totalorder %s18, 1
        %s176 = scalar_select %p175, %s18, 1
        %s177 = smul.addr %s176, 72
        %s178 = smul.addr %s177, 4
        %s179 = scalar_lea.vmem %s0, %s178
      $region28: #{residual_block_forward.3} parent=23 // pred_fallthru
        _
    $region24: #{residual_block_forward.3} parent=5 // pred_fallthru
      _
    %p180 = scmp.le.s32.totalorder 1, %s11
    %p181 = scmp.lt.s32.totalorder %s11, 9
    %p182 = pnand %p180, %p181
    %p183 = pneg %p182
    // Predicated region
    $region29: #{residual_block_forward.3} parent=5 // pred_check
      _
    $region30: #{residual_block_forward.3} parent=5 // pred_check_branch
      %185 = sbr.rel (%p182) target = $region32
    $region31: #{residual_block_forward.3} parent=5 // pred_region
      %s186 = ssub.s32 %s11, 1
      %p187 = scmp.lt.s32.totalorder %s20, 1
      %s188 = scalar_select %p187, %s20, 1
      %s189 = smul.addr %s188, 72
      %s190 = smul.addr %s189, 4
      %s191 = scalar_lea.vmem %s0, %s190
      %p192 = pneg %p49
      %p193 = pneg %p46
      %p194 = pneg %p70
      %p195 = pneg %p67
      %p196 = pneg %p91
      %p197 = pneg %p88
      %p198 = pneg %p119
      %p199 = pneg %p116
      %s200 = smul.u32 4, %s21
      %p201 = scmp.lt.s32.totalorder %s20, 1
      %s202 = scalar_select %p201, %s20, 1
      %p203 = scmp.lt.s32.totalorder %s200, 15
      %s204 = scalar_select %p203, %s200, 15
      %s205 = smul.addr %s204, 2
      %s206 = smul.addr %s202, 32
      %s207 = sadd.s32 %s205, %s206
      %s208 = smul.addr %s207, 4
      %s209 = scalar_lea.vmem %s3, %s208
      %p210 = pneg %p147
      %p211 = pneg %p144
      %p212 = scmp.lt.s32.totalorder %s20, 1
      %s213 = scalar_select %p212, %s20, 1
      %p214 = scmp.lt.s32.totalorder %s21, 3
      %s215 = scalar_select %p214, %s21, 3
      %s216 = smul.addr %s213, 4
      %s217 = sadd.s32 %s215, %s216
      %s218 = smul.addr %s217, 2
      %s219 = scalar_lea.vmem %s4, %s218
      %p220 = scmp.lt.s32.totalorder %s20, 1
      %s221 = scalar_select %p220, %s20, 1
      %s222 = smul.addr %s221, 72
      %s223 = smul.addr %s222, 4
      %s224 = scalar_lea.vmem %s0, %s223
      %s225 = smul.u32 4, %s21
      %p226 = scmp.lt.s32.totalorder %s20, 1
      %s227 = scalar_select %p226, %s20, 1
      %p228 = scmp.lt.s32.totalorder %s225, 15
      %s229 = scalar_select %p228, %s225, 15
      %s230 = smul.addr %s229, 2
      %s231 = smul.addr %s227, 32
      %s232 = sadd.s32 %s230, %s231
      %s233 = smul.addr %s232, 4
      %s234 = scalar_lea.vmem %s3, %s233
      %s235 = smul.u32 4, %s21
      %p236 = scmp.lt.s32.totalorder %s20, 1
      %s237 = scalar_select %p236, %s20, 1
      %p238 = scmp.lt.s32.totalorder %s21, 3
      %s239 = scalar_select %p238, %s21, 3
      %s240 = smul.addr %s237, 4
      %s241 = sadd.s32 %s239, %s240
      %s242 = smul.addr %s241, 2
      %s243 = scalar_lea.vmem %s4, %s242
      %s245 = smul.u32 %s21, 4
      %v246 = vld [vmem:[%s2] sm:$0x1]
      %s247 = smul.u32 %s245, 4
      %s248 = smul.addr %s247, 4
      %s249 = scalar_lea.vmem %s224, %s248
      %v250 = vld [vmem:[%s249] sm:$0x8]
      %v251 = vld [vmem:[%s249 + $0x4] sm:$0xf]
      %v252 = vld [vmem:[%s249 + $0x8] sm:$0xf]
      %v253 = vld [vmem:[%s249 + $0x10] sm:$0x8]
      %v254 = vld [vmem:[%s249 + $0x14] sm:$0xf]
      %v255 = vld [vmem:[%s249 + $0x18] sm:$0xf]
      %v256 = vld [vmem:[%s249 + $0x20] sm:$0x8]
      %v257 = vld [vmem:[%s249 + $0x24] sm:$0xf]
      %v258 = vld [vmem:[%s249 + $0x28] sm:$0xf]
      %v259 = vld [vmem:[%s249 + $0x30] sm:$0x8]
      %v260 = vld [vmem:[%s249 + $0x34] sm:$0xf]
      %v261 = vld [vmem:[%s249 + $0x38] sm:$0xf]
      %v262 = vld [vmem:[%s249 + $0xc] sm:$0x1]
      %v263 = vld [vmem:[%s249 + $0x1c] sm:$0x1]
      %v264 = vld [vmem:[%s249 + $0x2c] sm:$0x1]
      %v265 = vld [vmem:[%s249 + $0x3c] sm:$0x1]
      %v278 = vunpack.c.l.b16 %v250
      %v279 = vunpack.c.l.b16 %v251
      %v280 = vunpack.c.l.b16 %v252
      %v281 = vunpack.c.l.b16 %v253
      %v282 = vunpack.c.l.b16 %v254
      %v283 = vunpack.c.l.b16 %v255
      %v284 = vunpack.c.l.b16 %v256
      %v285 = vunpack.c.l.b16 %v257
      %v286 = vunpack.c.l.b16 %v258
      %v287 = vunpack.c.l.b16 %v259
      %v288 = vunpack.c.l.b16 %v260
      %v289 = vunpack.c.l.b16 %v261
      %v290 = vpack.c.b16 %v279, %v278
      %v291 = vpack.c.b16 %v280, %v280
      %v292 = vpack.c.b16 %v282, %v281
      %v293 = vpack.c.b16 %v283, %v283
      %v294 = vpack.c.b16 %v285, %v284
      %v295 = vpack.c.b16 %v286, %v286
      %v296 = vpack.c.b16 %v288, %v287
      %v297 = vpack.c.b16 %v289, %v289
      %v298 = vpack.c.b16 %v280, %v279
      %v299 = vpack.c.b16 %v283, %v282
      %v300 = vpack.c.b16 %v286, %v285
      %v301 = vpack.c.b16 %v289, %v288
      %v303 = vshrl.u32 %v298, 16
      %v305 = vrot.slane %v303, 4
      %v306 = vshll.u32 %v298, 16
      %v308 = vrot.slane %v306, 5
      %v309 = vor.u32 %v305, %v308
      %v311 = vshrl.u32 %v299, 16
      %v313 = vrot.slane %v311, 4
      %v314 = vshll.u32 %v299, 16
      %v316 = vrot.slane %v314, 5
      %v317 = vor.u32 %v313, %v316
      %v319 = vshrl.u32 %v300, 16
      %v321 = vrot.slane %v319, 4
      %v322 = vshll.u32 %v300, 16
      %v324 = vrot.slane %v322, 5
      %v325 = vor.u32 %v321, %v324
      %v327 = vshrl.u32 %v301, 16
      %v329 = vrot.slane %v327, 4
      %v330 = vshll.u32 %v301, 16
      %v332 = vrot.slane %v330, 5
      %v333 = vor.u32 %v329, %v332
      %v338 = vunpack.c.l.b16 %v262
      %v339 = vunpack.c.l.b16 %v263
      %v340 = vunpack.c.l.b16 %v264
      %v341 = vunpack.c.l.b16 %v265
      %v342 = vpack.c.b16 %v338, %v338
      %v343 = vpack.c.b16 %v339, %v339
      %v344 = vpack.c.b16 %v340, %v340
      %v345 = vpack.c.b16 %v341, %v341
      %vm346 = vcmask 1042432
      %v347 = vrot.slane %v298, 5
      %v348 = vrot.slane %v342, 5
      %v349 = vsel %vm346, %v347, %v348
      %v350 = vrot.slane %v299, 5
      %v351 = vrot.slane %v343, 5
      %v352 = vsel %vm346, %v350, %v351
      %v353 = vrot.slane %v300, 5
      %v354 = vrot.slane %v344, 5
      %v355 = vsel %vm346, %v353, %v354
      %v356 = vrot.slane %v301, 5
      %v357 = vrot.slane %v345, 5
      %v358 = vsel %vm346, %v356, %v357
      %vm359 = vsmask.f32 4352
      %v361 = vshrl.u32 %v290, 16
      %v363 = vrot.slane %v361, 3
      %v364 = vshll.u32 %v290, 16
      %v366 = vrot.slane %v364, 4
      %v367 = vor.u32 %v363, %v366
      %v369 = vshrl.u32 %v291, 16
      %v371 = vrot.slane %v369, 3
      %v372 = vshll.u32 %v291, 16
      %v374 = vrot.slane %v372, 4
      %v375 = vor.u32 %v371, %v374
      %v376 = vsel %vm359, %v367, %v375
      %v378 = vshrl.u32 %v309, 16
      %v380 = vrot.slane %v378, 3
      %v381 = vshll.u32 %v309, 16
      %v383 = vrot.slane %v381, 4
      %v384 = vor.u32 %v380, %v383
      %v385 = vsel %vm359, %v384, %v384
      %v387 = vshrl.u32 %v347, 16
      %v389 = vrot.slane %v387, 3
      %v390 = vshll.u32 %v347, 16
      %v392 = vrot.slane %v390, 4
      %v393 = vor.u32 %v389, %v392
      %v395 = vshrl.u32 %v349, 16
      %v397 = vrot.slane %v395, 3
      %v398 = vshll.u32 %v349, 16
      %v400 = vrot.slane %v398, 4
      %v401 = vor.u32 %v397, %v400
      %v402 = vsel %vm359, %v393, %v401
      %v404 = vshrl.u32 %v292, 16
      %v406 = vrot.slane %v404, 3
      %v407 = vshll.u32 %v292, 16
      %v409 = vrot.slane %v407, 4
      %v410 = vor.u32 %v406, %v409
      %v412 = vshrl.u32 %v293, 16
      %v414 = vrot.slane %v412, 3
      %v415 = vshll.u32 %v293, 16
      %v417 = vrot.slane %v415, 4
      %v418 = vor.u32 %v414, %v417
      %v419 = vsel %vm359, %v410, %v418
      %v421 = vshrl.u32 %v317, 16
      %v423 = vrot.slane %v421, 3
      %v424 = vshll.u32 %v317, 16
      %v426 = vrot.slane %v424, 4
      %v427 = vor.u32 %v423, %v426
      %v428 = vsel %vm359, %v427, %v427
      %v430 = vshrl.u32 %v350, 16
      %v432 = vrot.slane %v430, 3
      %v433 = vshll.u32 %v350, 16
      %v435 = vrot.slane %v433, 4
      %v436 = vor.u32 %v432, %v435
      %v438 = vshrl.u32 %v352, 16
      %v440 = vrot.slane %v438, 3
      %v441 = vshll.u32 %v352, 16
      %v443 = vrot.slane %v441, 4
      %v444 = vor.u32 %v440, %v443
      %v445 = vsel %vm359, %v436, %v444
      %v447 = vshrl.u32 %v294, 16
      %v449 = vrot.slane %v447, 3
      %v450 = vshll.u32 %v294, 16
      %v452 = vrot.slane %v450, 4
      %v453 = vor.u32 %v449, %v452
      %v455 = vshrl.u32 %v295, 16
      %v457 = vrot.slane %v455, 3
      %v458 = vshll.u32 %v295, 16
      %v460 = vrot.slane %v458, 4
      %v461 = vor.u32 %v457, %v460
      %v462 = vsel %vm359, %v453, %v461
      %v464 = vshrl.u32 %v325, 16
      %v466 = vrot.slane %v464, 3
      %v467 = vshll.u32 %v325, 16
      %v469 = vrot.slane %v467, 4
      %v470 = vor.u32 %v466, %v469
      %v471 = vsel %vm359, %v470, %v470
      %v473 = vshrl.u32 %v353, 16
      %v475 = vrot.slane %v473, 3
      %v476 = vshll.u32 %v353, 16
      %v478 = vrot.slane %v476, 4
      %v479 = vor.u32 %v475, %v478
      %v481 = vshrl.u32 %v355, 16
      %v483 = vrot.slane %v481, 3
      %v484 = vshll.u32 %v355, 16
      %v486 = vrot.slane %v484, 4
      %v487 = vor.u32 %v483, %v486
      %v488 = vsel %vm359, %v479, %v487
      %v490 = vshrl.u32 %v296, 16
      %v492 = vrot.slane %v490, 3
      %v493 = vshll.u32 %v296, 16
      %v495 = vrot.slane %v493, 4
      %v496 = vor.u32 %v492, %v495
      %v498 = vshrl.u32 %v297, 16
      %v500 = vrot.slane %v498, 3
      %v501 = vshll.u32 %v297, 16
      %v503 = vrot.slane %v501, 4
      %v504 = vor.u32 %v500, %v503
      %v505 = vsel %vm359, %v496, %v504
      %v507 = vshrl.u32 %v333, 16
      %v509 = vrot.slane %v507, 3
      %v510 = vshll.u32 %v333, 16
      %v512 = vrot.slane %v510, 4
      %v513 = vor.u32 %v509, %v512
      %v514 = vsel %vm359, %v513, %v513
      %v516 = vshrl.u32 %v356, 16
      %v518 = vrot.slane %v516, 3
      %v519 = vshll.u32 %v356, 16
      %v521 = vrot.slane %v519, 4
      %v522 = vor.u32 %v518, %v521
      %v524 = vshrl.u32 %v358, 16
      %v526 = vrot.slane %v524, 3
      %v527 = vshll.u32 %v358, 16
      %v529 = vrot.slane %v527, 4
      %v530 = vor.u32 %v526, %v529
      %v531 = vsel %vm359, %v522, %v530
      %v544 = vld [vmem:[%s1] sm:$0xf]
      %v545 = vld [vmem:[%s1 + $0x4] sm:$0xf]
      %v546 = vld [vmem:[%s1 + $0x8] sm:$0xf]
      %v547 = vld [vmem:[%s1 + $0xc] sm:$0xf]
      %v548 = vld [vmem:[%s1 + $0x10] sm:$0xf]
      %v549 = vld [vmem:[%s1 + $0x14] sm:$0xf]
      %v550 = vld [vmem:[%s1 + $0x18] sm:$0xf]
      %v551 = vld [vmem:[%s1 + $0x1c] sm:$0xf]
      %v552 = vld [vmem:[%s1 + $0x20] sm:$0xf]
      %v553 = vld [vmem:[%s1 + $0x24] sm:$0xf]
      %v554 = vld [vmem:[%s1 + $0x28] sm:$0xf]
      %v555 = vld [vmem:[%s1 + $0x2c] sm:$0xf]
      %v556 = vld [vmem:[%s1 + $0x30] sm:$0xf]
      %v557 = vld [vmem:[%s1 + $0x34] sm:$0xf]
      %v558 = vld [vmem:[%s1 + $0x38] sm:$0xf]
      %v559 = vld [vmem:[%s1 + $0x3c] sm:$0xf]
      %v560 = vld [vmem:[%s1 + $0x40] sm:$0xf]
      %v561 = vld [vmem:[%s1 + $0x44] sm:$0xf]
      %v562 = vld [vmem:[%s1 + $0x48] sm:$0xf]
      %v563 = vld [vmem:[%s1 + $0x4c] sm:$0xf]
      %v564 = vld [vmem:[%s1 + $0x50] sm:$0xf]
      %v565 = vld [vmem:[%s1 + $0x54] sm:$0xf]
      %v566 = vld [vmem:[%s1 + $0x58] sm:$0xf]
      %v567 = vld [vmem:[%s1 + $0x5c] sm:$0xf]
      %v568 = vld [vmem:[%s1 + $0x60] sm:$0xf]
      %v569 = vld [vmem:[%s1 + $0x64] sm:$0xf]
      %v570 = vld [vmem:[%s1 + $0x68] sm:$0xf]
      %v571 = vld [vmem:[%s1 + $0x6c] sm:$0xf]
      %v572 = vld [vmem:[%s1 + $0x70] sm:$0xf]
      %v573 = vld [vmem:[%s1 + $0x74] sm:$0xf]
      %v574 = vld [vmem:[%s1 + $0x78] sm:$0xf]
      %v575 = vld [vmem:[%s1 + $0x7c] sm:$0xf]
      %v576 = vld [vmem:[%s1 + $0x80] sm:$0xf]
      %v577 = vld [vmem:[%s1 + $0x84] sm:$0xf]
      %v578 = vld [vmem:[%s1 + $0x88] sm:$0xf]
      %v579 = vld [vmem:[%s1 + $0x8c] sm:$0xf]
      %v580 = vld [vmem:[%s1 + $0x90] sm:$0xf]
      %v581 = vld [vmem:[%s1 + $0x94] sm:$0xf]
      %v582 = vld [vmem:[%s1 + $0x98] sm:$0xf]
      %v583 = vld [vmem:[%s1 + $0x9c] sm:$0xf]
      %v584 = vld [vmem:[%s1 + $0xa0] sm:$0xf]
      %v585 = vld [vmem:[%s1 + $0xa4] sm:$0xf]
      %v586 = vld [vmem:[%s1 + $0xa8] sm:$0xf]
      %v587 = vld [vmem:[%s1 + $0xac] sm:$0xf]
      %v588 = vld [vmem:[%s1 + $0xb0] sm:$0xf]
      %v589 = vld [vmem:[%s1 + $0xb4] sm:$0xf]
      %v590 = vld [vmem:[%s1 + $0xb8] sm:$0xf]
      %v591 = vld [vmem:[%s1 + $0xbc] sm:$0xf]
      %s592 = sadd.s32 %s245, 1
      %s593 = smul.u32 %s592, 4
      %s594 = smul.addr %s593, 4
      %s595 = scalar_lea.vmem %s224, %s594
      %v596 = vld [vmem:[%s595] sm:$0x8]
      %v597 = vld [vmem:[%s595 + $0x4] sm:$0xf]
      %v598 = vld [vmem:[%s595 + $0x8] sm:$0xf]
      %v599 = vld [vmem:[%s595 + $0x10] sm:$0x8]
      %v600 = vld [vmem:[%s595 + $0x14] sm:$0xf]
      %v601 = vld [vmem:[%s595 + $0x18] sm:$0xf]
      %v602 = vld [vmem:[%s595 + $0x20] sm:$0x8]
      %v603 = vld [vmem:[%s595 + $0x24] sm:$0xf]
      %v604 = vld [vmem:[%s595 + $0x28] sm:$0xf]
      %v605 = vld [vmem:[%s595 + $0x30] sm:$0x8]
      %v606 = vld [vmem:[%s595 + $0x34] sm:$0xf]
      %v607 = vld [vmem:[%s595 + $0x38] sm:$0xf]
      %v608 = vld [vmem:[%s595 + $0xc] sm:$0x1]
      %v609 = vld [vmem:[%s595 + $0x1c] sm:$0x1]
      %v610 = vld [vmem:[%s595 + $0x2c] sm:$0x1]
      %v611 = vld [vmem:[%s595 + $0x3c] sm:$0x1]
      %v624 = vunpack.c.l.b16 %v596
      %v625 = vunpack.c.l.b16 %v597
      %v626 = vunpack.c.l.b16 %v598
      %v627 = vunpack.c.l.b16 %v599
      %v628 = vunpack.c.l.b16 %v600
      %v629 = vunpack.c.l.b16 %v601
      %v630 = vunpack.c.l.b16 %v602
      %v631 = vunpack.c.l.b16 %v603
      %v632 = vunpack.c.l.b16 %v604
      %v633 = vunpack.c.l.b16 %v605
      %v634 = vunpack.c.l.b16 %v606
      %v635 = vunpack.c.l.b16 %v607
      %v636 = vpack.c.b16 %v625, %v624
      %v637 = vpack.c.b16 %v626, %v626
      %v638 = vpack.c.b16 %v628, %v627
      %v639 = vpack.c.b16 %v629, %v629
      %v640 = vpack.c.b16 %v631, %v630
      %v641 = vpack.c.b16 %v632, %v632
      %v642 = vpack.c.b16 %v634, %v633
      %v643 = vpack.c.b16 %v635, %v635
      %v644 = vpack.c.b16 %v626, %v625
      %v645 = vpack.c.b16 %v629, %v628
      %v646 = vpack.c.b16 %v632, %v631
      %v647 = vpack.c.b16 %v635, %v634
      %v649 = vshrl.u32 %v644, 16
      %v651 = vrot.slane %v649, 4
      %v652 = vshll.u32 %v644, 16
      %v654 = vrot.slane %v652, 5
      %v655 = vor.u32 %v651, %v654
      %v657 = vshrl.u32 %v645, 16
      %v659 = vrot.slane %v657, 4
      %v660 = vshll.u32 %v645, 16
      %v662 = vrot.slane %v660, 5
      %v663 = vor.u32 %v659, %v662
      %v665 = vshrl.u32 %v646, 16
      %v667 = vrot.slane %v665, 4
      %v668 = vshll.u32 %v646, 16
      %v670 = vrot.slane %v668, 5
      %v671 = vor.u32 %v667, %v670
      %v673 = vshrl.u32 %v647, 16
      %v675 = vrot.slane %v673, 4
      %v676 = vshll.u32 %v647, 16
      %v678 = vrot.slane %v676, 5
      %v679 = vor.u32 %v675, %v678
      %v684 = vunpack.c.l.b16 %v608
      %v685 = vunpack.c.l.b16 %v609
      %v686 = vunpack.c.l.b16 %v610
      %v687 = vunpack.c.l.b16 %v611
      %v688 = vpack.c.b16 %v684, %v684
      %v689 = vpack.c.b16 %v685, %v685
      %v690 = vpack.c.b16 %v686, %v686
      %v691 = vpack.c.b16 %v687, %v687
      %v692 = vrot.slane %v644, 5
      %v693 = vrot.slane %v688, 5
      %v694 = vsel %vm346, %v692, %v693
      %v695 = vrot.slane %v645, 5
      %v696 = vrot.slane %v689, 5
      %v697 = vsel %vm346, %v695, %v696
      %v698 = vrot.slane %v646, 5
      %v699 = vrot.slane %v690, 5
      %v700 = vsel %vm346, %v698, %v699
      %v701 = vrot.slane %v647, 5
      %v702 = vrot.slane %v691, 5
      %v703 = vsel %vm346, %v701, %v702
      %v705 = vshrl.u32 %v636, 16
      %v707 = vrot.slane %v705, 3
      %v708 = vshll.u32 %v636, 16
      %v710 = vrot.slane %v708, 4
      %v711 = vor.u32 %v707, %v710
      %v713 = vshrl.u32 %v637, 16
      %v715 = vrot.slane %v713, 3
      %v716 = vshll.u32 %v637, 16
      %v718 = vrot.slane %v716, 4
      %v719 = vor.u32 %v715, %v718
      %v720 = vsel %vm359, %v711, %v719
      %v722 = vshrl.u32 %v655, 16
      %v724 = vrot.slane %v722, 3
      %v725 = vshll.u32 %v655, 16
      %v727 = vrot.slane %v725, 4
      %v728 = vor.u32 %v724, %v727
      %v729 = vsel %vm359, %v728, %v728
      %v731 = vshrl.u32 %v692, 16
      %v733 = vrot.slane %v731, 3
      %v734 = vshll.u32 %v692, 16
      %v736 = vrot.slane %v734, 4
      %v737 = vor.u32 %v733, %v736
      %v739 = vshrl.u32 %v694, 16
      %v741 = vrot.slane %v739, 3
      %v742 = vshll.u32 %v694, 16
      %v744 = vrot.slane %v742, 4
      %v745 = vor.u32 %v741, %v744
      %v746 = vsel %vm359, %v737, %v745
      %v748 = vshrl.u32 %v638, 16
      %v750 = vrot.slane %v748, 3
      %v751 = vshll.u32 %v638, 16
      %v753 = vrot.slane %v751, 4
      %v754 = vor.u32 %v750, %v753
      %v756 = vshrl.u32 %v639, 16
      %v758 = vrot.slane %v756, 3
      %v759 = vshll.u32 %v639, 16
      %v761 = vrot.slane %v759, 4
      %v762 = vor.u32 %v758, %v761
      %v763 = vsel %vm359, %v754, %v762
      %v765 = vshrl.u32 %v663, 16
      %v767 = vrot.slane %v765, 3
      %v768 = vshll.u32 %v663, 16
      %v770 = vrot.slane %v768, 4
      %v771 = vor.u32 %v767, %v770
      %v772 = vsel %vm359, %v771, %v771
      %v774 = vshrl.u32 %v695, 16
      %v776 = vrot.slane %v774, 3
      %v777 = vshll.u32 %v695, 16
      %v779 = vrot.slane %v777, 4
      %v780 = vor.u32 %v776, %v779
      %v782 = vshrl.u32 %v697, 16
      %v784 = vrot.slane %v782, 3
      %v785 = vshll.u32 %v697, 16
      %v787 = vrot.slane %v785, 4
      %v788 = vor.u32 %v784, %v787
      %v789 = vsel %vm359, %v780, %v788
      %v791 = vshrl.u32 %v640, 16
      %v793 = vrot.slane %v791, 3
      %v794 = vshll.u32 %v640, 16
      %v796 = vrot.slane %v794, 4
      %v797 = vor.u32 %v793, %v796
      %v799 = vshrl.u32 %v641, 16
      %v801 = vrot.slane %v799, 3
      %v802 = vshll.u32 %v641, 16
      %v804 = vrot.slane %v802, 4
      %v805 = vor.u32 %v801, %v804
      %v806 = vsel %vm359, %v797, %v805
      %v808 = vshrl.u32 %v671, 16
      %v810 = vrot.slane %v808, 3
      %v811 = vshll.u32 %v671, 16
      %v813 = vrot.slane %v811, 4
      %v814 = vor.u32 %v810, %v813
      %v815 = vsel %vm359, %v814, %v814
      %v817 = vshrl.u32 %v698, 16
      %v819 = vrot.slane %v817, 3
      %v820 = vshll.u32 %v698, 16
      %v822 = vrot.slane %v820, 4
      %v823 = vor.u32 %v819, %v822
      %v825 = vshrl.u32 %v700, 16
      %v827 = vrot.slane %v825, 3
      %v828 = vshll.u32 %v700, 16
      %v830 = vrot.slane %v828, 4
      %v831 = vor.u32 %v827, %v830
      %v832 = vsel %vm359, %v823, %v831
      %v834 = vshrl.u32 %v642, 16
      %v836 = vrot.slane %v834, 3
      %v837 = vshll.u32 %v642, 16
      %v839 = vrot.slane %v837, 4
      %v840 = vor.u32 %v836, %v839
      %v842 = vshrl.u32 %v643, 16
      %v844 = vrot.slane %v842, 3
      %v845 = vshll.u32 %v643, 16
      %v847 = vrot.slane %v845, 4
      %v848 = vor.u32 %v844, %v847
      %v849 = vsel %vm359, %v840, %v848
      %v851 = vshrl.u32 %v679, 16
      %v853 = vrot.slane %v851, 3
      %v854 = vshll.u32 %v679, 16
      %v856 = vrot.slane %v854, 4
      %v857 = vor.u32 %v853, %v856
      %v858 = vsel %vm359, %v857, %v857
      %v860 = vshrl.u32 %v701, 16
      %v862 = vrot.slane %v860, 3
      %v863 = vshll.u32 %v701, 16
      %v865 = vrot.slane %v863, 4
      %v866 = vor.u32 %v862, %v865
      %v868 = vshrl.u32 %v703, 16
      %v870 = vrot.slane %v868, 3
      %v871 = vshll.u32 %v703, 16
      %v873 = vrot.slane %v871, 4
      %v874 = vor.u32 %v870, %v873
      %v875 = vsel %vm359, %v866, %v874
      %s888 = scalar_lea.vmem %s1, 192
      %v889 = vld [vmem:[%s888] sm:$0xf]
      %v890 = vld [vmem:[%s888 + $0x4] sm:$0xf]
      %v891 = vld [vmem:[%s888 + $0x8] sm:$0xf]
      %v892 = vld [vmem:[%s888 + $0xc] sm:$0xf]
      %v893 = vld [vmem:[%s888 + $0x10] sm:$0xf]
      %v894 = vld [vmem:[%s888 + $0x14] sm:$0xf]
      %v895 = vld [vmem:[%s888 + $0x18] sm:$0xf]
      %v896 = vld [vmem:[%s888 + $0x1c] sm:$0xf]
      %v897 = vld [vmem:[%s888 + $0x20] sm:$0xf]
      %v898 = vld [vmem:[%s888 + $0x24] sm:$0xf]
      %v899 = vld [vmem:[%s888 + $0x28] sm:$0xf]
      %v900 = vld [vmem:[%s888 + $0x2c] sm:$0xf]
      %v901 = vld [vmem:[%s888 + $0x30] sm:$0xf]
      %v902 = vld [vmem:[%s888 + $0x34] sm:$0xf]
      %v903 = vld [vmem:[%s888 + $0x38] sm:$0xf]
      %v904 = vld [vmem:[%s888 + $0x3c] sm:$0xf]
      %v905 = vld [vmem:[%s888 + $0x40] sm:$0xf]
      %v906 = vld [vmem:[%s888 + $0x44] sm:$0xf]
      %v907 = vld [vmem:[%s888 + $0x48] sm:$0xf]
      %v908 = vld [vmem:[%s888 + $0x4c] sm:$0xf]
      %v909 = vld [vmem:[%s888 + $0x50] sm:$0xf]
      %v910 = vld [vmem:[%s888 + $0x54] sm:$0xf]
      %v911 = vld [vmem:[%s888 + $0x58] sm:$0xf]
      %v912 = vld [vmem:[%s888 + $0x5c] sm:$0xf]
      %v913 = vld [vmem:[%s888 + $0x60] sm:$0xf]
      %v914 = vld [vmem:[%s888 + $0x64] sm:$0xf]
      %v915 = vld [vmem:[%s888 + $0x68] sm:$0xf]
      %v916 = vld [vmem:[%s888 + $0x6c] sm:$0xf]
      %v917 = vld [vmem:[%s888 + $0x70] sm:$0xf]
      %v918 = vld [vmem:[%s888 + $0x74] sm:$0xf]
      %v919 = vld [vmem:[%s888 + $0x78] sm:$0xf]
      %v920 = vld [vmem:[%s888 + $0x7c] sm:$0xf]
      %v921 = vld [vmem:[%s888 + $0x80] sm:$0xf]
      %v922 = vld [vmem:[%s888 + $0x84] sm:$0xf]
      %v923 = vld [vmem:[%s888 + $0x88] sm:$0xf]
      %v924 = vld [vmem:[%s888 + $0x8c] sm:$0xf]
      %v925 = vld [vmem:[%s888 + $0x90] sm:$0xf]
      %v926 = vld [vmem:[%s888 + $0x94] sm:$0xf]
      %v927 = vld [vmem:[%s888 + $0x98] sm:$0xf]
      %v928 = vld [vmem:[%s888 + $0x9c] sm:$0xf]
      %v929 = vld [vmem:[%s888 + $0xa0] sm:$0xf]
      %v930 = vld [vmem:[%s888 + $0xa4] sm:$0xf]
      %v931 = vld [vmem:[%s888 + $0xa8] sm:$0xf]
      %v932 = vld [vmem:[%s888 + $0xac] sm:$0xf]
      %v933 = vld [vmem:[%s888 + $0xb0] sm:$0xf]
      %v934 = vld [vmem:[%s888 + $0xb4] sm:$0xf]
      %v935 = vld [vmem:[%s888 + $0xb8] sm:$0xf]
      %v936 = vld [vmem:[%s888 + $0xbc] sm:$0xf]
      %v985 = vunpack.c.l.b16 %v889
      %v986 = vunpack.c.l.b16 %v890
      %v987 = vunpack.c.l.b16 %v891
      %v988 = vunpack.c.l.b16 %v892
      %v989 = vunpack.c.l.b16 %v893
      %v990 = vunpack.c.l.b16 %v894
      %v991 = vunpack.c.l.b16 %v895
      %v992 = vunpack.c.l.b16 %v896
      %v993 = vunpack.c.l.b16 %v897
      %v994 = vunpack.c.l.b16 %v898
      %v995 = vunpack.c.l.b16 %v899
      %v996 = vunpack.c.l.b16 %v900
      %v997 = vunpack.c.l.b16 %v901
      %v998 = vunpack.c.l.b16 %v902
      %v999 = vunpack.c.l.b16 %v903
      %v1000 = vunpack.c.l.b16 %v904
      %v1001 = vunpack.c.l.b16 %v905
      %v1002 = vunpack.c.l.b16 %v906
      %v1003 = vunpack.c.l.b16 %v907
      %v1004 = vunpack.c.l.b16 %v908
      %v1005 = vunpack.c.l.b16 %v909
      %v1006 = vunpack.c.l.b16 %v910
      %v1007 = vunpack.c.l.b16 %v911
      %v1008 = vunpack.c.l.b16 %v912
      %v1009 = vunpack.c.l.b16 %v913
      %v1010 = vunpack.c.l.b16 %v914
      %v1011 = vunpack.c.l.b16 %v915
      %v1012 = vunpack.c.l.b16 %v916
      %v1013 = vunpack.c.l.b16 %v917
      %v1014 = vunpack.c.l.b16 %v918
      %v1015 = vunpack.c.l.b16 %v919
      %v1016 = vunpack.c.l.b16 %v920
      %v1017 = vunpack.c.l.b16 %v921
      %v1018 = vunpack.c.l.b16 %v922
      %v1019 = vunpack.c.l.b16 %v923
      %v1020 = vunpack.c.l.b16 %v924
      %v1021 = vunpack.c.l.b16 %v925
      %v1022 = vunpack.c.l.b16 %v926
      %v1023 = vunpack.c.l.b16 %v927
      %v1024 = vunpack.c.l.b16 %v928
      %v1025 = vunpack.c.l.b16 %v929
      %v1026 = vunpack.c.l.b16 %v930
      %v1027 = vunpack.c.l.b16 %v931
      %v1028 = vunpack.c.l.b16 %v932
      %v1029 = vunpack.c.l.b16 %v933
      %v1030 = vunpack.c.l.b16 %v934
      %v1031 = vunpack.c.l.b16 %v935
      %v1032 = vunpack.c.l.b16 %v936
      %v1033 = vpack.c.b16 %v986, %v985
      %v1034 = vpack.c.b16 %v988, %v987
      %v1035 = vpack.c.b16 %v990, %v989
      %v1036 = vpack.c.b16 %v992, %v991
      %v1037 = vpack.c.b16 %v994, %v993
      %v1038 = vpack.c.b16 %v996, %v995
      %v1039 = vpack.c.b16 %v998, %v997
      %v1040 = vpack.c.b16 %v1000, %v999
      %v1041 = vpack.c.b16 %v1002, %v1001
      %v1042 = vpack.c.b16 %v1004, %v1003
      %v1043 = vpack.c.b16 %v1006, %v1005
      %v1044 = vpack.c.b16 %v1008, %v1007
      %v1045 = vpack.c.b16 %v1010, %v1009
      %v1046 = vpack.c.b16 %v1012, %v1011
      %v1047 = vpack.c.b16 %v1014, %v1013
      %v1048 = vpack.c.b16 %v1016, %v1015
      %v1049 = vpack.c.b16 %v1018, %v1017
      %v1050 = vpack.c.b16 %v1020, %v1019
      %v1051 = vpack.c.b16 %v1022, %v1021
      %v1052 = vpack.c.b16 %v1024, %v1023
      %v1053 = vpack.c.b16 %v1026, %v1025
      %v1054 = vpack.c.b16 %v1028, %v1027
      %v1055 = vpack.c.b16 %v1030, %v1029
      %v1056 = vpack.c.b16 %v1032, %v1031
      %1081 = vmatprep.subr.bf16.mxu0 0
      %1082 = vmatpush1.bf16.msra.mxu0 %v1033
      %1083 = vmatprep.subr.bf16.mxu0 0
      %1084 = vmatpush1.bf16.msra.mxu0 %v1034
      %1085 = vmatprep.subr.bf16.mxu0 0
      %1086 = vmatpush1.bf16.msra.mxu0 %v1035
      %1087 = vmatprep.subr.bf16.mxu0 0
      %1088 = vmatpush1.bf16.msra.mxu0 %v1036
      %1089 = vmatprep.subr.bf16.mxu0 0
      %1090 = vmatpush1.bf16.msra.mxu0 %v1037
      %1091 = vmatprep.subr.bf16.mxu0 0
      %1092 = vmatpush1.bf16.msra.mxu0 %v1038
      %1093 = vmatprep.subr.bf16.mxu0 0
      %1094 = vmatpush1.bf16.msra.mxu0 %v1039
      %1095 = vmatprep.subr.bf16.mxu0 0
      %1096 = vmatpush1.bf16.msra.mxu0 %v1040
      %1097 = vmatprep.subr.bf16.mxu0 0
      %1098 = vmatpush1.bf16.msra.mxu0 %v1041
      %1099 = vmatprep.subr.bf16.mxu0 0
      %1100 = vmatpush1.bf16.msra.mxu0 %v1042
      %1101 = vmatprep.subr.bf16.mxu0 0
      %1102 = vmatpush1.bf16.msra.mxu0 %v1043
      %1103 = vmatprep.subr.bf16.mxu0 0
      %1104 = vmatpush1.bf16.msra.mxu0 %v1044
      %1105 = vmatprep.subr.bf16.mxu0 0
      %1106 = vmatpush1.bf16.msra.mxu0 %v1045
      %1107 = vmatprep.subr.bf16.mxu0 0
      %1108 = vmatpush1.bf16.msra.mxu0 %v1046
      %1109 = vmatprep.subr.bf16.mxu0 0
      %1110 = vmatpush1.bf16.msra.mxu0 %v1047
      %1111 = vmatprep.subr.bf16.mxu0 0
      %1112 = vmatpush1.bf16.msra.mxu0 %v1048
      %1113 = vmatprep.mubr.bf16.mxu0 %v729
      %1114 = vmatmul.mubr.bf16.gmra.mrb[0].mxu0 %v720
      %v1115 = vpop.f32.mrb[0].mxu0
      %v1116 = vadd.f32 0.0, %v1115
      %v1117 = vpop.f32.mrb[0].mxu0
      %v1118 = vpop.f32.mrb[0].mxu0
      %v1119 = vadd.f32 0.0, %v1118
      %v1120 = vpop.f32.mrb[0].mxu0
      %1121 = vmatprep.mubr.bf16.mxu0 %v772
      %1122 = vmatmul.mubr.bf16.gmra.mrb[0].mxu0 %v763
      %v1123 = vpop.f32.mrb[0].mxu0
      %v1124 = vadd.f32 0.0, %v1123
      %v1125 = vpop.f32.mrb[0].mxu0
      %v1126 = vpop.f32.mrb[0].mxu0
      %v1127 = vadd.f32 0.0, %v1126
      %v1128 = vpop.f32.mrb[0].mxu0
      %1129 = vmatprep.mubr.bf16.mxu0 %v815
      %1130 = vmatmul.mubr.bf16.gmra.mrb[0].mxu0 %v806
      %v1131 = vpop.f32.mrb[0].mxu0
      %v1132 = vadd.f32 0.0, %v1131
      %v1133 = vpop.f32.mrb[0].mxu0
      %v1134 = vpop.f32.mrb[0].mxu0
      %v1135 = vadd.f32 0.0, %v1134
      %v1136 = vpop.f32.mrb[0].mxu0
      %1137 = vmatprep.mubr.bf16.mxu0 %v858
      %1138 = vmatmul.mubr.bf16.gmra.mrb[0].mxu0 %v849
      %v1139 = vpop.f32.mrb[0].mxu0
      %v1140 = vadd.f32 0.0, %v1139
      %v1141 = vpop.f32.mrb[0].mxu0
      %v1142 = vpop.f32.mrb[0].mxu0
      %v1143 = vadd.f32 0.0, %v1142
      %v1144 = vpop.f32.mrb[0].mxu0
      %1145 = vdwg.mxu0
      %1146 = vmatprep.subr.bf16.mxu0 0
      %1147 = vmatpush1.bf16.msra.mxu0 %v1049
      %1148 = vmatprep.subr.bf16.mxu0 0
      %1149 = vmatpush1.bf16.msra.mxu0 %v1050
      %1150 = vmatprep.subr.bf16.mxu0 0
      %1151 = vmatpush1.bf16.msra.mxu0 %v1051
      %1152 = vmatprep.subr.bf16.mxu0 0
      %1153 = vmatpush1.bf16.msra.mxu0 %v1052
      %1154 = vmatprep.subr.bf16.mxu0 0
      %1155 = vmatpush1.bf16.msra.mxu0 %v1053
      %1156 = vmatprep.subr.bf16.mxu0 0
      %1157 = vmatpush1.bf16.msra.mxu0 %v1054
      %1158 = vmatprep.subr.bf16.mxu0 0
      %1159 = vmatpush1.bf16.msra.mxu0 %v1055
      %1160 = vmatprep.subr.bf16.mxu0 0
      %1161 = vmatpush1.bf16.msra.mxu0 %v1056
      %1162 = vmatprep.subr.bf16.mxu0 0
      %1163 = vmatpush1.bf16.msra.mxu0 0
      %1164 = vmatprep.subr.bf16.mxu0 0
      %1165 = vmatpush1.bf16.msra.mxu0 0
      %1166 = vmatprep.subr.bf16.mxu0 0
      %1167 = vmatpush1.bf16.msra.mxu0 0
      %1168 = vmatprep.subr.bf16.mxu0 0
      %1169 = vmatpush1.bf16.msra.mxu0 0
      %1170 = vmatprep.subr.bf16.mxu0 0
      %1171 = vmatpush1.bf16.msra.mxu0 0
      %1172 = vmatprep.subr.bf16.mxu0 0
      %1173 = vmatpush1.bf16.msra.mxu0 0
      %1174 = vmatprep.subr.bf16.mxu0 0
      %1175 = vmatpush1.bf16.msra.mxu0 0
      %1176 = vmatprep.subr.bf16.mxu0 0
      %1177 = vmatpush1.bf16.msra.mxu0 0
      %1178 = vmatprep.mubr.bf16.mxu0 0
      %1179 = vmatmul.mubr.bf16.gmra.mrb[0].mxu0 %v746
      %v1180 = vpop.f32.mrb[0].mxu0
      %v1181 = vadd.f32 %v1116, %v1180
      %v1182 = vpop.f32.mrb[0].mxu0
      %v1183 = vpop.f32.mrb[0].mxu0
      %v1184 = vadd.f32 %v1119, %v1183
      %v1185 = vpop.f32.mrb[0].mxu0
      %1186 = vmatprep.mubr.bf16.mxu0 0
      %1187 = vmatmul.mubr.bf16.gmra.mrb[0].mxu0 %v789
      %v1188 = vpop.f32.mrb[0].mxu0
      %v1189 = vadd.f32 %v1124, %v1188
      %v1190 = vpop.f32.mrb[0].mxu0
      %v1191 = vpop.f32.mrb[0].mxu0
      %v1192 = vadd.f32 %v1127, %v1191
      %v1193 = vpop.f32.mrb[0].mxu0
      %1194 = vmatprep.mubr.bf16.mxu0 0
      %1195 = vmatmul.mubr.bf16.gmra.mrb[0].mxu0 %v832
      %v1196 = vpop.f32.mrb[0].mxu0
      %v1197 = vadd.f32 %v1132, %v1196
      %v1198 = vpop.f32.mrb[0].mxu0
      %v1199 = vpop.f32.mrb[0].mxu0
      %v1200 = vadd.f32 %v1135, %v1199
      %v1201 = vpop.f32.mrb[0].mxu0
      %1202 = vmatprep.mubr.bf16.mxu0 0
      %1203 = vmatmul.mubr.bf16.gmra.mrb[0].mxu0 %v875
      %v1204 = vpop.f32.mrb[0].mxu0
      %v1205 = vadd.f32 %v1140, %v1204
      %v1206 = vpop.f32.mrb[0].mxu0
      %v1207 = vpop.f32.mrb[0].mxu0
      %v1208 = vadd.f32 %v1143, %v1207
      %v1209 = vpop.f32.mrb[0].mxu0
      %1210 = vdwg.mxu0
      %v1259 = vunpack.c.l.b16 %v544
      %v1260 = vunpack.c.l.b16 %v545
      %v1261 = vunpack.c.l.b16 %v546
      %v1262 = vunpack.c.l.b16 %v547
      %v1263 = vunpack.c.l.b16 %v548
      %v1264 = vunpack.c.l.b16 %v549
      %v1265 = vunpack.c.l.b16 %v550
      %v1266 = vunpack.c.l.b16 %v551
      %v1267 = vunpack.c.l.b16 %v552
      %v1268 = vunpack.c.l.b16 %v553
      %v1269 = vunpack.c.l.b16 %v554
      %v1270 = vunpack.c.l.b16 %v555
      %v1271 = vunpack.c.l.b16 %v556
      %v1272 = vunpack.c.l.b16 %v557
      %v1273 = vunpack.c.l.b16 %v558
      %v1274 = vunpack.c.l.b16 %v559
      %v1275 = vunpack.c.l.b16 %v560
      %v1276 = vunpack.c.l.b16 %v561
      %v1277 = vunpack.c.l.b16 %v562
      %v1278 = vunpack.c.l.b16 %v563
      %v1279 = vunpack.c.l.b16 %v564
      %v1280 = vunpack.c.l.b16 %v565
      %v1281 = vunpack.c.l.b16 %v566
      %v1282 = vunpack.c.l.b16 %v567
      %v1283 = vunpack.c.l.b16 %v568
      %v1284 = vunpack.c.l.b16 %v569
      %v1285 = vunpack.c.l.b16 %v570
      %v1286 = vunpack.c.l.b16 %v571
      %v1287 = vunpack.c.l.b16 %v572
      %v1288 = vunpack.c.l.b16 %v573
      %v1289 = vunpack.c.l.b16 %v574
      %v1290 = vunpack.c.l.b16 %v575
      %v1291 = vunpack.c.l.b16 %v576
      %v1292 = vunpack.c.l.b16 %v577
      %v1293 = vunpack.c.l.b16 %v578
      %v1294 = vunpack.c.l.b16 %v579
      %v1295 = vunpack.c.l.b16 %v580
      %v1296 = vunpack.c.l.b16 %v581
      %v1297 = vunpack.c.l.b16 %v582
      %v1298 = vunpack.c.l.b16 %v583
      %v1299 = vunpack.c.l.b16 %v584
      %v1300 = vunpack.c.l.b16 %v585
      %v1301 = vunpack.c.l.b16 %v586
      %v1302 = vunpack.c.l.b16 %v587
      %v1303 = vunpack.c.l.b16 %v588
      %v1304 = vunpack.c.l.b16 %v589
      %v1305 = vunpack.c.l.b16 %v590
      %v1306 = vunpack.c.l.b16 %v591
      %v1307 = vpack.c.b16 %v1260, %v1259
      %v1308 = vpack.c.b16 %v1262, %v1261
      %v1309 = vpack.c.b16 %v1264, %v1263
      %v1310 = vpack.c.b16 %v1266, %v1265
      %v1311 = vpack.c.b16 %v1268, %v1267
      %v1312 = vpack.c.b16 %v1270, %v1269
      %v1313 = vpack.c.b16 %v1272, %v1271
      %v1314 = vpack.c.b16 %v1274, %v1273
      %v1315 = vpack.c.b16 %v1276, %v1275
      %v1316 = vpack.c.b16 %v1278, %v1277
      %v1317 = vpack.c.b16 %v1280, %v1279
      %v1318 = vpack.c.b16 %v1282, %v1281
      %v1319 = vpack.c.b16 %v1284, %v1283
      %v1320 = vpack.c.b16 %v1286, %v1285
      %v1321 = vpack.c.b16 %v1288, %v1287
      %v1322 = vpack.c.b16 %v1290, %v1289
      %v1323 = vpack.c.b16 %v1292, %v1291
      %v1324 = vpack.c.b16 %v1294, %v1293
      %v1325 = vpack.c.b16 %v1296, %v1295
      %v1326 = vpack.c.b16 %v1298, %v1297
      %v1327 = vpack.c.b16 %v1300, %v1299
      %v1328 = vpack.c.b16 %v1302, %v1301
      %v1329 = vpack.c.b16 %v1304, %v1303
      %v1330 = vpack.c.b16 %v1306, %v1305
      %1355 = vmatprep.subr.bf16.mxu0 0
      %1356 = vmatpush1.bf16.msra.mxu0 %v1307
      %1357 = vmatprep.subr.bf16.mxu0 0
      %1358 = vmatpush1.bf16.msra.mxu0 %v1308
      %1359 = vmatprep.subr.bf16.mxu0 0
      %1360 = vmatpush1.bf16.msra.mxu0 %v1309
      %1361 = vmatprep.subr.bf16.mxu0 0
      %1362 = vmatpush1.bf16.msra.mxu0 %v1310
      %1363 = vmatprep.subr.bf16.mxu0 0
      %1364 = vmatpush1.bf16.msra.mxu0 %v1311
      %1365 = vmatprep.subr.bf16.mxu0 0
      %1366 = vmatpush1.bf16.msra.mxu0 %v1312
      %1367 = vmatprep.subr.bf16.mxu0 0
      %1368 = vmatpush1.bf16.msra.mxu0 %v1313
      %1369 = vmatprep.subr.bf16.mxu0 0
      %1370 = vmatpush1.bf16.msra.mxu0 %v1314
      %1371 = vmatprep.subr.bf16.mxu0 0
      %1372 = vmatpush1.bf16.msra.mxu0 %v1315
      %1373 = vmatprep.subr.bf16.mxu0 0
      %1374 = vmatpush1.bf16.msra.mxu0 %v1316
      %1375 = vmatprep.subr.bf16.mxu0 0
      %1376 = vmatpush1.bf16.msra.mxu0 %v1317
      %1377 = vmatprep.subr.bf16.mxu0 0
      %1378 = vmatpush1.bf16.msra.mxu0 %v1318
      %1379 = vmatprep.subr.bf16.mxu0 0
      %1380 = vmatpush1.bf16.msra.mxu0 %v1319
      %1381 = vmatprep.subr.bf16.mxu0 0
      %1382 = vmatpush1.bf16.msra.mxu0 %v1320
      %1383 = vmatprep.subr.bf16.mxu0 0
      %1384 = vmatpush1.bf16.msra.mxu0 %v1321
      %1385 = vmatprep.subr.bf16.mxu0 0
      %1386 = vmatpush1.bf16.msra.mxu0 %v1322
      %1387 = vmatprep.mubr.bf16.mxu0 %v385
      %1388 = vmatmul.mubr.bf16.gmra.mrb[0].mxu0 %v376
      %v1389 = vpop.f32.mrb[0].mxu0
      %v1390 = vadd.f32 %v1181, %v1389
      %v1391 = vpop.f32.mrb[0].mxu0
      %v1392 = vpop.f32.mrb[0].mxu0
      %v1393 = vadd.f32 %v1184, %v1392
      %v1394 = vpop.f32.mrb[0].mxu0
      %1395 = vmatprep.mubr.bf16.mxu0 %v428
      %1396 = vmatmul.mubr.bf16.gmra.mrb[0].mxu0 %v419
      %v1397 = vpop.f32.mrb[0].mxu0
      %v1398 = vadd.f32 %v1189, %v1397
      %v1399 = vpop.f32.mrb[0].mxu0
      %v1400 = vpop.f32.mrb[0].mxu0
      %v1401 = vadd.f32 %v1192, %v1400
      %v1402 = vpop.f32.mrb[0].mxu0
      %1403 = vmatprep.mubr.bf16.mxu0 %v471
      %1404 = vmatmul.mubr.bf16.gmra.mrb[0].mxu0 %v462
      %v1405 = vpop.f32.mrb[0].mxu0
      %v1406 = vadd.f32 %v1197, %v1405
      %v1407 = vpop.f32.mrb[0].mxu0
      %v1408 = vpop.f32.mrb[0].mxu0
      %v1409 = vadd.f32 %v1200, %v1408
      %v1410 = vpop.f32.mrb[0].mxu0
      %1411 = vmatprep.mubr.bf16.mxu0 %v514
      %1412 = vmatmul.mubr.bf16.gmra.mrb[0].mxu0 %v505
      %v1413 = vpop.f32.mrb[0].mxu0
      %v1414 = vadd.f32 %v1205, %v1413
      %v1415 = vpop.f32.mrb[0].mxu0
      %v1416 = vpop.f32.mrb[0].mxu0
      %v1417 = vadd.f32 %v1208, %v1416
      %v1418 = vpop.f32.mrb[0].mxu0
      %1419 = vdwg.mxu0
      %1420 = vmatprep.subr.bf16.mxu0 0
      %1421 = vmatpush1.bf16.msra.mxu0 %v1323
      %1422 = vmatprep.subr.bf16.mxu0 0
      %1423 = vmatpush1.bf16.msra.mxu0 %v1324
      %1424 = vmatprep.subr.bf16.mxu0 0
      %1425 = vmatpush1.bf16.msra.mxu0 %v1325
      %1426 = vmatprep.subr.bf16.mxu0 0
      %1427 = vmatpush1.bf16.msra.mxu0 %v1326
      %1428 = vmatprep.subr.bf16.mxu0 0
      %1429 = vmatpush1.bf16.msra.mxu0 %v1327
      %1430 = vmatprep.subr.bf16.mxu0 0
      %1431 = vmatpush1.bf16.msra.mxu0 %v1328
      %1432 = vmatprep.subr.bf16.mxu0 0
      %1433 = vmatpush1.bf16.msra.mxu0 %v1329
      %1434 = vmatprep.subr.bf16.mxu0 0
      %1435 = vmatpush1.bf16.msra.mxu0 %v1330
      %1436 = vmatprep.subr.bf16.mxu0 0
      %1437 = vmatpush1.bf16.msra.mxu0 0
      %1438 = vmatprep.subr.bf16.mxu0 0
      %1439 = vmatpush1.bf16.msra.mxu0 0
      %1440 = vmatprep.subr.bf16.mxu0 0
      %1441 = vmatpush1.bf16.msra.mxu0 0
      %1442 = vmatprep.subr.bf16.mxu0 0
      %1443 = vmatpush1.bf16.msra.mxu0 0
      %1444 = vmatprep.subr.bf16.mxu0 0
      %1445 = vmatpush1.bf16.msra.mxu0 0
      %1446 = vmatprep.subr.bf16.mxu0 0
      %1447 = vmatpush1.bf16.msra.mxu0 0
      %1448 = vmatprep.subr.bf16.mxu0 0
      %1449 = vmatpush1.bf16.msra.mxu0 0
      %1450 = vmatprep.subr.bf16.mxu0 0
      %1451 = vmatpush1.bf16.msra.mxu0 0
      %1452 = vmatprep.mubr.bf16.mxu0 0
      %1453 = vmatmul.mubr.bf16.gmra.mrb[0].mxu0 %v402
      %v1454 = vpop.f32.mrb[0].mxu0
      %v1455 = vadd.f32 %v1390, %v1454
      %v1456 = vpop.f32.mrb[0].mxu0
      %v1457 = vpop.f32.mrb[0].mxu0
      %v1458 = vadd.f32 %v1393, %v1457
      %v1459 = vpop.f32.mrb[0].mxu0
      %1460 = vmatprep.mubr.bf16.mxu0 0
      %1461 = vmatmul.mubr.bf16.gmra.mrb[0].mxu0 %v445
      %v1462 = vpop.f32.mrb[0].mxu0
      %v1463 = vadd.f32 %v1398, %v1462
      %v1464 = vpop.f32.mrb[0].mxu0
      %v1465 = vpop.f32.mrb[0].mxu0
      %v1466 = vadd.f32 %v1401, %v1465
      %v1467 = vpop.f32.mrb[0].mxu0
      %1468 = vmatprep.mubr.bf16.mxu0 0
      %1469 = vmatmul.mubr.bf16.gmra.mrb[0].mxu0 %v488
      %v1470 = vpop.f32.mrb[0].mxu0
      %v1471 = vadd.f32 %v1406, %v1470
      %v1472 = vpop.f32.mrb[0].mxu0
      %v1473 = vpop.f32.mrb[0].mxu0
      %v1474 = vadd.f32 %v1409, %v1473
      %v1475 = vpop.f32.mrb[0].mxu0
      %1476 = vmatprep.mubr.bf16.mxu0 0
      %1477 = vmatmul.mubr.bf16.gmra.mrb[0].mxu0 %v531
      %v1478 = vpop.f32.mrb[0].mxu0
      %v1479 = vadd.f32 %v1414, %v1478
      %v1480 = vpop.f32.mrb[0].mxu0
      %v1481 = vpop.f32.mrb[0].mxu0
      %v1482 = vadd.f32 %v1417, %v1481
      %v1483 = vpop.f32.mrb[0].mxu0
      %1484 = vdwg.mxu0
      %s1485 = sadd.s32 %s245, 2
      %s1486 = smul.u32 %s1485, 4
      %s1487 = smul.addr %s1486, 4
      %s1488 = scalar_lea.vmem %s224, %s1487
      %v1489 = vld [vmem:[%s1488] sm:$0x8]
      %v1490 = vld [vmem:[%s1488 + $0x4] sm:$0xf]
      %v1491 = vld [vmem:[%s1488 + $0x8] sm:$0xf]
      %v1492 = vld [vmem:[%s1488 + $0x10] sm:$0x8]
      %v1493 = vld [vmem:[%s1488 + $0x14] sm:$0xf]
      %v1494 = vld [vmem:[%s1488 + $0x18] sm:$0xf]
      %v1495 = vld [vmem:[%s1488 + $0x20] sm:$0x8]
      %v1496 = vld [vmem:[%s1488 + $0x24] sm:$0xf]
      %v1497 = vld [vmem:[%s1488 + $0x28] sm:$0xf]
      %v1498 = vld [vmem:[%s1488 + $0x30] sm:$0x8]
      %v1499 = vld [vmem:[%s1488 + $0x34] sm:$0xf]
      %v1500 = vld [vmem:[%s1488 + $0x38] sm:$0xf]
      %v1501 = vld [vmem:[%s1488 + $0xc] sm:$0x1]
      %v1502 = vld [vmem:[%s1488 + $0x1c] sm:$0x1]
      %v1503 = vld [vmem:[%s1488 + $0x2c] sm:$0x1]
      %v1504 = vld [vmem:[%s1488 + $0x3c] sm:$0x1]
      %v1517 = vunpack.c.l.b16 %v1489
      %v1518 = vunpack.c.l.b16 %v1490
      %v1519 = vunpack.c.l.b16 %v1491
      %v1520 = vunpack.c.l.b16 %v1492
      %v1521 = vunpack.c.l.b16 %v1493
      %v1522 = vunpack.c.l.b16 %v1494
      %v1523 = vunpack.c.l.b16 %v1495
      %v1524 = vunpack.c.l.b16 %v1496
      %v1525 = vunpack.c.l.b16 %v1497
      %v1526 = vunpack.c.l.b16 %v1498
      %v1527 = vunpack.c.l.b16 %v1499
      %v1528 = vunpack.c.l.b16 %v1500
      %v1529 = vpack.c.b16 %v1518, %v1517
      %v1530 = vpack.c.b16 %v1519, %v1519
      %v1531 = vpack.c.b16 %v1521, %v1520
      %v1532 = vpack.c.b16 %v1522, %v1522
      %v1533 = vpack.c.b16 %v1524, %v1523
      %v1534 = vpack.c.b16 %v1525, %v1525
      %v1535 = vpack.c.b16 %v1527, %v1526
      %v1536 = vpack.c.b16 %v1528, %v1528
      %v1537 = vpack.c.b16 %v1519, %v1518
      %v1538 = vpack.c.b16 %v1522, %v1521
      %v1539 = vpack.c.b16 %v1525, %v1524
      %v1540 = vpack.c.b16 %v1528, %v1527
      %v1542 = vshrl.u32 %v1537, 16
      %v1544 = vrot.slane %v1542, 4
      %v1545 = vshll.u32 %v1537, 16
      %v1547 = vrot.slane %v1545, 5
      %v1548 = vor.u32 %v1544, %v1547
      %v1550 = vshrl.u32 %v1538, 16
      %v1552 = vrot.slane %v1550, 4
      %v1553 = vshll.u32 %v1538, 16
      %v1555 = vrot.slane %v1553, 5
      %v1556 = vor.u32 %v1552, %v1555
      %v1558 = vshrl.u32 %v1539, 16
      %v1560 = vrot.slane %v1558, 4
      %v1561 = vshll.u32 %v1539, 16
      %v1563 = vrot.slane %v1561, 5
      %v1564 = vor.u32 %v1560, %v1563
      %v1566 = vshrl.u32 %v1540, 16
      %v1568 = vrot.slane %v1566, 4
      %v1569 = vshll.u32 %v1540, 16
      %v1571 = vrot.slane %v1569, 5
      %v1572 = vor.u32 %v1568, %v1571
      %v1577 = vunpack.c.l.b16 %v1501
      %v1578 = vunpack.c.l.b16 %v1502
      %v1579 = vunpack.c.l.b16 %v1503
      %v1580 = vunpack.c.l.b16 %v1504
      %v1581 = vpack.c.b16 %v1577, %v1577
      %v1582 = vpack.c.b16 %v1578, %v1578
      %v1583 = vpack.c.b16 %v1579, %v1579
      %v1584 = vpack.c.b16 %v1580, %v1580
      %v1585 = vrot.slane %v1537, 5
      %v1586 = vrot.slane %v1581, 5
      %v1587 = vsel %vm346, %v1585, %v1586
      %v1588 = vrot.slane %v1538, 5
      %v1589 = vrot.slane %v1582, 5
      %v1590 = vsel %vm346, %v1588, %v1589
      %v1591 = vrot.slane %v1539, 5
      %v1592 = vrot.slane %v1583, 5
      %v1593 = vsel %vm346, %v1591, %v1592
      %v1594 = vrot.slane %v1540, 5
      %v1595 = vrot.slane %v1584, 5
      %v1596 = vsel %vm346, %v1594, %v1595
      %v1598 = vshrl.u32 %v1529, 16
      %v1600 = vrot.slane %v1598, 3
      %v1601 = vshll.u32 %v1529, 16
      %v1603 = vrot.slane %v1601, 4
      %v1604 = vor.u32 %v1600, %v1603
      %v1606 = vshrl.u32 %v1530, 16
      %v1608 = vrot.slane %v1606, 3
      %v1609 = vshll.u32 %v1530, 16
      %v1611 = vrot.slane %v1609, 4
      %v1612 = vor.u32 %v1608, %v1611
      %v1613 = vsel %vm359, %v1604, %v1612
      %v1615 = vshrl.u32 %v1548, 16
      %v1617 = vrot.slane %v1615, 3
      %v1618 = vshll.u32 %v1548, 16
      %v1620 = vrot.slane %v1618, 4
      %v1621 = vor.u32 %v1617, %v1620
      %v1622 = vsel %vm359, %v1621, %v1621
      %v1624 = vshrl.u32 %v1585, 16
      %v1626 = vrot.slane %v1624, 3
      %v1627 = vshll.u32 %v1585, 16
      %v1629 = vrot.slane %v1627, 4
      %v1630 = vor.u32 %v1626, %v1629
      %v1632 = vshrl.u32 %v1587, 16
      %v1634 = vrot.slane %v1632, 3
      %v1635 = vshll.u32 %v1587, 16
      %v1637 = vrot.slane %v1635, 4
      %v1638 = vor.u32 %v1634, %v1637
      %v1639 = vsel %vm359, %v1630, %v1638
      %v1641 = vshrl.u32 %v1531, 16
      %v1643 = vrot.slane %v1641, 3
      %v1644 = vshll.u32 %v1531, 16
      %v1646 = vrot.slane %v1644, 4
      %v1647 = vor.u32 %v1643, %v1646
      %v1649 = vshrl.u32 %v1532, 16
      %v1651 = vrot.slane %v1649, 3
      %v1652 = vshll.u32 %v1532, 16
      %v1654 = vrot.slane %v1652, 4
      %v1655 = vor.u32 %v1651, %v1654
      %v1656 = vsel %vm359, %v1647, %v1655
      %v1658 = vshrl.u32 %v1556, 16
      %v1660 = vrot.slane %v1658, 3
      %v1661 = vshll.u32 %v1556, 16
      %v1663 = vrot.slane %v1661, 4
      %v1664 = vor.u32 %v1660, %v1663
      %v1665 = vsel %vm359, %v1664, %v1664
      %v1667 = vshrl.u32 %v1588, 16
      %v1669 = vrot.slane %v1667, 3
      %v1670 = vshll.u32 %v1588, 16
      %v1672 = vrot.slane %v1670, 4
      %v1673 = vor.u32 %v1669, %v1672
      %v1675 = vshrl.u32 %v1590, 16
      %v1677 = vrot.slane %v1675, 3
      %v1678 = vshll.u32 %v1590, 16
      %v1680 = vrot.slane %v1678, 4
      %v1681 = vor.u32 %v1677, %v1680
      %v1682 = vsel %vm359, %v1673, %v1681
      %v1684 = vshrl.u32 %v1533, 16
      %v1686 = vrot.slane %v1684, 3
      %v1687 = vshll.u32 %v1533, 16
      %v1689 = vrot.slane %v1687, 4
      %v1690 = vor.u32 %v1686, %v1689
      %v1692 = vshrl.u32 %v1534, 16
      %v1694 = vrot.slane %v1692, 3
      %v1695 = vshll.u32 %v1534, 16
      %v1697 = vrot.slane %v1695, 4
      %v1698 = vor.u32 %v1694, %v1697
      %v1699 = vsel %vm359, %v1690, %v1698
      %v1701 = vshrl.u32 %v1564, 16
      %v1703 = vrot.slane %v1701, 3
      %v1704 = vshll.u32 %v1564, 16
      %v1706 = vrot.slane %v1704, 4
      %v1707 = vor.u32 %v1703, %v1706
      %v1708 = vsel %vm359, %v1707, %v1707
      %v1710 = vshrl.u32 %v1591, 16
      %v1712 = vrot.slane %v1710, 3
      %v1713 = vshll.u32 %v1591, 16
      %v1715 = vrot.slane %v1713, 4
      %v1716 = vor.u32 %v1712, %v1715
      %v1718 = vshrl.u32 %v1593, 16
      %v1720 = vrot.slane %v1718, 3
      %v1721 = vshll.u32 %v1593, 16
      %v1723 = vrot.slane %v1721, 4
      %v1724 = vor.u32 %v1720, %v1723
      %v1725 = vsel %vm359, %v1716, %v1724
      %v1727 = vshrl.u32 %v1535, 16
      %v1729 = vrot.slane %v1727, 3
      %v1730 = vshll.u32 %v1535, 16
      %v1732 = vrot.slane %v1730, 4
      %v1733 = vor.u32 %v1729, %v1732
      %v1735 = vshrl.u32 %v1536, 16
      %v1737 = vrot.slane %v1735, 3
      %v1738 = vshll.u32 %v1536, 16
      %v1740 = vrot.slane %v1738, 4
      %v1741 = vor.u32 %v1737, %v1740
      %v1742 = vsel %vm359, %v1733, %v1741
      %v1744 = vshrl.u32 %v1572, 16
      %v1746 = vrot.slane %v1744, 3
      %v1747 = vshll.u32 %v1572, 16
      %v1749 = vrot.slane %v1747, 4
      %v1750 = vor.u32 %v1746, %v1749
      %v1751 = vsel %vm359, %v1750, %v1750
      %v1753 = vshrl.u32 %v1594, 16
      %v1755 = vrot.slane %v1753, 3
      %v1756 = vshll.u32 %v1594, 16
      %v1758 = vrot.slane %v1756, 4
      %v1759 = vor.u32 %v1755, %v1758
      %v1761 = vshrl.u32 %v1596, 16
      %v1763 = vrot.slane %v1761, 3
      %v1764 = vshll.u32 %v1596, 16
      %v1766 = vrot.slane %v1764, 4
      %v1767 = vor.u32 %v1763, %v1766
      %v1768 = vsel %vm359, %v1759, %v1767
      %s1781 = scalar_lea.vmem %s1, 384
      %v1782 = vld [vmem:[%s1781] sm:$0xf]
      %v1783 = vld [vmem:[%s1781 + $0x4] sm:$0xf]
      %v1784 = vld [vmem:[%s1781 + $0x8] sm:$0xf]
      %v1785 = vld [vmem:[%s1781 + $0xc] sm:$0xf]
      %v1786 = vld [vmem:[%s1781 + $0x10] sm:$0xf]
      %v1787 = vld [vmem:[%s1781 + $0x14] sm:$0xf]
      %v1788 = vld [vmem:[%s1781 + $0x18] sm:$0xf]
      %v1789 = vld [vmem:[%s1781 + $0x1c] sm:$0xf]
      %v1790 = vld [vmem:[%s1781 + $0x20] sm:$0xf]
      %v1791 = vld [vmem:[%s1781 + $0x24] sm:$0xf]
      %v1792 = vld [vmem:[%s1781 + $0x28] sm:$0xf]
      %v1793 = vld [vmem:[%s1781 + $0x2c] sm:$0xf]
      %v1794 = vld [vmem:[%s1781 + $0x30] sm:$0xf]
      %v1795 = vld [vmem:[%s1781 + $0x34] sm:$0xf]
      %v1796 = vld [vmem:[%s1781 + $0x38] sm:$0xf]
      %v1797 = vld [vmem:[%s1781 + $0x3c] sm:$0xf]
      %v1798 = vld [vmem:[%s1781 + $0x40] sm:$0xf]
      %v1799 = vld [vmem:[%s1781 + $0x44] sm:$0xf]
      %v1800 = vld [vmem:[%s1781 + $0x48] sm:$0xf]
      %v1801 = vld [vmem:[%s1781 + $0x4c] sm:$0xf]
      %v1802 = vld [vmem:[%s1781 + $0x50] sm:$0xf]
      %v1803 = vld [vmem:[%s1781 + $0x54] sm:$0xf]
      %v1804 = vld [vmem:[%s1781 + $0x58] sm:$0xf]
      %v1805 = vld [vmem:[%s1781 + $0x5c] sm:$0xf]
      %v1806 = vld [vmem:[%s1781 + $0x60] sm:$0xf]
      %v1807 = vld [vmem:[%s1781 + $0x64] sm:$0xf]
      %v1808 = vld [vmem:[%s1781 + $0x68] sm:$0xf]
      %v1809 = vld [vmem:[%s1781 + $0x6c] sm:$0xf]
      %v1810 = vld [vmem:[%s1781 + $0x70] sm:$0xf]
      %v1811 = vld [vmem:[%s1781 + $0x74] sm:$0xf]
      %v1812 = vld [vmem:[%s1781 + $0x78] sm:$0xf]
      %v1813 = vld [vmem:[%s1781 + $0x7c] sm:$0xf]
      %v1814 = vld [vmem:[%s1781 + $0x80] sm:$0xf]
      %v1815 = vld [vmem:[%s1781 + $0x84] sm:$0xf]
      %v1816 = vld [vmem:[%s1781 + $0x88] sm:$0xf]
      %v1817 = vld [vmem:[%s1781 + $0x8c] sm:$0xf]
      %v1818 = vld [vmem:[%s1781 + $0x90] sm:$0xf]
      %v1819 = vld [vmem:[%s1781 + $0x94] sm:$0xf]
      %v1820 = vld [vmem:[%s1781 + $0x98] sm:$0xf]
      %v1821 = vld [vmem:[%s1781 + $0x9c] sm:$0xf]
      %v1822 = vld [vmem:[%s1781 + $0xa0] sm:$0xf]
      %v1823 = vld [vmem:[%s1781 + $0xa4] sm:$0xf]
      %v1824 = vld [vmem:[%s1781 + $0xa8] sm:$0xf]
      %v1825 = vld [vmem:[%s1781 + $0xac] sm:$0xf]
      %v1826 = vld [vmem:[%s1781 + $0xb0] sm:$0xf]
      %v1827 = vld [vmem:[%s1781 + $0xb4] sm:$0xf]
      %v1828 = vld [vmem:[%s1781 + $0xb8] sm:$0xf]
      %v1829 = vld [vmem:[%s1781 + $0xbc] sm:$0xf]
      %v1878 = vunpack.c.l.b16 %v1782
      %v1879 = vunpack.c.l.b16 %v1783
      %v1880 = vunpack.c.l.b16 %v1784
      %v1881 = vunpack.c.l.b16 %v1785
      %v1882 = vunpack.c.l.b16 %v1786
      %v1883 = vunpack.c.l.b16 %v1787
      %v1884 = vunpack.c.l.b16 %v1788
      %v1885 = vunpack.c.l.b16 %v1789
      %v1886 = vunpack.c.l.b16 %v1790
      %v1887 = vunpack.c.l.b16 %v1791
      %v1888 = vunpack.c.l.b16 %v1792
      %v1889 = vunpack.c.l.b16 %v1793
      %v1890 = vunpack.c.l.b16 %v1794
      %v1891 = vunpack.c.l.b16 %v1795
      %v1892 = vunpack.c.l.b16 %v1796
      %v1893 = vunpack.c.l.b16 %v1797
      %v1894 = vunpack.c.l.b16 %v1798
      %v1895 = vunpack.c.l.b16 %v1799
      %v1896 = vunpack.c.l.b16 %v1800
      %v1897 = vunpack.c.l.b16 %v1801
      %v1898 = vunpack.c.l.b16 %v1802
      %v1899 = vunpack.c.l.b16 %v1803
      %v1900 = vunpack.c.l.b16 %v1804
      %v1901 = vunpack.c.l.b16 %v1805
      %v1902 = vunpack.c.l.b16 %v1806
      %v1903 = vunpack.c.l.b16 %v1807
      %v1904 = vunpack.c.l.b16 %v1808
      %v1905 = vunpack.c.l.b16 %v1809
      %v1906 = vunpack.c.l.b16 %v1810
      %v1907 = vunpack.c.l.b16 %v1811
      %v1908 = vunpack.c.l.b16 %v1812
      %v1909 = vunpack.c.l.b16 %v1813
      %v1910 = vunpack.c.l.b16 %v1814
      %v1911 = vunpack.c.l.b16 %v1815
      %v1912 = vunpack.c.l.b16 %v1816
      %v1913 = vunpack.c.l.b16 %v1817
      %v1914 = vunpack.c.l.b16 %v1818
      %v1915 = vunpack.c.l.b16 %v1819
      %v1916 = vunpack.c.l.b16 %v1820
      %v1917 = vunpack.c.l.b16 %v1821
      %v1918 = vunpack.c.l.b16 %v1822
      %v1919 = vunpack.c.l.b16 %v1823
      %v1920 = vunpack.c.l.b16 %v1824
      %v1921 = vunpack.c.l.b16 %v1825
      %v1922 = vunpack.c.l.b16 %v1826
      %v1923 = vunpack.c.l.b16 %v1827
      %v1924 = vunpack.c.l.b16 %v1828
      %v1925 = vunpack.c.l.b16 %v1829
      %v1926 = vpack.c.b16 %v1879, %v1878
      %v1927 = vpack.c.b16 %v1881, %v1880
      %v1928 = vpack.c.b16 %v1883, %v1882
      %v1929 = vpack.c.b16 %v1885, %v1884
      %v1930 = vpack.c.b16 %v1887, %v1886
      %v1931 = vpack.c.b16 %v1889, %v1888
      %v1932 = vpack.c.b16 %v1891, %v1890
      %v1933 = vpack.c.b16 %v1893, %v1892
      %v1934 = vpack.c.b16 %v1895, %v1894
      %v1935 = vpack.c.b16 %v1897, %v1896
      %v1936 = vpack.c.b16 %v1899, %v1898
      %v1937 = vpack.c.b16 %v1901, %v1900
      %v1938 = vpack.c.b16 %v1903, %v1902
      %v1939 = vpack.c.b16 %v1905, %v1904
      %v1940 = vpack.c.b16 %v1907, %v1906
      %v1941 = vpack.c.b16 %v1909, %v1908
      %v1942 = vpack.c.b16 %v1911, %v1910
      %v1943 = vpack.c.b16 %v1913, %v1912
      %v1944 = vpack.c.b16 %v1915, %v1914
      %v1945 = vpack.c.b16 %v1917, %v1916
      %v1946 = vpack.c.b16 %v1919, %v1918
      %v1947 = vpack.c.b16 %v1921, %v1920
      %v1948 = vpack.c.b16 %v1923, %v1922
      %v1949 = vpack.c.b16 %v1925, %v1924
      %1974 = vmatprep.subr.bf16.mxu0 0
      %1975 = vmatpush1.bf16.msra.mxu0 %v1926
      %1976 = vmatprep.subr.bf16.mxu0 0
      %1977 = vmatpush1.bf16.msra.mxu0 %v1927
      %1978 = vmatprep.subr.bf16.mxu0 0
      %1979 = vmatpush1.bf16.msra.mxu0 %v1928
      %1980 = vmatprep.subr.bf16.mxu0 0
      %1981 = vmatpush1.bf16.msra.mxu0 %v1929
      %1982 = vmatprep.subr.bf16.mxu0 0
      %1983 = vmatpush1.bf16.msra.mxu0 %v1930
      %1984 = vmatprep.subr.bf16.mxu0 0
      %1985 = vmatpush1.bf16.msra.mxu0 %v1931
      %1986 = vmatprep.subr.bf16.mxu0 0
      %1987 = vmatpush1.bf16.msra.mxu0 %v1932
      %1988 = vmatprep.subr.bf16.mxu0 0
      %1989 = vmatpush1.bf16.msra.mxu0 %v1933
      %1990 = vmatprep.subr.bf16.mxu0 0
      %1991 = vmatpush1.bf16.msra.mxu0 %v1934
      %1992 = vmatprep.subr.bf16.mxu0 0
      %1993 = vmatpush1.bf16.msra.mxu0 %v1935
      %1994 = vmatprep.subr.bf16.mxu0 0
      %1995 = vmatpush1.bf16.msra.mxu0 %v1936
      %1996 = vmatprep.subr.bf16.mxu0 0
      %1997 = vmatpush1.bf16.msra.mxu0 %v1937
      %1998 = vmatprep.subr.bf16.mxu0 0
      %1999 = vmatpush1.bf16.msra.mxu0 %v1938
      %2000 = vmatprep.subr.bf16.mxu0 0
      %2001 = vmatpush1.bf16.msra.mxu0 %v1939
      %2002 = vmatprep.subr.bf16.mxu0 0
      %2003 = vmatpush1.bf16.msra.mxu0 %v1940
      %2004 = vmatprep.subr.bf16.mxu0 0
      %2005 = vmatpush1.bf16.msra.mxu0 %v1941
      %2006 = vmatprep.mubr.bf16.mxu0 %v1622
      %2007 = vmatmul.mubr.bf16.gmra.mrb[0].mxu0 %v1613
      %v2008 = vpop.f32.mrb[0].mxu0
      %v2009 = vadd.f32 0.0, %v2008
      %v2010 = vpop.f32.mrb[0].mxu0
      %v2011 = vpop.f32.mrb[0].mxu0
      %v2012 = vadd.f32 0.0, %v2011
      %v2013 = vpop.f32.mrb[0].mxu0
      %2014 = vmatprep.mubr.bf16.mxu0 %v1665
      %2015 = vmatmul.mubr.bf16.gmra.mrb[0].mxu0 %v1656
      %v2016 = vpop.f32.mrb[0].mxu0
      %v2017 = vadd.f32 0.0, %v2016
      %v2018 = vpop.f32.mrb[0].mxu0
      %v2019 = vpop.f32.mrb[0].mxu0
      %v2020 = vadd.f32 0.0, %v2019
      %v2021 = vpop.f32.mrb[0].mxu0
      %2022 = vmatprep.mubr.bf16.mxu0 %v1708
      %2023 = vmatmul.mubr.bf16.gmra.mrb[0].mxu0 %v1699
      %v2024 = vpop.f32.mrb[0].mxu0
      %v2025 = vadd.f32 0.0, %v2024
      %v2026 = vpop.f32.mrb[0].mxu0
      %v2027 = vpop.f32.mrb[0].mxu0
      %v2028 = vadd.f32 0.0, %v2027
      %v2029 = vpop.f32.mrb[0].mxu0
      %2030 = vmatprep.mubr.bf16.mxu0 %v1751
      %2031 = vmatmul.mubr.bf16.gmra.mrb[0].mxu0 %v1742
      %v2032 = vpop.f32.mrb[0].mxu0
      %v2033 = vadd.f32 0.0, %v2032
      %v2034 = vpop.f32.mrb[0].mxu0
      %v2035 = vpop.f32.mrb[0].mxu0
      %v2036 = vadd.f32 0.0, %v2035
      %v2037 = vpop.f32.mrb[0].mxu0
      %2038 = vdwg.mxu0
      %2039 = vmatprep.subr.bf16.mxu0 0
      %2040 = vmatpush1.bf16.msra.mxu0 %v1942
      %2041 = vmatprep.subr.bf16.mxu0 0
      %2042 = vmatpush1.bf16.msra.mxu0 %v1943
      %2043 = vmatprep.subr.bf16.mxu0 0
      %2044 = vmatpush1.bf16.msra.mxu0 %v1944
      %2045 = vmatprep.subr.bf16.mxu0 0
      %2046 = vmatpush1.bf16.msra.mxu0 %v1945
      %2047 = vmatprep.subr.bf16.mxu0 0
      %2048 = vmatpush1.bf16.msra.mxu0 %v1946
      %2049 = vmatprep.subr.bf16.mxu0 0
      %2050 = vmatpush1.bf16.msra.mxu0 %v1947
      %2051 = vmatprep.subr.bf16.mxu0 0
      %2052 = vmatpush1.bf16.msra.mxu0 %v1948
      %2053 = vmatprep.subr.bf16.mxu0 0
      %2054 = vmatpush1.bf16.msra.mxu0 %v1949
      %2055 = vmatprep.subr.bf16.mxu0 0
      %2056 = vmatpush1.bf16.msra.mxu0 0
      %2057 = vmatprep.subr.bf16.mxu0 0
      %2058 = vmatpush1.bf16.msra.mxu0 0
      %2059 = vmatprep.subr.bf16.mxu0 0
      %2060 = vmatpush1.bf16.msra.mxu0 0
      %2061 = vmatprep.subr.bf16.mxu0 0
      %2062 = vmatpush1.bf16.msra.mxu0 0
      %2063 = vmatprep.subr.bf16.mxu0 0
      %2064 = vmatpush1.bf16.msra.mxu0 0
      %2065 = vmatprep.subr.bf16.mxu0 0
      %2066 = vmatpush1.bf16.msra.mxu0 0
      %2067 = vmatprep.subr.bf16.mxu0 0
      %2068 = vmatpush1.bf16.msra.mxu0 0
      %2069 = vmatprep.subr.bf16.mxu0 0
      %2070 = vmatpush1.bf16.msra.mxu0 0
      %2071 = vmatprep.mubr.bf16.mxu0 0
      %2072 = vmatmul.mubr.bf16.gmra.mrb[0].mxu0 %v1639
      %v2073 = vpop.f32.mrb[0].mxu0
      %v2074 = vadd.f32 %v2009, %v2073
      %v2075 = vpop.f32.mrb[0].mxu0
      %v2076 = vpop.f32.mrb[0].mxu0
      %v2077 = vadd.f32 %v2012, %v2076
      %v2078 = vpop.f32.mrb[0].mxu0
      %2079 = vmatprep.mubr.bf16.mxu0 0
      %2080 = vmatmul.mubr.bf16.gmra.mrb[0].mxu0 %v1682
      %v2081 = vpop.f32.mrb[0].mxu0
      %v2082 = vadd.f32 %v2017, %v2081
      %v2083 = vpop.f32.mrb[0].mxu0
      %v2084 = vpop.f32.mrb[0].mxu0
      %v2085 = vadd.f32 %v2020, %v2084
      %v2086 = vpop.f32.mrb[0].mxu0
      %2087 = vmatprep.mubr.bf16.mxu0 0
      %2088 = vmatmul.mubr.bf16.gmra.mrb[0].mxu0 %v1725
      %v2089 = vpop.f32.mrb[0].mxu0
      %v2090 = vadd.f32 %v2025, %v2089
      %v2091 = vpop.f32.mrb[0].mxu0
      %v2092 = vpop.f32.mrb[0].mxu0
      %v2093 = vadd.f32 %v2028, %v2092
      %v2094 = vpop.f32.mrb[0].mxu0
      %2095 = vmatprep.mubr.bf16.mxu0 0
      %2096 = vmatmul.mubr.bf16.gmra.mrb[0].mxu0 %v1768
      %v2097 = vpop.f32.mrb[0].mxu0
      %v2098 = vadd.f32 %v2033, %v2097
      %v2099 = vpop.f32.mrb[0].mxu0
      %v2100 = vpop.f32.mrb[0].mxu0
      %v2101 = vadd.f32 %v2036, %v2100
      %v2102 = vpop.f32.mrb[0].mxu0
      %2103 = vdwg.mxu0
      %v2104 = vadd.f32 %v1455, %v2074
      %v2105 = vadd.f32 %v1458, %v2077
      %v2106 = vadd.f32 %v1463, %v2082
      %v2107 = vadd.f32 %v1466, %v2085
      %v2108 = vadd.f32 %v1471, %v2090
      %v2109 = vadd.f32 %v1474, %v2093
      %v2110 = vadd.f32 %v1479, %v2098
      %v2111 = vadd.f32 %v1482, %v2101
      %v2113 = vlaneseq
      %v2114 = vshrl.u32 %v2113, 7
      %v2115 = vsub.s32 0, %v2114
      %v2116 = vrot.slane %v246, %v2115
      %v2118 = vadd.f32 %v2104, %v2116
      %v2119 = vadd.f32 %v2105, %v2116
      %v2120 = vadd.f32 %v2106, %v2116
      %v2121 = vadd.f32 %v2107, %v2116
      %v2122 = vadd.f32 %v2108, %v2116
      %v2123 = vadd.f32 %v2109, %v2116
      %v2124 = vadd.f32 %v2110, %v2116
      %v2125 = vadd.f32 %v2111, %v2116
      %v2126 = vpack.c.bf16 %v2119, %v2118
      %v2127 = vpack.c.bf16 %v2121, %v2120
      %v2128 = vpack.c.bf16 %v2123, %v2122
      %v2129 = vpack.c.bf16 %v2125, %v2124
      %v2134 = vunpack.c.l.b16 %v2126
      %v2135 = vunpack.c.h.b16 %v2126
      %v2136 = vunpack.c.l.b16 %v2127
      %v2137 = vunpack.c.h.b16 %v2127
      %v2138 = vunpack.c.l.b16 %v2128
      %v2139 = vunpack.c.h.b16 %v2128
      %v2140 = vunpack.c.l.b16 %v2129
      %v2141 = vunpack.c.h.b16 %v2129
      %v2142 = vpack.c.b16 %v2134, %v2134
      %v2143 = vpack.c.b16 %v2135, %v2135
      %v2144 = vpack.c.b16 %v2136, %v2136
      %v2145 = vpack.c.b16 %v2137, %v2137
      %v2146 = vpack.c.b16 %v2138, %v2138
      %v2147 = vpack.c.b16 %v2139, %v2139
      %v2148 = vpack.c.b16 %v2140, %v2140
      %v2149 = vpack.c.b16 %v2141, %v2141
      %2158 = vst [vmem:[%s234] sm:$0xf] %v2142
      %2159 = vst [vmem:[%s234 + $0x4] sm:$0xf] %v2143
      %2160 = vst [vmem:[%s234 + $0x8] sm:$0xf] %v2144
      %2161 = vst [vmem:[%s234 + $0xc] sm:$0xf] %v2145
      %2162 = vst [vmem:[%s234 + $0x10] sm:$0xf] %v2146
      %2163 = vst [vmem:[%s234 + $0x14] sm:$0xf] %v2147
      %2164 = vst [vmem:[%s234 + $0x18] sm:$0xf] %v2148
      %2165 = vst [vmem:[%s234 + $0x1c] sm:$0xf] %v2149
      %v2166 = vadd.f32 %v2118, %v2119
      %v2167 = vadd.f32 %v2166, %v2120
      %v2168 = vadd.f32 %v2167, %v2121
      %v2169 = vadd.f32 %v2168, %v2122
      %v2170 = vadd.f32 %v2169, %v2123
      %v2171 = vadd.f32 %v2170, %v2124
      %v2172 = vadd.f32 %v2171, %v2125
      %v2173 = vrot.slane %v2172, 4
      %v2174 = vadd.f32 %v2172, %v2173
      %v2175 = vrot.slane %v2174, 2
      %v2176 = vadd.f32 %v2174, %v2175
      %v2177 = vrot.slane %v2176, 1
      %v2178 = vadd.f32 %v2176, %v2177
      %v2179 = vmul.f32 %v2178, 0.015625
      %v2180 = vsub.f32 %v2118, %v2179
      %v2181 = vsub.f32 %v2119, %v2179
      %v2182 = vsub.f32 %v2120, %v2179
      %v2183 = vsub.f32 %v2121, %v2179
      %v2184 = vsub.f32 %v2122, %v2179
      %v2185 = vsub.f32 %v2123, %v2179
      %v2186 = vsub.f32 %v2124, %v2179
      %v2187 = vsub.f32 %v2125, %v2179
      %v2188 = vmul.f32 %v2180, %v2180
      %v2189 = vmul.f32 %v2181, %v2181
      %v2190 = vmul.f32 %v2182, %v2182
      %v2191 = vmul.f32 %v2183, %v2183
      %v2192 = vmul.f32 %v2184, %v2184
      %v2193 = vmul.f32 %v2185, %v2185
      %v2194 = vmul.f32 %v2186, %v2186
      %v2195 = vmul.f32 %v2187, %v2187
      %v2196 = vadd.f32 %v2188, %v2189
      %v2197 = vadd.f32 %v2196, %v2190
      %v2198 = vadd.f32 %v2197, %v2191
      %v2199 = vadd.f32 %v2198, %v2192
      %v2200 = vadd.f32 %v2199, %v2193
      %v2201 = vadd.f32 %v2200, %v2194
      %v2202 = vadd.f32 %v2201, %v2195
      %v2203 = vrot.slane %v2202, 4
      %v2204 = vadd.f32 %v2202, %v2203
      %v2205 = vrot.slane %v2204, 2
      %v2206 = vadd.f32 %v2204, %v2205
      %v2207 = vrot.slane %v2206, 1
      %v2208 = vadd.f32 %v2206, %v2207
      %vm2209 = vcmask 1040384
      %v2210 = vsel %vm2209, %v2179, %v2208
      %2211 = vst [vmem:[%s243] sm:$0x3] %v2210
      %s2212 = smul.u32 4, %s21
      %p2213 = scmp.lt.s32.totalorder %s20, 1
      %s2214 = scalar_select %p2213, %s20, 1
      %p2215 = scmp.lt.s32.totalorder %s2212, 15
      %s2216 = scalar_select %p2215, %s2212, 15
      %s2217 = smul.addr %s2216, 2
      %s2218 = smul.addr %s2214, 32
      %s2219 = sadd.s32 %s2217, %s2218
      %s2220 = smul.addr %s2219, 4
      %s2221 = scalar_lea.vmem %s3, %s2220
      %p2222 = scmp.lt.s32.totalorder %s20, 1
      %s2223 = scalar_select %p2222, %s20, 1
      %p2224 = scmp.lt.s32.totalorder %s21, 3
      %s2225 = scalar_select %p2224, %s21, 3
      %s2226 = smul.addr %s2223, 4
      %s2227 = sadd.s32 %s2225, %s2226
      %s2228 = smul.addr %s2227, 2
      %s2229 = scalar_lea.vmem %s4, %s2228
      // Predicated region
      $region33: #{residual_block_forward.3} parent=31 // pred_check
        %p2230 = pneg %p116
      $region34: #{residual_block_forward.3} parent=31 // pred_check_branch
        %2232 = sbr.rel (%p2230) target = $region36
      $region35: #{residual_block_forward.3} parent=31 // pred_region
        %s2233 = smul.u32 4, %s21
      $region36: #{residual_block_forward.3} parent=31 // pred_fallthru
        _
      // Predicated region
      $region37: #{residual_block_forward.3} parent=31 // pred_check
        %p2234 = pneg %p144
      $region38: #{residual_block_forward.3} parent=31 // pred_check_branch
        %2236 = sbr.rel (%p2234) target = $region40
      $region39: #{residual_block_forward.3} parent=31 // pred_region
        _
      $region40: #{residual_block_forward.3} parent=31 // pred_fallthru
        _
    $region32: #{residual_block_forward.3} parent=5 // pred_fallthru
      _
    %p2237 = scmp.le.s32.totalorder 2, %s11
    // Predicated region
    $region41: #{residual_block_forward.3} parent=5 // pred_check
      %p2238 = pneg %p2237
    $region42: #{residual_block_forward.3} parent=5 // pred_check_branch
      %2240 = sbr.rel (%p2238) target = $region44
    $region43: #{residual_block_forward.3} parent=5 // pred_region
      %s2241 = ssub.s32 %s11, 2
      // Predicated region
      $region45: #{residual_block_forward.3} parent=43 // pred_check
        %p2242 = pneg %p122
      $region46: #{residual_block_forward.3} parent=43 // pred_check_branch
        %2244 = sbr.rel (%p2242) target = $region48
      $region47: #{residual_block_forward.3} parent=43 // pred_region
        %s2245 = smul.u32 4, %s23
        %p2246 = scmp.lt.s32.totalorder %s22, 1
        %s2247 = scalar_select %p2246, %s22, 1
        %p2248 = scmp.lt.s32.totalorder %s2245, 15
        %s2249 = scalar_select %p2248, %s2245, 15
        %s2250 = smul.addr %s2249, 2
        %s2251 = smul.addr %s2247, 32
        %s2252 = sadd.s32 %s2250, %s2251
        %s2253 = smul.addr %s2252, 4
        %s2254 = scalar_lea.vmem %s3, %s2253
      $region48: #{residual_block_forward.3} parent=43 // pred_fallthru
        _
      // Predicated region
      $region49: #{residual_block_forward.3} parent=43 // pred_check
        %p2255 = pneg %p150
      $region50: #{residual_block_forward.3} parent=43 // pred_check_branch
        %2257 = sbr.rel (%p2255) target = $region52
      $region51: #{residual_block_forward.3} parent=43 // pred_region
        %p2258 = scmp.lt.s32.totalorder %s22, 1
        %s2259 = scalar_select %p2258, %s22, 1
        %p2260 = scmp.lt.s32.totalorder %s23, 3
        %s2261 = scalar_select %p2260, %s23, 3
        %s2262 = smul.addr %s2259, 4
        %s2263 = sadd.s32 %s2261, %s2262
        %s2264 = smul.addr %s2263, 2
        %s2265 = scalar_lea.vmem %s4, %s2264
      $region52: #{residual_block_forward.3} parent=43 // pred_fallthru
        _
    $region44: #{residual_block_forward.3} parent=5 // pred_fallthru
      _
  $region6: #{residual_block_forward.3} parent=0 // loop_footer
    %s15 = sadd.s32 1, %s11
  $region7: #{residual_block_forward.3} parent=0 // loop_footer_branch
    %10 = sbr.rel target = $region3
  $region8: #{residual_block_forward.3} parent=0 // loop_exit
    _

// kernel: residual_block_forward.4
$region0: #{residual_block_forward.4}
  #allocation0 [shape = 'u32[]', space=smem, size = 0x4, offset = 0x4, fixed_abs, tag = 'smem constant byte address 0x4 - core index']
  #allocation1 [shape = 'u32[144,128]{1,0:T(1,128)}', space=vmem, size = 0x12000, scoped, tag = 'internal scratch']
  #allocation2 [shape = 'bf16[6,25,128]{2,1,0:T(8,128)(2,1)}', space=vmem, size = 0xc000, scoped, tag = 'scratch operand']
  %s0 = inlined_call_operand.vmem [shape: bf16[2,16,16,128], index: 0, kind: input, shape index: {}]
  %s1 = inlined_call_operand.vmem [shape: f32[1,128], index: 1, kind: input, shape index: {}]
  %s2 = inlined_call_operand.vmem [shape: f32[1,128], index: 2, kind: input, shape index: {}]
  %s3 = inlined_call_operand.vmem [shape: bf16[3,384,128], index: 3, kind: input, shape index: {}]
  %s4 = inlined_call_operand.vmem [shape: f32[1,128], index: 4, kind: input, shape index: {}]
  %s5 = inlined_call_operand.vmem [shape: bf16[2,16,16,128], index: 5, kind: output, shape index: {0}]
  %s6 = inlined_call_operand.vmem [shape: f32[2,4,2,128], index: 6, kind: output, shape index: {1}]
  %7 = xla_tuple %s5, %s6
  %s8 = sld [smem:[#allocation0]]
  $region61: #{residual_block_forward.4} parent=0
    _
  %s10 = ssub.s32 1, %s8
  %s11 = scalar_select 0, %s10, %s8
  loop: start=0, step=1, limit=10
  $region2: #{residual_block_forward.4} parent=0 // loop_pre_header
    _
  $region3: #{residual_block_forward.4} parent=0 // loop_header
    %s13 = sphi 0, %s17
    %p14 = scmp.ge.s32.totalorder %s13, 10
    %s20 = sphi 0, %s32
    %s21 = sphi 0, %s28
    %s22 = sphi 0, %s20
    %s23 = sphi 0, %s21
    %s24 = sphi 0, %s22
    %s25 = sphi 0, %s23
    %s35 = sphi 0, %s37
    %s38 = sphi 0, %s35
    %s39 = sphi 0, %s38
    %s55 = sphi 0, %s39
    %s59 = sphi 0, %s59
    %s61 = sphi 0, %s59
    %s62 = sphi 0, %s61
    %s76 = sphi 0, %s62
    %s80 = sphi 0, %s80
    %s82 = sphi 0, %s80
    %s83 = sphi 0, %s82
    %s97 = sphi 0, %s83
    %s101 = sphi 0, %s101
    %s103 = sphi 0, %s101
    %s104 = sphi 0, %s103
    %s118 = sphi 0, %s104
    %s122 = sphi 0, %s122
    %s124 = sphi 0, %s122
    %s125 = sphi 0, %s124
    %s139 = sphi 0, %s125
    %s147 = sphi 0, %s149
    %s150 = sphi 0, %s147
    %s151 = sphi 0, %s150
    %s167 = sphi 0, %s151
    %s175 = sphi 0, %s177
    %s178 = sphi 0, %s175
    %s179 = sphi 0, %s178
    %s195 = sphi 0, %s179
  $region4: #{residual_block_forward.4} parent=0 // loop_header_branch
    %16 = sbr.rel (%p14) target = $region8
  $region5: #{residual_block_forward.4} parent=0 // loop_body
    %s18 = ssub.s32 %s13, 1
    %s19 = ssub.s32 %s13, 2
    %s26 = sadd.s32 1, %s21
    %p27 = scmp.ge.s32.totalorder %s26, 4
    %s28 = scalar_select %p27, 0, %s26
    %s29 = sadd.s32 1, %s20
    %s30 = scalar_select %p27, %s29, %s20
    %p31 = scmp.ge.s32.totalorder %s30, 2
    %s32 = scalar_select %p31, 0, %s30
    %s33 = ssub.s32 %s20, %s32
    %p34 = scmp.eq.s32.totalorder %s33, 0
    %s36 = sadd.s32 %s35, 1
    %s37 = scalar_select %p34, %s35, %s36
    %p40 = pneg %p34
    %p41 = scmp.eq.s32.totalorder %s13, 7
    %p42 = por %p40, %p41
    %p43 = scmp.ne.s32.totalorder %s35, %s38
    %p44 = scmp.eq.s32.totalorder %s13, 0
    %p45 = por %p43, %p44
    %p46 = scmp.ne.s32.totalorder %s35, %s38
    %p47 = scmp.eq.s32.totalorder %s18, 7
    %p48 = por %p46, %p47
    %p49 = scmp.ne.s32.totalorder %s38, %s39
    %p50 = scmp.eq.s32.totalorder %s18, 0
    %p51 = por %p49, %p50
    %p52 = scmp.ne.s32.totalorder %s38, %s39
    %p53 = scmp.eq.s32.totalorder %s19, 7
    %p54 = por %p52, %p53
    %p56 = scmp.ne.s32.totalorder %s39, %s55
    %p57 = scmp.eq.s32.totalorder %s19, 0
    %p58 = por %p56, %p57
    %s60 = sadd.s32 %s59, 1
    %p63 = scmp.eq.s32.totalorder %s13, 7
    %p64 = scmp.ne.s32.totalorder %s59, %s61
    %p65 = scmp.eq.s32.totalorder %s13, 0
    %p66 = por %p64, %p65
    %p67 = scmp.ne.s32.totalorder %s59, %s61
    %p68 = scmp.eq.s32.totalorder %s18, 7
    %p69 = por %p67, %p68
    %p70 = scmp.ne.s32.totalorder %s61, %s62
    %p71 = scmp.eq.s32.totalorder %s18, 0
    %p72 = por %p70, %p71
    %p73 = scmp.ne.s32.totalorder %s61, %s62
    %p74 = scmp.eq.s32.totalorder %s19, 7
    %p75 = por %p73, %p74
    %p77 = scmp.ne.s32.totalorder %s62, %s76
    %p78 = scmp.eq.s32.totalorder %s19, 0
    %p79 = por %p77, %p78
    %s81 = sadd.s32 %s80, 1
    %p84 = scmp.eq.s32.totalorder %s13, 7
    %p85 = scmp.ne.s32.totalorder %s80, %s82
    %p86 = scmp.eq.s32.totalorder %s13, 0
    %p87 = por %p85, %p86
    %p88 = scmp.ne.s32.totalorder %s80, %s82
    %p89 = scmp.eq.s32.totalorder %s18, 7
    %p90 = por %p88, %p89
    %p91 = scmp.ne.s32.totalorder %s82, %s83
    %p92 = scmp.eq.s32.totalorder %s18, 0
    %p93 = por %p91, %p92
    %p94 = scmp.ne.s32.totalorder %s82, %s83
    %p95 = scmp.eq.s32.totalorder %s19, 7
    %p96 = por %p94, %p95
    %p98 = scmp.ne.s32.totalorder %s83, %s97
    %p99 = scmp.eq.s32.totalorder %s19, 0
    %p100 = por %p98, %p99
    %s102 = sadd.s32 %s101, 1
    %p105 = scmp.eq.s32.totalorder %s13, 7
    %p106 = scmp.ne.s32.totalorder %s101, %s103
    %p107 = scmp.eq.s32.totalorder %s13, 0
    %p108 = por %p106, %p107
    %p109 = scmp.ne.s32.totalorder %s101, %s103
    %p110 = scmp.eq.s32.totalorder %s18, 7
    %p111 = por %p109, %p110
    %p112 = scmp.ne.s32.totalorder %s103, %s104
    %p113 = scmp.eq.s32.totalorder %s18, 0
    %p114 = por %p112, %p113
    %p115 = scmp.ne.s32.totalorder %s103, %s104
    %p116 = scmp.eq.s32.totalorder %s19, 7
    %p117 = por %p115, %p116
    %p119 = scmp.ne.s32.totalorder %s104, %s118
    %p120 = scmp.eq.s32.totalorder %s19, 0
    %p121 = por %p119, %p120
    %s123 = sadd.s32 %s122, 1
    %p126 = scmp.eq.s32.totalorder %s13, 7
    %p127 = scmp.ne.s32.totalorder %s122, %s124
    %p128 = scmp.eq.s32.totalorder %s13, 0
    %p129 = por %p127, %p128
    %p130 = scmp.ne.s32.totalorder %s122, %s124
    %p131 = scmp.eq.s32.totalorder %s18, 7
    %p132 = por %p130, %p131
    %p133 = scmp.ne.s32.totalorder %s124, %s125
    %p134 = scmp.eq.s32.totalorder %s18, 0
    %p135 = por %p133, %p134
    %p136 = scmp.ne.s32.totalorder %s124, %s125
    %p137 = scmp.eq.s32.totalorder %s19, 7
    %p138 = por %p136, %p137
    %p140 = scmp.ne.s32.totalorder %s125, %s139
    %p141 = scmp.eq.s32.totalorder %s19, 0
    %p142 = por %p140, %p141
    %s143 = ssub.s32 %s20, %s32
    %s144 = ssub.s32 %s21, %s28
    %s145 = sor.u32 %s143, %s144
    %p146 = scmp.eq.s32.totalorder %s145, 0
    %s148 = sadd.s32 %s147, 1
    %s149 = scalar_select %p146, %s147, %s148
    %p152 = pneg %p146
    %p153 = scmp.eq.s32.totalorder %s13, 7
    %p154 = por %p152, %p153
    %p155 = scmp.ne.s32.totalorder %s147, %s150
    %p156 = scmp.eq.s32.totalorder %s13, 0
    %p157 = por %p155, %p156
    %p158 = scmp.ne.s32.totalorder %s147, %s150
    %p159 = scmp.eq.s32.totalorder %s18, 7
    %p160 = por %p158, %p159
    %p161 = scmp.ne.s32.totalorder %s150, %s151
    %p162 = scmp.eq.s32.totalorder %s18, 0
    %p163 = por %p161, %p162
    %p164 = scmp.ne.s32.totalorder %s150, %s151
    %p165 = scmp.eq.s32.totalorder %s19, 7
    %p166 = por %p164, %p165
    %p168 = scmp.ne.s32.totalorder %s151, %s167
    %p169 = scmp.eq.s32.totalorder %s19, 0
    %p170 = por %p168, %p169
    %s171 = ssub.s32 %s20, %s32
    %s172 = ssub.s32 %s21, %s28
    %s173 = sor.u32 %s171, %s172
    %p174 = scmp.eq.s32.totalorder %s173, 0
    %s176 = sadd.s32 %s175, 1
    %s177 = scalar_select %p174, %s175, %s176
    %p180 = pneg %p174
    %p181 = scmp.eq.s32.totalorder %s13, 7
    %p182 = por %p180, %p181
    %p183 = scmp.ne.s32.totalorder %s175, %s178
    %p184 = scmp.eq.s32.totalorder %s13, 0
    %p185 = por %p183, %p184
    %p186 = scmp.ne.s32.totalorder %s175, %s178
    %p187 = scmp.eq.s32.totalorder %s18, 7
    %p188 = por %p186, %p187
    %p189 = scmp.ne.s32.totalorder %s178, %s179
    %p190 = scmp.eq.s32.totalorder %s18, 0
    %p191 = por %p189, %p190
    %p192 = scmp.ne.s32.totalorder %s178, %s179
    %p193 = scmp.eq.s32.totalorder %s19, 7
    %p194 = por %p192, %p193
    %p196 = scmp.ne.s32.totalorder %s179, %s195
    %p197 = scmp.eq.s32.totalorder %s19, 0
    %p198 = por %p196, %p197
    %p199 = scmp.le.s32.totalorder 1, %s13
    %p200 = scmp.lt.s32.totalorder %s13, 9
    %p201 = pnand %p199, %p200
    %p202 = pneg %p201
    // Predicated region
    $region9: #{residual_block_forward.4} parent=5 // pred_check
      _
    $region10: #{residual_block_forward.4} parent=5 // pred_check_branch
      %204 = sbr.rel (%p201) target = $region12
    $region11: #{residual_block_forward.4} parent=5 // pred_region
      %s205 = ssub.s32 %s13, 1
      // Predicated region
      $region13: #{residual_block_forward.4} parent=11 // pred_check
        %p206 = pneg %p72
      $region14: #{residual_block_forward.4} parent=11 // pred_check_branch
        %208 = sbr.rel (%p206) target = $region16
      $region15: #{residual_block_forward.4} parent=11 // pred_region
        _
      $region16: #{residual_block_forward.4} parent=11 // pred_fallthru
        _
      // Predicated region
      $region17: #{residual_block_forward.4} parent=11 // pred_check
        %p209 = pneg %p93
      $region18: #{residual_block_forward.4} parent=11 // pred_check_branch
        %211 = sbr.rel (%p209) target = $region20
      $region19: #{residual_block_forward.4} parent=11 // pred_region
        _
      $region20: #{residual_block_forward.4} parent=11 // pred_fallthru
        _
      // Predicated region
      $region21: #{residual_block_forward.4} parent=11 // pred_check
        %p212 = pneg %p114
      $region22: #{residual_block_forward.4} parent=11 // pred_check_branch
        %214 = sbr.rel (%p212) target = $region24
      $region23: #{residual_block_forward.4} parent=11 // pred_region
        _
      $region24: #{residual_block_forward.4} parent=11 // pred_fallthru
        _
      // Predicated region
      $region25: #{residual_block_forward.4} parent=11 // pred_check
        %p215 = pneg %p135
      $region26: #{residual_block_forward.4} parent=11 // pred_check_branch
        %217 = sbr.rel (%p215) target = $region28
      $region27: #{residual_block_forward.4} parent=11 // pred_region
        _
      $region28: #{residual_block_forward.4} parent=11 // pred_fallthru
        _
    $region12: #{residual_block_forward.4} parent=5 // pred_fallthru
      _
    %p218 = scmp.lt.s32.totalorder %s13, 8
    // Predicated region
    $region29: #{residual_block_forward.4} parent=5 // pred_check
      %p219 = pneg %p218
    $region30: #{residual_block_forward.4} parent=5 // pred_check_branch
      %221 = sbr.rel (%p219) target = $region32
    $region31: #{residual_block_forward.4} parent=5 // pred_region
      // Predicated region
      $region33: #{residual_block_forward.4} parent=31 // pred_check
        %p222 = pneg %p45
      $region34: #{residual_block_forward.4} parent=31 // pred_check_branch
        %224 = sbr.rel (%p222) target = $region36
      $region35: #{residual_block_forward.4} parent=31 // pred_region
        %p225 = scmp.lt.s32.totalorder %s20, 1
        %s226 = scalar_select %p225, %s20, 1
        %s227 = smul.addr %s226, 32
        %s228 = smul.addr %s227, 4
        %s229 = scalar_lea.vmem %s0, %s228
      $region36: #{residual_block_forward.4} parent=31 // pred_fallthru
        _
    $region32: #{residual_block_forward.4} parent=5 // pred_fallthru
      _
    %p230 = scmp.le.s32.totalorder 1, %s13
    %p231 = scmp.lt.s32.totalorder %s13, 9
    %p232 = pnand %p230, %p231
    %p233 = pneg %p232
    // Predicated region
    $region37: #{residual_block_forward.4} parent=5 // pred_check
      _
    $region38: #{residual_block_forward.4} parent=5 // pred_check_branch
      %235 = sbr.rel (%p232) target = $region40
    $region39: #{residual_block_forward.4} parent=5 // pred_region
      %s236 = ssub.s32 %s13, 1
      %p237 = scmp.lt.s32.totalorder %s22, 1
      %s238 = scalar_select %p237, %s22, 1
      %s239 = smul.addr %s238, 32
      %s240 = smul.addr %s239, 4
      %s241 = scalar_lea.vmem %s0, %s240
      %p242 = pneg %p51
      %p243 = pneg %p48
      %p244 = pneg %p72
      %p245 = pneg %p69
      %p246 = pneg %p93
      %p247 = pneg %p90
      %p248 = pneg %p114
      %p249 = pneg %p111
      %p250 = pneg %p135
      %p251 = pneg %p132
      %p252 = pneg %p163
      %p253 = pneg %p160
      %s254 = smul.u32 4, %s23
      %p255 = scmp.lt.s32.totalorder %s22, 1
      %s256 = scalar_select %p255, %s22, 1
      %p257 = scmp.lt.s32.totalorder %s254, 15
      %s258 = scalar_select %p257, %s254, 15
      %s259 = smul.addr %s258, 2
      %s260 = smul.addr %s256, 32
      %s261 = sadd.s32 %s259, %s260
      %s262 = smul.addr %s261, 4
      %s263 = scalar_lea.vmem %s5, %s262
      %p264 = pneg %p191
      %p265 = pneg %p188
      %p266 = scmp.lt.s32.totalorder %s22, 1
      %s267 = scalar_select %p266, %s22, 1
      %p268 = scmp.lt.s32.totalorder %s23, 3
      %s269 = scalar_select %p268, %s23, 3
      %s270 = smul.addr %s267, 4
      %s271 = sadd.s32 %s269, %s270
      %s272 = smul.addr %s271, 2
      %s273 = scalar_lea.vmem %s6, %s272
      %p274 = scmp.lt.s32.totalorder %s22, 1
      %s275 = scalar_select %p274, %s22, 1
      %s276 = smul.addr %s275, 32
      %s277 = smul.addr %s276, 4
      %s278 = scalar_lea.vmem %s0, %s277
      %s279 = smul.u32 4, %s23
      %p280 = scmp.lt.s32.totalorder %s22, 1
      %s281 = scalar_select %p280, %s22, 1
      %p282 = scmp.lt.s32.totalorder %s279, 15
      %s283 = scalar_select %p282, %s279, 15
      %s284 = smul.addr %s283, 2
      %s285 = smul.addr %s281, 32
      %s286 = sadd.s32 %s284, %s285
      %s287 = smul.addr %s286, 4
      %s288 = scalar_lea.vmem %s5, %s287
      %s289 = smul.u32 4, %s23
      %p290 = scmp.lt.s32.totalorder %s22, 1
      %s291 = scalar_select %p290, %s22, 1
      %p292 = scmp.lt.s32.totalorder %s23, 3
      %s293 = scalar_select %p292, %s23, 3
      %s294 = smul.addr %s291, 4
      %s295 = sadd.s32 %s293, %s294
      %s296 = smul.addr %s295, 2
      %s297 = scalar_lea.vmem %s6, %s296
      %s299 = smul.u32 %s23, 4
      %v300 = vld [vmem:[%s1] sm:$0x1]
      %v301 = vld [vmem:[%s2] sm:$0x1]
      %302 = vst [vmem:[#allocation2] sm:$0xf] 0
      %303 = vst [vmem:[#allocation2 + $0x10] sm:$0xf] 0
      %304 = vst [vmem:[#allocation2 + $0x20] sm:$0xf] 0
      %305 = vst [vmem:[#allocation2 + $0x30] sm:$0xf] 0
      %306 = vst [vmem:[#allocation2 + $0x40] sm:$0xf] 0
      %307 = vst [vmem:[#allocation2 + $0x50] sm:$0xf] 0
      %vm308 = vcmask 1040384
      %vm309 = vsmask.f32 256
      %vm310 = vmand %vm308, %vm309
      %v311 = vld [vmem:[#allocation2 + $0xc] sm:$0x1]
      %v312 = vsel %vm310, 0, %v311
      %313 = vst [vmem:[#allocation2 + $0xc] sm:$0x1] %v312
      %v314 = vld [vmem:[#allocation2 + $0x1c] sm:$0x1]
      %v315 = vsel %vm310, 0, %v314
      %316 = vst [vmem:[#allocation2 + $0x1c] sm:$0x1] %v315
      %v317 = vld [vmem:[#allocation2 + $0x2c] sm:$0x1]
      %v318 = vsel %vm310, 0, %v317
      %319 = vst [vmem:[#allocation2 + $0x2c] sm:$0x1] %v318
      %v320 = vld [vmem:[#allocation2 + $0x3c] sm:$0x1]
      %v321 = vsel %vm310, 0, %v320
      %322 = vst [vmem:[#allocation2 + $0x3c] sm:$0x1] %v321
      %v323 = vld [vmem:[#allocation2 + $0x4c] sm:$0x1]
      %v324 = vsel %vm310, 0, %v323
      %325 = vst [vmem:[#allocation2 + $0x4c] sm:$0x1] %v324
      %v326 = vld [vmem:[#allocation2 + $0x5c] sm:$0x1]
      %v327 = vsel %vm310, 0, %v326
      %328 = vst [vmem:[#allocation2 + $0x5c] sm:$0x1] %v327
      %s329 = smul.u32 %s299, 2
      %s330 = smul.addr %s329, 4
      %s331 = scalar_lea.vmem %s278, %s330
      %v332 = vld [vmem:[%s331] sm:$0xf]
      %v333 = vld [vmem:[%s331 + $0x4] sm:$0xf]
      %v334 = vld [vmem:[%s331 + $0x8] sm:$0xf]
      %v335 = vld [vmem:[%s331 + $0xc] sm:$0xf]
      %v336 = vld [vmem:[%s331 + $0x10] sm:$0xf]
      %v337 = vld [vmem:[%s331 + $0x14] sm:$0xf]
      %v338 = vld [vmem:[%s331 + $0x18] sm:$0xf]
      %v339 = vld [vmem:[%s331 + $0x1c] sm:$0xf]
      %v340 = vunpack.c.l.bf16 %v332
      %v341 = vunpack.c.l.bf16 %v333
      %v342 = vunpack.c.l.bf16 %v334
      %v343 = vunpack.c.l.bf16 %v335
      %v344 = vunpack.c.l.bf16 %v336
      %v345 = vunpack.c.l.bf16 %v337
      %v346 = vunpack.c.l.bf16 %v338
      %v347 = vunpack.c.l.bf16 %v339
      %v349 = vlaneseq
      %v350 = vshrl.u32 %v349, 7
      %v351 = vsub.s32 0, %v350
      %v352 = vrot.slane %v300, %v351
      %v354 = vmul.f32 %v340, %v352
      %v355 = vmul.f32 %v341, %v352
      %v356 = vmul.f32 %v342, %v352
      %v357 = vmul.f32 %v343, %v352
      %v358 = vmul.f32 %v344, %v352
      %v359 = vmul.f32 %v345, %v352
      %v360 = vmul.f32 %v346, %v352
      %v361 = vmul.f32 %v347, %v352
      %v363 = vlaneseq
      %v364 = vshrl.u32 %v363, 7
      %v365 = vsub.s32 0, %v364
      %v366 = vrot.slane %v301, %v365
      %v368 = vadd.f32 %v354, %v366
      %v369 = vadd.f32 %v355, %v366
      %v370 = vadd.f32 %v356, %v366
      %v371 = vadd.f32 %v357, %v366
      %v372 = vadd.f32 %v358, %v366
      %v373 = vadd.f32 %v359, %v366
      %v374 = vadd.f32 %v360, %v366
      %v375 = vadd.f32 %v361, %v366
      %v376 = vmax.f32 %v368, 0.0
      %v377 = vmax.f32 %v369, 0.0
      %v378 = vmax.f32 %v370, 0.0
      %v379 = vmax.f32 %v371, 0.0
      %v380 = vmax.f32 %v372, 0.0
      %v381 = vmax.f32 %v373, 0.0
      %v382 = vmax.f32 %v374, 0.0
      %v383 = vmax.f32 %v375, 0.0
      %v384 = vpack.c.bf16 %v377, %v376
      %v385 = vpack.c.bf16 %v379, %v378
      %v386 = vpack.c.bf16 %v381, %v380
      %v387 = vpack.c.bf16 %v383, %v382
      %v392 = vunpack.c.l.b16 %v384
      %v393 = vunpack.c.h.b16 %v384
      %v394 = vunpack.c.l.b16 %v385
      %v395 = vunpack.c.h.b16 %v385
      %v396 = vunpack.c.l.b16 %v386
      %v397 = vunpack.c.h.b16 %v386
      %v398 = vunpack.c.l.b16 %v387
      %v399 = vunpack.c.h.b16 %v387
      %v400 = vpack.c.b16 %v392, %v392
      %v401 = vpack.c.b16 %v393, %v393
      %v402 = vpack.c.b16 %v394, %v394
      %v403 = vpack.c.b16 %v395, %v395
      %v404 = vpack.c.b16 %v396, %v396
      %v405 = vpack.c.b16 %v397, %v397
      %v406 = vpack.c.b16 %v398, %v398
      %v407 = vpack.c.b16 %v399, %v399
      %s416 = scalar_lea.vmem [#allocation2], 16
      %417 = vst [vmem:[%s416 + $0x4] sm:$0xf] %v400
      %418 = vst [vmem:[%s416 + $0x8] sm:$0xf] %v401
      %419 = vst [vmem:[%s416 + $0x14] sm:$0xf] %v402
      %420 = vst [vmem:[%s416 + $0x18] sm:$0xf] %v403
      %421 = vst [vmem:[%s416 + $0x24] sm:$0xf] %v404
      %422 = vst [vmem:[%s416 + $0x28] sm:$0xf] %v405
      %423 = vst [vmem:[%s416 + $0x34] sm:$0xf] %v406
      %424 = vst [vmem:[%s416 + $0x38] sm:$0xf] %v407
      %s425 = ssub.s32 %s299, 1
      %s426 = sadd.s32 %s299, 4
      %p427 = scmp.gt.s32.totalorder %s425, 0
      %s428 = scalar_select %p427, %s425, 0
      %p429 = scmp.lt.s32.totalorder %s428, 15
      %s430 = scalar_select %p429, %s428, 15
      %s431 = smul.u32 %s430, 2
      %s432 = smul.addr %s431, 4
      %s433 = scalar_lea.vmem %s278, %s432
      %v434 = vld [vmem:[%s433] sm:$0xf]
      %v435 = vld [vmem:[%s433 + $0x4] sm:$0xf]
      %v436 = vunpack.c.l.bf16 %v434
      %v437 = vunpack.c.l.bf16 %v435
      %v438 = vmul.f32 %v436, %v352
      %v439 = vmul.f32 %v437, %v352
      %v440 = vadd.f32 %v438, %v366
      %v441 = vadd.f32 %v439, %v366
      %v442 = vmax.f32 %v440, 0.0
      %v443 = vmax.f32 %v441, 0.0
      %p444 = scmp.ge.s32.totalorder %s425, 0
      %p445 = scmp.lt.s32.totalorder %s425, 16
      %p446 = pnand %p444, %p445
      %p447 = pneg %p446
      %s448 = scalar_select %p447, 1, 0
      %v449 = vstv %s448
      %vm450 = vcmp.eq.s32.totalorder %v449, 1
      %v451 = vsel %vm450, %v442, 0.0
      %v452 = vsel %vm450, %v443, 0.0
      %v453 = vpack.c.bf16 %v452, %v451
      %v455 = vunpack.c.l.b16 %v453
      %v456 = vunpack.c.h.b16 %v453
      %v457 = vpack.c.b16 %v455, %v455
      %v458 = vpack.c.b16 %v456, %v456
      %461 = vst [vmem:[#allocation2 + $0x4] sm:$0xf] %v457
      %462 = vst [vmem:[#allocation2 + $0x8] sm:$0xf] %v458
      %p463 = scmp.gt.s32.totalorder %s426, 0
      %s464 = scalar_select %p463, %s426, 0
      %p465 = scmp.lt.s32.totalorder %s464, 15
      %s466 = scalar_select %p465, %s464, 15
      %s467 = smul.u32 %s466, 2
      %s468 = smul.addr %s467, 4
      %s469 = scalar_lea.vmem %s278, %s468
      %v470 = vld [vmem:[%s469] sm:$0xf]
      %v471 = vld [vmem:[%s469 + $0x4] sm:$0xf]
      %v472 = vunpack.c.l.bf16 %v470
      %v473 = vunpack.c.l.bf16 %v471
      %v474 = vmul.f32 %v472, %v352
      %v475 = vmul.f32 %v473, %v352
      %v476 = vadd.f32 %v474, %v366
      %v477 = vadd.f32 %v475, %v366
      %v478 = vmax.f32 %v476, 0.0
      %v479 = vmax.f32 %v477, 0.0
      %p480 = scmp.ge.s32.totalorder %s426, 0
      %p481 = scmp.lt.s32.totalorder %s426, 16
      %p482 = pnand %p480, %p481
      %p483 = pneg %p482
      %s484 = scalar_select %p483, 1, 0
      %v485 = vstv %s484
      %vm486 = vcmp.eq.s32.totalorder %v485, 1
      %v487 = vsel %vm486, %v478, 0.0
      %v488 = vsel %vm486, %v479, 0.0
      %v489 = vpack.c.bf16 %v488, %v487
      %v491 = vunpack.c.l.b16 %v489
      %v492 = vunpack.c.h.b16 %v489
      %v493 = vpack.c.b16 %v491, %v491
      %v494 = vpack.c.b16 %v492, %v492
      %s497 = scalar_lea.vmem [#allocation2], 80
      %498 = vst [vmem:[%s497 + $0x4] sm:$0xf] %v493
      %499 = vst [vmem:[%s497 + $0x8] sm:$0xf] %v494
      %v500 = vld [vmem:[%s4] sm:$0x1]
      %v501 = vld [vmem:[#allocation2] sm:$0x8]
      %v502 = vld [vmem:[#allocation2 + $0x4] sm:$0xf]
      %v503 = vld [vmem:[#allocation2 + $0x8] sm:$0xf]
      %v504 = vld [vmem:[#allocation2 + $0x10] sm:$0x8]
      %v505 = vld [vmem:[#allocation2 + $0x14] sm:$0xf]
      %v506 = vld [vmem:[#allocation2 + $0x18] sm:$0xf]
      %v507 = vld [vmem:[#allocation2 + $0x20] sm:$0x8]
      %v508 = vld [vmem:[#allocation2 + $0x24] sm:$0xf]
      %v509 = vld [vmem:[#allocation2 + $0x28] sm:$0xf]
      %v510 = vld [vmem:[#allocation2 + $0x30] sm:$0x8]
      %v511 = vld [vmem:[#allocation2 + $0x34] sm:$0xf]
      %v512 = vld [vmem:[#allocation2 + $0x38] sm:$0xf]
      %v513 = vld [vmem:[#allocation2 + $0xc] sm:$0x1]
      %v514 = vld [vmem:[#allocation2 + $0x1c] sm:$0x1]
      %v515 = vld [vmem:[#allocation2 + $0x2c] sm:$0x1]
      %v516 = vld [vmem:[#allocation2 + $0x3c] sm:$0x1]
      %v529 = vunpack.c.l.b16 %v501
      %v530 = vunpack.c.l.b16 %v502
      %v531 = vunpack.c.l.b16 %v503
      %v532 = vunpack.c.l.b16 %v504
      %v533 = vunpack.c.l.b16 %v505
      %v534 = vunpack.c.l.b16 %v506
      %v535 = vunpack.c.l.b16 %v507
      %v536 = vunpack.c.l.b16 %v508
      %v537 = vunpack.c.l.b16 %v509
      %v538 = vunpack.c.l.b16 %v510
      %v539 = vunpack.c.l.b16 %v511
      %v540 = vunpack.c.l.b16 %v512
      %v541 = vpack.c.b16 %v530, %v529
      %v542 = vpack.c.b16 %v531, %v531
      %v543 = vpack.c.b16 %v533, %v532
      %v544 = vpack.c.b16 %v534, %v534
      %v545 = vpack.c.b16 %v536, %v535
      %v546 = vpack.c.b16 %v537, %v537
      %v547 = vpack.c.b16 %v539, %v538
      %v548 = vpack.c.b16 %v540, %v540
      %v549 = vpack.c.b16 %v531, %v530
      %v550 = vpack.c.b16 %v534, %v533
      %v551 = vpack.c.b16 %v537, %v536
      %v552 = vpack.c.b16 %v540, %v539
      %v554 = vshrl.u32 %v549, 16
      %v556 = vrot.slane %v554, 4
      %v557 = vshll.u32 %v549, 16
      %v559 = vrot.slane %v557, 5
      %v560 = vor.u32 %v556, %v559
      %v562 = vshrl.u32 %v550, 16
      %v564 = vrot.slane %v562, 4
      %v565 = vshll.u32 %v550, 16
      %v567 = vrot.slane %v565, 5
      %v568 = vor.u32 %v564, %v567
      %v570 = vshrl.u32 %v551, 16
      %v572 = vrot.slane %v570, 4
      %v573 = vshll.u32 %v551, 16
      %v575 = vrot.slane %v573, 5
      %v576 = vor.u32 %v572, %v575
      %v578 = vshrl.u32 %v552, 16
      %v580 = vrot.slane %v578, 4
      %v581 = vshll.u32 %v552, 16
      %v583 = vrot.slane %v581, 5
      %v584 = vor.u32 %v580, %v583
      %v589 = vunpack.c.l.b16 %v513
      %v590 = vunpack.c.l.b16 %v514
      %v591 = vunpack.c.l.b16 %v515
      %v592 = vunpack.c.l.b16 %v516
      %v593 = vpack.c.b16 %v589, %v589
      %v594 = vpack.c.b16 %v590, %v590
      %v595 = vpack.c.b16 %v591, %v591
      %v596 = vpack.c.b16 %v592, %v592
      %vm597 = vcmask 1042432
      %v598 = vrot.slane %v549, 5
      %v599 = vrot.slane %v593, 5
      %v600 = vsel %vm597, %v598, %v599
      %v601 = vrot.slane %v550, 5
      %v602 = vrot.slane %v594, 5
      %v603 = vsel %vm597, %v601, %v602
      %v604 = vrot.slane %v551, 5
      %v605 = vrot.slane %v595, 5
      %v606 = vsel %vm597, %v604, %v605
      %v607 = vrot.slane %v552, 5
      %v608 = vrot.slane %v596, 5
      %v609 = vsel %vm597, %v607, %v608
      %vm610 = vsmask.f32 4352
      %v612 = vshrl.u32 %v541, 16
      %v614 = vrot.slane %v612, 3
      %v615 = vshll.u32 %v541, 16
      %v617 = vrot.slane %v615, 4
      %v618 = vor.u32 %v614, %v617
      %v620 = vshrl.u32 %v542, 16
      %v622 = vrot.slane %v620, 3
      %v623 = vshll.u32 %v542, 16
      %v625 = vrot.slane %v623, 4
      %v626 = vor.u32 %v622, %v625
      %v627 = vsel %vm610, %v618, %v626
      %v629 = vshrl.u32 %v560, 16
      %v631 = vrot.slane %v629, 3
      %v632 = vshll.u32 %v560, 16
      %v634 = vrot.slane %v632, 4
      %v635 = vor.u32 %v631, %v634
      %v636 = vsel %vm610, %v635, %v635
      %v638 = vshrl.u32 %v598, 16
      %v640 = vrot.slane %v638, 3
      %v641 = vshll.u32 %v598, 16
      %v643 = vrot.slane %v641, 4
      %v644 = vor.u32 %v640, %v643
      %v646 = vshrl.u32 %v600, 16
      %v648 = vrot.slane %v646, 3
      %v649 = vshll.u32 %v600, 16
      %v651 = vrot.slane %v649, 4
      %v652 = vor.u32 %v648, %v651
      %v653 = vsel %vm610, %v644, %v652
      %v655 = vshrl.u32 %v543, 16
      %v657 = vrot.slane %v655, 3
      %v658 = vshll.u32 %v543, 16
      %v660 = vrot.slane %v658, 4
      %v661 = vor.u32 %v657, %v660
      %v663 = vshrl.u32 %v544, 16
      %v665 = vrot.slane %v663, 3
      %v666 = vshll.u32 %v544, 16
      %v668 = vrot.slane %v666, 4
      %v669 = vor.u32 %v665, %v668
      %v670 = vsel %vm610, %v661, %v669
      %v672 = vshrl.u32 %v568, 16
      %v674 = vrot.slane %v672, 3
      %v675 = vshll.u32 %v568, 16
      %v677 = vrot.slane %v675, 4
      %v678 = vor.u32 %v674, %v677
      %v679 = vsel %vm610, %v678, %v678
      %v681 = vshrl.u32 %v601, 16
      %v683 = vrot.slane %v681, 3
      %v684 = vshll.u32 %v601, 16
      %v686 = vrot.slane %v684, 4
      %v687 = vor.u32 %v683, %v686
      %v689 = vshrl.u32 %v603, 16
      %v691 = vrot.slane %v689, 3
      %v692 = vshll.u32 %v603, 16
      %v694 = vrot.slane %v692, 4
      %v695 = vor.u32 %v691, %v694
      %v696 = vsel %vm610, %v687, %v695
      %v698 = vshrl.u32 %v545, 16
      %v700 = vrot.slane %v698, 3
      %v701 = vshll.u32 %v545, 16
      %v703 = vrot.slane %v701, 4
      %v704 = vor.u32 %v700, %v703
      %v706 = vshrl.u32 %v546, 16
      %v708 = vrot.slane %v706, 3
      %v709 = vshll.u32 %v546, 16
      %v711 = vrot.slane %v709, 4
      %v712 = vor.u32 %v708, %v711
      %v713 = vsel %vm610, %v704, %v712
      %v715 = vshrl.u32 %v576, 16
      %v717 = vrot.slane %v715, 3
      %v718 = vshll.u32 %v576, 16
      %v720 = vrot.slane %v718, 4
      %v721 = vor.u32 %v717, %v720
      %v722 = vsel %vm610, %v721, %v721
      %v724 = vshrl.u32 %v604, 16
      %v726 = vrot.slane %v724, 3
      %v727 = vshll.u32 %v604, 16
      %v729 = vrot.slane %v727, 4
      %v730 = vor.u32 %v726, %v729
      %v732 = vshrl.u32 %v606, 16
      %v734 = vrot.slane %v732, 3
      %v735 = vshll.u32 %v606, 16
      %v737 = vrot.slane %v735, 4
      %v738 = vor.u32 %v734, %v737
      %v739 = vsel %vm610, %v730, %v738
      %v741 = vshrl.u32 %v547, 16
      %v743 = vrot.slane %v741, 3
      %v744 = vshll.u32 %v547, 16
      %v746 = vrot.slane %v744, 4
      %v747 = vor.u32 %v743, %v746
      %v749 = vshrl.u32 %v548, 16
      %v751 = vrot.slane %v749, 3
      %v752 = vshll.u32 %v548, 16
      %v754 = vrot.slane %v752, 4
      %v755 = vor.u32 %v751, %v754
      %v756 = vsel %vm610, %v747, %v755
      %v758 = vshrl.u32 %v584, 16
      %v760 = vrot.slane %v758, 3
      %v761 = vshll.u32 %v584, 16
      %v763 = vrot.slane %v761, 4
      %v764 = vor.u32 %v760, %v763
      %v765 = vsel %vm610, %v764, %v764
      %v767 = vshrl.u32 %v607, 16
      %v769 = vrot.slane %v767, 3
      %v770 = vshll.u32 %v607, 16
      %v772 = vrot.slane %v770, 4
      %v773 = vor.u32 %v769, %v772
      %v775 = vshrl.u32 %v609, 16
      %v777 = vrot.slane %v775, 3
      %v778 = vshll.u32 %v609, 16
      %v780 = vrot.slane %v778, 4
      %v781 = vor.u32 %v777, %v780
      %v782 = vsel %vm610, %v773, %v781
      %v795 = vld [vmem:[%s3] sm:$0xf]
      %v796 = vld [vmem:[%s3 + $0x4] sm:$0xf]
      %v797 = vld [vmem:[%s3 + $0x8] sm:$0xf]
      %v798 = vld [vmem:[%s3 + $0xc] sm:$0xf]
      %v799 = vld [vmem:[%s3 + $0x10] sm:$0xf]
      %v800 = vld [vmem:[%s3 + $0x14] sm:$0xf]
      %v801 = vld [vmem:[%s3 + $0x18] sm:$0xf]
      %v802 = vld [vmem:[%s3 + $0x1c] sm:$0xf]
      %v803 = vld [vmem:[%s3 + $0x20] sm:$0xf]
      %v804 = vld [vmem:[%s3 + $0x24] sm:$0xf]
      %v805 = vld [vmem:[%s3 + $0x28] sm:$0xf]
      %v806 = vld [vmem:[%s3 + $0x2c] sm:$0xf]
      %v807 = vld [vmem:[%s3 + $0x30] sm:$0xf]
      %v808 = vld [vmem:[%s3 + $0x34] sm:$0xf]
      %v809 = vld [vmem:[%s3 + $0x38] sm:$0xf]
      %v810 = vld [vmem:[%s3 + $0x3c] sm:$0xf]
      %v811 = vld [vmem:[%s3 + $0x40] sm:$0xf]
      %v812 = vld [vmem:[%s3 + $0x44] sm:$0xf]
      %v813 = vld [vmem:[%s3 + $0x48] sm:$0xf]
      %v814 = vld [vmem:[%s3 + $0x4c] sm:$0xf]
      %v815 = vld [vmem:[%s3 + $0x50] sm:$0xf]
      %v816 = vld [vmem:[%s3 + $0x54] sm:$0xf]
      %v817 = vld [vmem:[%s3 + $0x58] sm:$0xf]
      %v818 = vld [vmem:[%s3 + $0x5c] sm:$0xf]
      %v819 = vld [vmem:[%s3 + $0x60] sm:$0xf]
      %v820 = vld [vmem:[%s3 + $0x64] sm:$0xf]
      %v821 = vld [vmem:[%s3 + $0x68] sm:$0xf]
      %v822 = vld [vmem:[%s3 + $0x6c] sm:$0xf]
      %v823 = vld [vmem:[%s3 + $0x70] sm:$0xf]
      %v824 = vld [vmem:[%s3 + $0x74] sm:$0xf]
      %v825 = vld [vmem:[%s3 + $0x78] sm:$0xf]
      %v826 = vld [vmem:[%s3 + $0x7c] sm:$0xf]
      %v827 = vld [vmem:[%s3 + $0x80] sm:$0xf]
      %v828 = vld [vmem:[%s3 + $0x84] sm:$0xf]
      %v829 = vld [vmem:[%s3 + $0x88] sm:$0xf]
      %v830 = vld [vmem:[%s3 + $0x8c] sm:$0xf]
      %v831 = vld [vmem:[%s3 + $0x90] sm:$0xf]
      %v832 = vld [vmem:[%s3 + $0x94] sm:$0xf]
      %v833 = vld [vmem:[%s3 + $0x98] sm:$0xf]
      %v834 = vld [vmem:[%s3 + $0x9c] sm:$0xf]
      %v835 = vld [vmem:[%s3 + $0xa0] sm:$0xf]
      %v836 = vld [vmem:[%s3 + $0xa4] sm:$0xf]
      %v837 = vld [vmem:[%s3 + $0xa8] sm:$0xf]
      %v838 = vld [vmem:[%s3 + $0xac] sm:$0xf]
      %v839 = vld [vmem:[%s3 + $0xb0] sm:$0xf]
      %v840 = vld [vmem:[%s3 + $0xb4] sm:$0xf]
      %v841 = vld [vmem:[%s3 + $0xb8] sm:$0xf]
      %v842 = vld [vmem:[%s3 + $0xbc] sm:$0xf]
      %v843 = vld [vmem:[%s416] sm:$0x8]
      %v844 = vld [vmem:[%s416 + $0x4] sm:$0xf]
      %v845 = vld [vmem:[%s416 + $0x8] sm:$0xf]
      %v846 = vld [vmem:[%s416 + $0x10] sm:$0x8]
      %v847 = vld [vmem:[%s416 + $0x14] sm:$0xf]
      %v848 = vld [vmem:[%s416 + $0x18] sm:$0xf]
      %v849 = vld [vmem:[%s416 + $0x20] sm:$0x8]
      %v850 = vld [vmem:[%s416 + $0x24] sm:$0xf]
      %v851 = vld [vmem:[%s416 + $0x28] sm:$0xf]
      %v852 = vld [vmem:[%s416 + $0x30] sm:$0x8]
      %v853 = vld [vmem:[%s416 + $0x34] sm:$0xf]
      %v854 = vld [vmem:[%s416 + $0x38] sm:$0xf]
      %v855 = vld [vmem:[%s416 + $0xc] sm:$0x1]
      %v856 = vld [vmem:[%s416 + $0x1c] sm:$0x1]
      %v857 = vld [vmem:[%s416 + $0x2c] sm:$0x1]
      %v858 = vld [vmem:[%s416 + $0x3c] sm:$0x1]
      %v871 = vunpack.c.l.b16 %v843
      %v872 = vunpack.c.l.b16 %v844
      %v873 = vunpack.c.l.b16 %v845
      %v874 = vunpack.c.l.b16 %v846
      %v875 = vunpack.c.l.b16 %v847
      %v876 = vunpack.c.l.b16 %v848
      %v877 = vunpack.c.l.b16 %v849
      %v878 = vunpack.c.l.b16 %v850
      %v879 = vunpack.c.l.b16 %v851
      %v880 = vunpack.c.l.b16 %v852
      %v881 = vunpack.c.l.b16 %v853
      %v882 = vunpack.c.l.b16 %v854
      %v883 = vpack.c.b16 %v872, %v871
      %v884 = vpack.c.b16 %v873, %v873
      %v885 = vpack.c.b16 %v875, %v874
      %v886 = vpack.c.b16 %v876, %v876
      %v887 = vpack.c.b16 %v878, %v877
      %v888 = vpack.c.b16 %v879, %v879
      %v889 = vpack.c.b16 %v881, %v880
      %v890 = vpack.c.b16 %v882, %v882
      %v891 = vpack.c.b16 %v873, %v872
      %v892 = vpack.c.b16 %v876, %v875
      %v893 = vpack.c.b16 %v879, %v878
      %v894 = vpack.c.b16 %v882, %v881
      %v896 = vshrl.u32 %v891, 16
      %v898 = vrot.slane %v896, 4
      %v899 = vshll.u32 %v891, 16
      %v901 = vrot.slane %v899, 5
      %v902 = vor.u32 %v898, %v901
      %v904 = vshrl.u32 %v892, 16
      %v906 = vrot.slane %v904, 4
      %v907 = vshll.u32 %v892, 16
      %v909 = vrot.slane %v907, 5
      %v910 = vor.u32 %v906, %v909
      %v912 = vshrl.u32 %v893, 16
      %v914 = vrot.slane %v912, 4
      %v915 = vshll.u32 %v893, 16
      %v917 = vrot.slane %v915, 5
      %v918 = vor.u32 %v914, %v917
      %v920 = vshrl.u32 %v894, 16
      %v922 = vrot.slane %v920, 4
      %v923 = vshll.u32 %v894, 16
      %v925 = vrot.slane %v923, 5
      %v926 = vor.u32 %v922, %v925
      %v931 = vunpack.c.l.b16 %v855
      %v932 = vunpack.c.l.b16 %v856
      %v933 = vunpack.c.l.b16 %v857
      %v934 = vunpack.c.l.b16 %v858
      %v935 = vpack.c.b16 %v931, %v931
      %v936 = vpack.c.b16 %v932, %v932
      %v937 = vpack.c.b16 %v933, %v933
      %v938 = vpack.c.b16 %v934, %v934
      %v939 = vrot.slane %v891, 5
      %v940 = vrot.slane %v935, 5
      %v941 = vsel %vm597, %v939, %v940
      %v942 = vrot.slane %v892, 5
      %v943 = vrot.slane %v936, 5
      %v944 = vsel %vm597, %v942, %v943
      %v945 = vrot.slane %v893, 5
      %v946 = vrot.slane %v937, 5
      %v947 = vsel %vm597, %v945, %v946
      %v948 = vrot.slane %v894, 5
      %v949 = vrot.slane %v938, 5
      %v950 = vsel %vm597, %v948, %v949
      %v952 = vshrl.u32 %v883, 16
      %v954 = vrot.slane %v952, 3
      %v955 = vshll.u32 %v883, 16
      %v957 = vrot.slane %v955, 4
      %v958 = vor.u32 %v954, %v957
      %v960 = vshrl.u32 %v884, 16
      %v962 = vrot.slane %v960, 3
      %v963 = vshll.u32 %v884, 16
      %v965 = vrot.slane %v963, 4
      %v966 = vor.u32 %v962, %v965
      %v967 = vsel %vm610, %v958, %v966
      %v969 = vshrl.u32 %v902, 16
      %v971 = vrot.slane %v969, 3
      %v972 = vshll.u32 %v902, 16
      %v974 = vrot.slane %v972, 4
      %v975 = vor.u32 %v971, %v974
      %v976 = vsel %vm610, %v975, %v975
      %v978 = vshrl.u32 %v939, 16
      %v980 = vrot.slane %v978, 3
      %v981 = vshll.u32 %v939, 16
      %v983 = vrot.slane %v981, 4
      %v984 = vor.u32 %v980, %v983
      %v986 = vshrl.u32 %v941, 16
      %v988 = vrot.slane %v986, 3
      %v989 = vshll.u32 %v941, 16
      %v991 = vrot.slane %v989, 4
      %v992 = vor.u32 %v988, %v991
      %v993 = vsel %vm610, %v984, %v992
      %v995 = vshrl.u32 %v885, 16
      %v997 = vrot.slane %v995, 3
      %v998 = vshll.u32 %v885, 16
      %v1000 = vrot.slane %v998, 4
      %v1001 = vor.u32 %v997, %v1000
      %v1003 = vshrl.u32 %v886, 16
      %v1005 = vrot.slane %v1003, 3
      %v1006 = vshll.u32 %v886, 16
      %v1008 = vrot.slane %v1006, 4
      %v1009 = vor.u32 %v1005, %v1008
      %v1010 = vsel %vm610, %v1001, %v1009
      %v1012 = vshrl.u32 %v910, 16
      %v1014 = vrot.slane %v1012, 3
      %v1015 = vshll.u32 %v910, 16
      %v1017 = vrot.slane %v1015, 4
      %v1018 = vor.u32 %v1014, %v1017
      %v1019 = vsel %vm610, %v1018, %v1018
      %v1021 = vshrl.u32 %v942, 16
      %v1023 = vrot.slane %v1021, 3
      %v1024 = vshll.u32 %v942, 16
      %v1026 = vrot.slane %v1024, 4
      %v1027 = vor.u32 %v1023, %v1026
      %v1029 = vshrl.u32 %v944, 16
      %v1031 = vrot.slane %v1029, 3
      %v1032 = vshll.u32 %v944, 16
      %v1034 = vrot.slane %v1032, 4
      %v1035 = vor.u32 %v1031, %v1034
      %v1036 = vsel %vm610, %v1027, %v1035
      %v1038 = vshrl.u32 %v887, 16
      %v1040 = vrot.slane %v1038, 3
      %v1041 = vshll.u32 %v887, 16
      %v1043 = vrot.slane %v1041, 4
      %v1044 = vor.u32 %v1040, %v1043
      %v1046 = vshrl.u32 %v888, 16
      %v1048 = vrot.slane %v1046, 3
      %v1049 = vshll.u32 %v888, 16
      %v1051 = vrot.slane %v1049, 4
      %v1052 = vor.u32 %v1048, %v1051
      %v1053 = vsel %vm610, %v1044, %v1052
      %v1055 = vshrl.u32 %v918, 16
      %v1057 = vrot.slane %v1055, 3
      %v1058 = vshll.u32 %v918, 16
      %v1060 = vrot.slane %v1058, 4
      %v1061 = vor.u32 %v1057, %v1060
      %v1062 = vsel %vm610, %v1061, %v1061
      %v1064 = vshrl.u32 %v945, 16
      %v1066 = vrot.slane %v1064, 3
      %v1067 = vshll.u32 %v945, 16
      %v1069 = vrot.slane %v1067, 4
      %v1070 = vor.u32 %v1066, %v1069
      %v1072 = vshrl.u32 %v947, 16
      %v1074 = vrot.slane %v1072, 3
      %v1075 = vshll.u32 %v947, 16
      %v1077 = vrot.slane %v1075, 4
      %v1078 = vor.u32 %v1074, %v1077
      %v1079 = vsel %vm610, %v1070, %v1078
      %v1081 = vshrl.u32 %v889, 16
      %v1083 = vrot.slane %v1081, 3
      %v1084 = vshll.u32 %v889, 16
      %v1086 = vrot.slane %v1084, 4
      %v1087 = vor.u32 %v1083, %v1086
      %v1089 = vshrl.u32 %v890, 16
      %v1091 = vrot.slane %v1089, 3
      %v1092 = vshll.u32 %v890, 16
      %v1094 = vrot.slane %v1092, 4
      %v1095 = vor.u32 %v1091, %v1094
      %v1096 = vsel %vm610, %v1087, %v1095
      %v1098 = vshrl.u32 %v926, 16
      %v1100 = vrot.slane %v1098, 3
      %v1101 = vshll.u32 %v926, 16
      %v1103 = vrot.slane %v1101, 4
      %v1104 = vor.u32 %v1100, %v1103
      %v1105 = vsel %vm610, %v1104, %v1104
      %v1107 = vshrl.u32 %v948, 16
      %v1109 = vrot.slane %v1107, 3
      %v1110 = vshll.u32 %v948, 16
      %v1112 = vrot.slane %v1110, 4
      %v1113 = vor.u32 %v1109, %v1112
      %v1115 = vshrl.u32 %v950, 16
      %v1117 = vrot.slane %v1115, 3
      %v1118 = vshll.u32 %v950, 16
      %v1120 = vrot.slane %v1118, 4
      %v1121 = vor.u32 %v1117, %v1120
      %v1122 = vsel %vm610, %v1113, %v1121
      %s1135 = scalar_lea.vmem %s3, 192
      %v1136 = vld [vmem:[%s1135] sm:$0xf]
      %v1137 = vld [vmem:[%s1135 + $0x4] sm:$0xf]
      %v1138 = vld [vmem:[%s1135 + $0x8] sm:$0xf]
      %v1139 = vld [vmem:[%s1135 + $0xc] sm:$0xf]
      %v1140 = vld [vmem:[%s1135 + $0x10] sm:$0xf]
      %v1141 = vld [vmem:[%s1135 + $0x14] sm:$0xf]
      %v1142 = vld [vmem:[%s1135 + $0x18] sm:$0xf]
      %v1143 = vld [vmem:[%s1135 + $0x1c] sm:$0xf]
      %v1144 = vld [vmem:[%s1135 + $0x20] sm:$0xf]
      %v1145 = vld [vmem:[%s1135 + $0x24] sm:$0xf]
      %v1146 = vld [vmem:[%s1135 + $0x28] sm:$0xf]
      %v1147 = vld [vmem:[%s1135 + $0x2c] sm:$0xf]
      %v1148 = vld [vmem:[%s1135 + $0x30] sm:$0xf]
      %v1149 = vld [vmem:[%s1135 + $0x34] sm:$0xf]
      %v1150 = vld [vmem:[%s1135 + $0x38] sm:$0xf]
      %v1151 = vld [vmem:[%s1135 + $0x3c] sm:$0xf]
      %v1152 = vld [vmem:[%s1135 + $0x40] sm:$0xf]
      %v1153 = vld [vmem:[%s1135 + $0x44] sm:$0xf]
      %v1154 = vld [vmem:[%s1135 + $0x48] sm:$0xf]
      %v1155 = vld [vmem:[%s1135 + $0x4c] sm:$0xf]
      %v1156 = vld [vmem:[%s1135 + $0x50] sm:$0xf]
      %v1157 = vld [vmem:[%s1135 + $0x54] sm:$0xf]
      %v1158 = vld [vmem:[%s1135 + $0x58] sm:$0xf]
      %v1159 = vld [vmem:[%s1135 + $0x5c] sm:$0xf]
      %v1160 = vld [vmem:[%s1135 + $0x60] sm:$0xf]
      %v1161 = vld [vmem:[%s1135 + $0x64] sm:$0xf]
      %v1162 = vld [vmem:[%s1135 + $0x68] sm:$0xf]
      %v1163 = vld [vmem:[%s1135 + $0x6c] sm:$0xf]
      %v1164 = vld [vmem:[%s1135 + $0x70] sm:$0xf]
      %v1165 = vld [vmem:[%s1135 + $0x74] sm:$0xf]
      %v1166 = vld [vmem:[%s1135 + $0x78] sm:$0xf]
      %v1167 = vld [vmem:[%s1135 + $0x7c] sm:$0xf]
      %v1168 = vld [vmem:[%s1135 + $0x80] sm:$0xf]
      %v1169 = vld [vmem:[%s1135 + $0x84] sm:$0xf]
      %v1170 = vld [vmem:[%s1135 + $0x88] sm:$0xf]
      %v1171 = vld [vmem:[%s1135 + $0x8c] sm:$0xf]
      %v1172 = vld [vmem:[%s1135 + $0x90] sm:$0xf]
      %v1173 = vld [vmem:[%s1135 + $0x94] sm:$0xf]
      %v1174 = vld [vmem:[%s1135 + $0x98] sm:$0xf]
      %v1175 = vld [vmem:[%s1135 + $0x9c] sm:$0xf]
      %v1176 = vld [vmem:[%s1135 + $0xa0] sm:$0xf]
      %v1177 = vld [vmem:[%s1135 + $0xa4] sm:$0xf]
      %v1178 = vld [vmem:[%s1135 + $0xa8] sm:$0xf]
      %v1179 = vld [vmem:[%s1135 + $0xac] sm:$0xf]
      %v1180 = vld [vmem:[%s1135 + $0xb0] sm:$0xf]
      %v1181 = vld [vmem:[%s1135 + $0xb4] sm:$0xf]
      %v1182 = vld [vmem:[%s1135 + $0xb8] sm:$0xf]
      %v1183 = vld [vmem:[%s1135 + $0xbc] sm:$0xf]
      %v1232 = vunpack.c.l.b16 %v1136
      %v1233 = vunpack.c.l.b16 %v1137
      %v1234 = vunpack.c.l.b16 %v1138
      %v1235 = vunpack.c.l.b16 %v1139
      %v1236 = vunpack.c.l.b16 %v1140
      %v1237 = vunpack.c.l.b16 %v1141
      %v1238 = vunpack.c.l.b16 %v1142
      %v1239 = vunpack.c.l.b16 %v1143
      %v1240 = vunpack.c.l.b16 %v1144
      %v1241 = vunpack.c.l.b16 %v1145
      %v1242 = vunpack.c.l.b16 %v1146
      %v1243 = vunpack.c.l.b16 %v1147
      %v1244 = vunpack.c.l.b16 %v1148
      %v1245 = vunpack.c.l.b16 %v1149
      %v1246 = vunpack.c.l.b16 %v1150
      %v1247 = vunpack.c.l.b16 %v1151
      %v1248 = vunpack.c.l.b16 %v1152
      %v1249 = vunpack.c.l.b16 %v1153
      %v1250 = vunpack.c.l.b16 %v1154
      %v1251 = vunpack.c.l.b16 %v1155
      %v1252 = vunpack.c.l.b16 %v1156
      %v1253 = vunpack.c.l.b16 %v1157
      %v1254 = vunpack.c.l.b16 %v1158
      %v1255 = vunpack.c.l.b16 %v1159
      %v1256 = vunpack.c.l.b16 %v1160
      %v1257 = vunpack.c.l.b16 %v1161
      %v1258 = vunpack.c.l.b16 %v1162
      %v1259 = vunpack.c.l.b16 %v1163
      %v1260 = vunpack.c.l.b16 %v1164
      %v1261 = vunpack.c.l.b16 %v1165
      %v1262 = vunpack.c.l.b16 %v1166
      %v1263 = vunpack.c.l.b16 %v1167
      %v1264 = vunpack.c.l.b16 %v1168
      %v1265 = vunpack.c.l.b16 %v1169
      %v1266 = vunpack.c.l.b16 %v1170
      %v1267 = vunpack.c.l.b16 %v1171
      %v1268 = vunpack.c.l.b16 %v1172
      %v1269 = vunpack.c.l.b16 %v1173
      %v1270 = vunpack.c.l.b16 %v1174
      %v1271 = vunpack.c.l.b16 %v1175
      %v1272 = vunpack.c.l.b16 %v1176
      %v1273 = vunpack.c.l.b16 %v1177
      %v1274 = vunpack.c.l.b16 %v1178
      %v1275 = vunpack.c.l.b16 %v1179
      %v1276 = vunpack.c.l.b16 %v1180
      %v1277 = vunpack.c.l.b16 %v1181
      %v1278 = vunpack.c.l.b16 %v1182
      %v1279 = vunpack.c.l.b16 %v1183
      %v1280 = vpack.c.b16 %v1233, %v1232
      %v1281 = vpack.c.b16 %v1235, %v1234
      %v1282 = vpack.c.b16 %v1237, %v1236
      %v1283 = vpack.c.b16 %v1239, %v1238
      %v1284 = vpack.c.b16 %v1241, %v1240
      %v1285 = vpack.c.b16 %v1243, %v1242
      %v1286 = vpack.c.b16 %v1245, %v1244
      %v1287 = vpack.c.b16 %v1247, %v1246
      %v1288 = vpack.c.b16 %v1249, %v1248
      %v1289 = vpack.c.b16 %v1251, %v1250
      %v1290 = vpack.c.b16 %v1253, %v1252
      %v1291 = vpack.c.b16 %v1255, %v1254
      %v1292 = vpack.c.b16 %v1257, %v1256
      %v1293 = vpack.c.b16 %v1259, %v1258
      %v1294 = vpack.c.b16 %v1261, %v1260
      %v1295 = vpack.c.b16 %v1263, %v1262
      %v1296 = vpack.c.b16 %v1265, %v1264
      %v1297 = vpack.c.b16 %v1267, %v1266
      %v1298 = vpack.c.b16 %v1269, %v1268
      %v1299 = vpack.c.b16 %v1271, %v1270
      %v1300 = vpack.c.b16 %v1273, %v1272
      %v1301 = vpack.c.b16 %v1275, %v1274
      %v1302 = vpack.c.b16 %v1277, %v1276
      %v1303 = vpack.c.b16 %v1279, %v1278
      %1328 = vmatprep.subr.bf16.mxu0 0
      %1329 = vmatpush1.bf16.msra.mxu0 %v1280
      %1330 = vmatprep.subr.bf16.mxu0 0
      %1331 = vmatpush1.bf16.msra.mxu0 %v1281
      %1332 = vmatprep.subr.bf16.mxu0 0
      %1333 = vmatpush1.bf16.msra.mxu0 %v1282
      %1334 = vmatprep.subr.bf16.mxu0 0
      %1335 = vmatpush1.bf16.msra.mxu0 %v1283
      %1336 = vmatprep.subr.bf16.mxu0 0
      %1337 = vmatpush1.bf16.msra.mxu0 %v1284
      %1338 = vmatprep.subr.bf16.mxu0 0
      %1339 = vmatpush1.bf16.msra.mxu0 %v1285
      %1340 = vmatprep.subr.bf16.mxu0 0
      %1341 = vmatpush1.bf16.msra.mxu0 %v1286
      %1342 = vmatprep.subr.bf16.mxu0 0
      %1343 = vmatpush1.bf16.msra.mxu0 %v1287
      %1344 = vmatprep.subr.bf16.mxu0 0
      %1345 = vmatpush1.bf16.msra.mxu0 %v1288
      %1346 = vmatprep.subr.bf16.mxu0 0
      %1347 = vmatpush1.bf16.msra.mxu0 %v1289
      %1348 = vmatprep.subr.bf16.mxu0 0
      %1349 = vmatpush1.bf16.msra.mxu0 %v1290
      %1350 = vmatprep.subr.bf16.mxu0 0
      %1351 = vmatpush1.bf16.msra.mxu0 %v1291
      %1352 = vmatprep.subr.bf16.mxu0 0
      %1353 = vmatpush1.bf16.msra.mxu0 %v1292
      %1354 = vmatprep.subr.bf16.mxu0 0
      %1355 = vmatpush1.bf16.msra.mxu0 %v1293
      %1356 = vmatprep.subr.bf16.mxu0 0
      %1357 = vmatpush1.bf16.msra.mxu0 %v1294
      %1358 = vmatprep.subr.bf16.mxu0 0
      %1359 = vmatpush1.bf16.msra.mxu0 %v1295
      %1360 = vmatprep.mubr.bf16.mxu0 %v976
      %1361 = vmatmul.mubr.bf16.gmra.mrb[0].mxu0 %v967
      %v1362 = vpop.f32.mrb[0].mxu0
      %v1363 = vadd.f32 0.0, %v1362
      %v1364 = vpop.f32.mrb[0].mxu0
      %v1365 = vpop.f32.mrb[0].mxu0
      %v1366 = vadd.f32 0.0, %v1365
      %v1367 = vpop.f32.mrb[0].mxu0
      %1368 = vmatprep.mubr.bf16.mxu0 %v1019
      %1369 = vmatmul.mubr.bf16.gmra.mrb[0].mxu0 %v1010
      %v1370 = vpop.f32.mrb[0].mxu0
      %v1371 = vadd.f32 0.0, %v1370
      %v1372 = vpop.f32.mrb[0].mxu0
      %v1373 = vpop.f32.mrb[0].mxu0
      %v1374 = vadd.f32 0.0, %v1373
      %v1375 = vpop.f32.mrb[0].mxu0
      %1376 = vmatprep.mubr.bf16.mxu0 %v1062
      %1377 = vmatmul.mubr.bf16.gmra.mrb[0].mxu0 %v1053
      %v1378 = vpop.f32.mrb[0].mxu0
      %v1379 = vadd.f32 0.0, %v1378
      %v1380 = vpop.f32.mrb[0].mxu0
      %v1381 = vpop.f32.mrb[0].mxu0
      %v1382 = vadd.f32 0.0, %v1381
      %v1383 = vpop.f32.mrb[0].mxu0
      %1384 = vmatprep.mubr.bf16.mxu0 %v1105
      %1385 = vmatmul.mubr.bf16.gmra.mrb[0].mxu0 %v1096
      %v1386 = vpop.f32.mrb[0].mxu0
      %v1387 = vadd.f32 0.0, %v1386
      %v1388 = vpop.f32.mrb[0].mxu0
      %v1389 = vpop.f32.mrb[0].mxu0
      %v1390 = vadd.f32 0.0, %v1389
      %v1391 = vpop.f32.mrb[0].mxu0
      %1392 = vdwg.mxu0
      %1393 = vmatprep.subr.bf16.mxu0 0
      %1394 = vmatpush1.bf16.msra.mxu0 %v1296
      %1395 = vmatprep.subr.bf16.mxu0 0
      %1396 = vmatpush1.bf16.msra.mxu0 %v1297
      %1397 = vmatprep.subr.bf16.mxu0 0
      %1398 = vmatpush1.bf16.msra.mxu0 %v1298
      %1399 = vmatprep.subr.bf16.mxu0 0
      %1400 = vmatpush1.bf16.msra.mxu0 %v1299
      %1401 = vmatprep.subr.bf16.mxu0 0
      %1402 = vmatpush1.bf16.msra.mxu0 %v1300
      %1403 = vmatprep.subr.bf16.mxu0 0
      %1404 = vmatpush1.bf16.msra.mxu0 %v1301
      %1405 = vmatprep.subr.bf16.mxu0 0
      %1406 = vmatpush1.bf16.msra.mxu0 %v1302
      %1407 = vmatprep.subr.bf16.mxu0 0
      %1408 = vmatpush1.bf16.msra.mxu0 %v1303
      %1409 = vmatprep.subr.bf16.mxu0 0
      %1410 = vmatpush1.bf16.msra.mxu0 0
      %1411 = vmatprep.subr.bf16.mxu0 0
      %1412 = vmatpush1.bf16.msra.mxu0 0
      %1413 = vmatprep.subr.bf16.mxu0 0
      %1414 = vmatpush1.bf16.msra.mxu0 0
      %1415 = vmatprep.subr.bf16.mxu0 0
      %1416 = vmatpush1.bf16.msra.mxu0 0
      %1417 = vmatprep.subr.bf16.mxu0 0
      %1418 = vmatpush1.bf16.msra.mxu0 0
      %1419 = vmatprep.subr.bf16.mxu0 0
      %1420 = vmatpush1.bf16.msra.mxu0 0
      %1421 = vmatprep.subr.bf16.mxu0 0
      %1422 = vmatpush1.bf16.msra.mxu0 0
      %1423 = vmatprep.subr.bf16.mxu0 0
      %1424 = vmatpush1.bf16.msra.mxu0 0
      %1425 = vmatprep.mubr.bf16.mxu0 0
      %1426 = vmatmul.mubr.bf16.gmra.mrb[0].mxu0 %v993
      %v1427 = vpop.f32.mrb[0].mxu0
      %v1428 = vadd.f32 %v1363, %v1427
      %v1429 = vpop.f32.mrb[0].mxu0
      %v1430 = vpop.f32.mrb[0].mxu0
      %v1431 = vadd.f32 %v1366, %v1430
      %v1432 = vpop.f32.mrb[0].mxu0
      %1433 = vmatprep.mubr.bf16.mxu0 0
      %1434 = vmatmul.mubr.bf16.gmra.mrb[0].mxu0 %v1036
      %v1435 = vpop.f32.mrb[0].mxu0
      %v1436 = vadd.f32 %v1371, %v1435
      %v1437 = vpop.f32.mrb[0].mxu0
      %v1438 = vpop.f32.mrb[0].mxu0
      %v1439 = vadd.f32 %v1374, %v1438
      %v1440 = vpop.f32.mrb[0].mxu0
      %1441 = vmatprep.mubr.bf16.mxu0 0
      %1442 = vmatmul.mubr.bf16.gmra.mrb[0].mxu0 %v1079
      %v1443 = vpop.f32.mrb[0].mxu0
      %v1444 = vadd.f32 %v1379, %v1443
      %v1445 = vpop.f32.mrb[0].mxu0
      %v1446 = vpop.f32.mrb[0].mxu0
      %v1447 = vadd.f32 %v1382, %v1446
      %v1448 = vpop.f32.mrb[0].mxu0
      %1449 = vmatprep.mubr.bf16.mxu0 0
      %1450 = vmatmul.mubr.bf16.gmra.mrb[0].mxu0 %v1122
      %v1451 = vpop.f32.mrb[0].mxu0
      %v1452 = vadd.f32 %v1387, %v1451
      %v1453 = vpop.f32.mrb[0].mxu0
      %v1454 = vpop.f32.mrb[0].mxu0
      %v1455 = vadd.f32 %v1390, %v1454
      %v1456 = vpop.f32.mrb[0].mxu0
      %1457 = vdwg.mxu0
      %v1506 = vunpack.c.l.b16 %v795
      %v1507 = vunpack.c.l.b16 %v796
      %v1508 = vunpack.c.l.b16 %v797
      %v1509 = vunpack.c.l.b16 %v798
      %v1510 = vunpack.c.l.b16 %v799
      %v1511 = vunpack.c.l.b16 %v800
      %v1512 = vunpack.c.l.b16 %v801
      %v1513 = vunpack.c.l.b16 %v802
      %v1514 = vunpack.c.l.b16 %v803
      %v1515 = vunpack.c.l.b16 %v804
      %v1516 = vunpack.c.l.b16 %v805
      %v1517 = vunpack.c.l.b16 %v806
      %v1518 = vunpack.c.l.b16 %v807
      %v1519 = vunpack.c.l.b16 %v808
      %v1520 = vunpack.c.l.b16 %v809
      %v1521 = vunpack.c.l.b16 %v810
      %v1522 = vunpack.c.l.b16 %v811
      %v1523 = vunpack.c.l.b16 %v812
      %v1524 = vunpack.c.l.b16 %v813
      %v1525 = vunpack.c.l.b16 %v814
      %v1526 = vunpack.c.l.b16 %v815
      %v1527 = vunpack.c.l.b16 %v816
      %v1528 = vunpack.c.l.b16 %v817
      %v1529 = vunpack.c.l.b16 %v818
      %v1530 = vunpack.c.l.b16 %v819
      %v1531 = vunpack.c.l.b16 %v820
      %v1532 = vunpack.c.l.b16 %v821
      %v1533 = vunpack.c.l.b16 %v822
      %v1534 = vunpack.c.l.b16 %v823
      %v1535 = vunpack.c.l.b16 %v824
      %v1536 = vunpack.c.l.b16 %v825
      %v1537 = vunpack.c.l.b16 %v826
      %v1538 = vunpack.c.l.b16 %v827
      %v1539 = vunpack.c.l.b16 %v828
      %v1540 = vunpack.c.l.b16 %v829
      %v1541 = vunpack.c.l.b16 %v830
      %v1542 = vunpack.c.l.b16 %v831
      %v1543 = vunpack.c.l.b16 %v832
      %v1544 = vunpack.c.l.b16 %v833
      %v1545 = vunpack.c.l.b16 %v834
      %v1546 = vunpack.c.l.b16 %v835
      %v1547 = vunpack.c.l.b16 %v836
      %v1548 = vunpack.c.l.b16 %v837
      %v1549 = vunpack.c.l.b16 %v838
      %v1550 = vunpack.c.l.b16 %v839
      %v1551 = vunpack.c.l.b16 %v840
      %v1552 = vunpack.c.l.b16 %v841
      %v1553 = vunpack.c.l.b16 %v842
      %v1554 = vpack.c.b16 %v1507, %v1506
      %v1555 = vpack.c.b16 %v1509, %v1508
      %v1556 = vpack.c.b16 %v1511, %v1510
      %v1557 = vpack.c.b16 %v1513, %v1512
      %v1558 = vpack.c.b16 %v1515, %v1514
      %v1559 = vpack.c.b16 %v1517, %v1516
      %v1560 = vpack.c.b16 %v1519, %v1518
      %v1561 = vpack.c.b16 %v1521, %v1520
      %v1562 = vpack.c.b16 %v1523, %v1522
      %v1563 = vpack.c.b16 %v1525, %v1524
      %v1564 = vpack.c.b16 %v1527, %v1526
      %v1565 = vpack.c.b16 %v1529, %v1528
      %v1566 = vpack.c.b16 %v1531, %v1530
      %v1567 = vpack.c.b16 %v1533, %v1532
      %v1568 = vpack.c.b16 %v1535, %v1534
      %v1569 = vpack.c.b16 %v1537, %v1536
      %v1570 = vpack.c.b16 %v1539, %v1538
      %v1571 = vpack.c.b16 %v1541, %v1540
      %v1572 = vpack.c.b16 %v1543, %v1542
      %v1573 = vpack.c.b16 %v1545, %v1544
      %v1574 = vpack.c.b16 %v1547, %v1546
      %v1575 = vpack.c.b16 %v1549, %v1548
      %v1576 = vpack.c.b16 %v1551, %v1550
      %v1577 = vpack.c.b16 %v1553, %v1552
      %1602 = vmatprep.subr.bf16.mxu0 0
      %1603 = vmatpush1.bf16.msra.mxu0 %v1554
      %1604 = vmatprep.subr.bf16.mxu0 0
      %1605 = vmatpush1.bf16.msra.mxu0 %v1555
      %1606 = vmatprep.subr.bf16.mxu0 0
      %1607 = vmatpush1.bf16.msra.mxu0 %v1556
      %1608 = vmatprep.subr.bf16.mxu0 0
      %1609 = vmatpush1.bf16.msra.mxu0 %v1557
      %1610 = vmatprep.subr.bf16.mxu0 0
      %1611 = vmatpush1.bf16.msra.mxu0 %v1558
      %1612 = vmatprep.subr.bf16.mxu0 0
      %1613 = vmatpush1.bf16.msra.mxu0 %v1559
      %1614 = vmatprep.subr.bf16.mxu0 0
      %1615 = vmatpush1.bf16.msra.mxu0 %v1560
      %1616 = vmatprep.subr.bf16.mxu0 0
      %1617 = vmatpush1.bf16.msra.mxu0 %v1561
      %1618 = vmatprep.subr.bf16.mxu0 0
      %1619 = vmatpush1.bf16.msra.mxu0 %v1562
      %1620 = vmatprep.subr.bf16.mxu0 0
      %1621 = vmatpush1.bf16.msra.mxu0 %v1563
      %1622 = vmatprep.subr.bf16.mxu0 0
      %1623 = vmatpush1.bf16.msra.mxu0 %v1564
      %1624 = vmatprep.subr.bf16.mxu0 0
      %1625 = vmatpush1.bf16.msra.mxu0 %v1565
      %1626 = vmatprep.subr.bf16.mxu0 0
      %1627 = vmatpush1.bf16.msra.mxu0 %v1566
      %1628 = vmatprep.subr.bf16.mxu0 0
      %1629 = vmatpush1.bf16.msra.mxu0 %v1567
      %1630 = vmatprep.subr.bf16.mxu0 0
      %1631 = vmatpush1.bf16.msra.mxu0 %v1568
      %1632 = vmatprep.subr.bf16.mxu0 0
      %1633 = vmatpush1.bf16.msra.mxu0 %v1569
      %1634 = vmatprep.mubr.bf16.mxu0 %v636
      %1635 = vmatmul.mubr.bf16.gmra.mrb[0].mxu0 %v627
      %v1636 = vpop.f32.mrb[0].mxu0
      %v1637 = vadd.f32 %v1428, %v1636
      %v1638 = vpop.f32.mrb[0].mxu0
      %v1639 = vpop.f32.mrb[0].mxu0
      %v1640 = vadd.f32 %v1431, %v1639
      %v1641 = vpop.f32.mrb[0].mxu0
      %1642 = vmatprep.mubr.bf16.mxu0 %v679
      %1643 = vmatmul.mubr.bf16.gmra.mrb[0].mxu0 %v670
      %v1644 = vpop.f32.mrb[0].mxu0
      %v1645 = vadd.f32 %v1436, %v1644
      %v1646 = vpop.f32.mrb[0].mxu0
      %v1647 = vpop.f32.mrb[0].mxu0
      %v1648 = vadd.f32 %v1439, %v1647
      %v1649 = vpop.f32.mrb[0].mxu0
      %1650 = vmatprep.mubr.bf16.mxu0 %v722
      %1651 = vmatmul.mubr.bf16.gmra.mrb[0].mxu0 %v713
      %v1652 = vpop.f32.mrb[0].mxu0
      %v1653 = vadd.f32 %v1444, %v1652
      %v1654 = vpop.f32.mrb[0].mxu0
      %v1655 = vpop.f32.mrb[0].mxu0
      %v1656 = vadd.f32 %v1447, %v1655
      %v1657 = vpop.f32.mrb[0].mxu0
      %1658 = vmatprep.mubr.bf16.mxu0 %v765
      %1659 = vmatmul.mubr.bf16.gmra.mrb[0].mxu0 %v756
      %v1660 = vpop.f32.mrb[0].mxu0
      %v1661 = vadd.f32 %v1452, %v1660
      %v1662 = vpop.f32.mrb[0].mxu0
      %v1663 = vpop.f32.mrb[0].mxu0
      %v1664 = vadd.f32 %v1455, %v1663
      %v1665 = vpop.f32.mrb[0].mxu0
      %1666 = vdwg.mxu0
      %1667 = vmatprep.subr.bf16.mxu0 0
      %1668 = vmatpush1.bf16.msra.mxu0 %v1570
      %1669 = vmatprep.subr.bf16.mxu0 0
      %1670 = vmatpush1.bf16.msra.mxu0 %v1571
      %1671 = vmatprep.subr.bf16.mxu0 0
      %1672 = vmatpush1.bf16.msra.mxu0 %v1572
      %1673 = vmatprep.subr.bf16.mxu0 0
      %1674 = vmatpush1.bf16.msra.mxu0 %v1573
      %1675 = vmatprep.subr.bf16.mxu0 0
      %1676 = vmatpush1.bf16.msra.mxu0 %v1574
      %1677 = vmatprep.subr.bf16.mxu0 0
      %1678 = vmatpush1.bf16.msra.mxu0 %v1575
      %1679 = vmatprep.subr.bf16.mxu0 0
      %1680 = vmatpush1.bf16.msra.mxu0 %v1576
      %1681 = vmatprep.subr.bf16.mxu0 0
      %1682 = vmatpush1.bf16.msra.mxu0 %v1577
      %1683 = vmatprep.subr.bf16.mxu0 0
      %1684 = vmatpush1.bf16.msra.mxu0 0
      %1685 = vmatprep.subr.bf16.mxu0 0
      %1686 = vmatpush1.bf16.msra.mxu0 0
      %1687 = vmatprep.subr.bf16.mxu0 0
      %1688 = vmatpush1.bf16.msra.mxu0 0
      %1689 = vmatprep.subr.bf16.mxu0 0
      %1690 = vmatpush1.bf16.msra.mxu0 0
      %1691 = vmatprep.subr.bf16.mxu0 0
      %1692 = vmatpush1.bf16.msra.mxu0 0
      %1693 = vmatprep.subr.bf16.mxu0 0
      %1694 = vmatpush1.bf16.msra.mxu0 0
      %1695 = vmatprep.subr.bf16.mxu0 0
      %1696 = vmatpush1.bf16.msra.mxu0 0
      %1697 = vmatprep.subr.bf16.mxu0 0
      %1698 = vmatpush1.bf16.msra.mxu0 0
      %1699 = vmatprep.mubr.bf16.mxu0 0
      %1700 = vmatmul.mubr.bf16.gmra.mrb[0].mxu0 %v653
      %v1701 = vpop.f32.mrb[0].mxu0
      %v1702 = vadd.f32 %v1637, %v1701
      %v1703 = vpop.f32.mrb[0].mxu0
      %v1704 = vpop.f32.mrb[0].mxu0
      %v1705 = vadd.f32 %v1640, %v1704
      %v1706 = vpop.f32.mrb[0].mxu0
      %1707 = vmatprep.mubr.bf16.mxu0 0
      %1708 = vmatmul.mubr.bf16.gmra.mrb[0].mxu0 %v696
      %v1709 = vpop.f32.mrb[0].mxu0
      %v1710 = vadd.f32 %v1645, %v1709
      %v1711 = vpop.f32.mrb[0].mxu0
      %v1712 = vpop.f32.mrb[0].mxu0
      %v1713 = vadd.f32 %v1648, %v1712
      %v1714 = vpop.f32.mrb[0].mxu0
      %1715 = vmatprep.mubr.bf16.mxu0 0
      %1716 = vmatmul.mubr.bf16.gmra.mrb[0].mxu0 %v739
      %v1717 = vpop.f32.mrb[0].mxu0
      %v1718 = vadd.f32 %v1653, %v1717
      %v1719 = vpop.f32.mrb[0].mxu0
      %v1720 = vpop.f32.mrb[0].mxu0
      %v1721 = vadd.f32 %v1656, %v1720
      %v1722 = vpop.f32.mrb[0].mxu0
      %1723 = vmatprep.mubr.bf16.mxu0 0
      %1724 = vmatmul.mubr.bf16.gmra.mrb[0].mxu0 %v782
      %v1725 = vpop.f32.mrb[0].mxu0
      %v1726 = vadd.f32 %v1661, %v1725
      %v1727 = vpop.f32.mrb[0].mxu0
      %v1728 = vpop.f32.mrb[0].mxu0
      %v1729 = vadd.f32 %v1664, %v1728
      %v1730 = vpop.f32.mrb[0].mxu0
      %1731 = vdwg.mxu0
      %s1732 = scalar_lea.vmem [#allocation2], 32
      %v1733 = vld [vmem:[%s1732] sm:$0x8]
      %v1734 = vld [vmem:[%s1732 + $0x4] sm:$0xf]
      %v1735 = vld [vmem:[%s1732 + $0x8] sm:$0xf]
      %v1736 = vld [vmem:[%s1732 + $0x10] sm:$0x8]
      %v1737 = vld [vmem:[%s1732 + $0x14] sm:$0xf]
      %v1738 = vld [vmem:[%s1732 + $0x18] sm:$0xf]
      %v1739 = vld [vmem:[%s1732 + $0x20] sm:$0x8]
      %v1740 = vld [vmem:[%s1732 + $0x24] sm:$0xf]
      %v1741 = vld [vmem:[%s1732 + $0x28] sm:$0xf]
      %v1742 = vld [vmem:[%s1732 + $0x30] sm:$0x8]
      %v1743 = vld [vmem:[%s1732 + $0x34] sm:$0xf]
      %v1744 = vld [vmem:[%s1732 + $0x38] sm:$0xf]
      %v1745 = vld [vmem:[%s1732 + $0xc] sm:$0x1]
      %v1746 = vld [vmem:[%s1732 + $0x1c] sm:$0x1]
      %v1747 = vld [vmem:[%s1732 + $0x2c] sm:$0x1]
      %v1748 = vld [vmem:[%s1732 + $0x3c] sm:$0x1]
      %v1761 = vunpack.c.l.b16 %v1733
      %v1762 = vunpack.c.l.b16 %v1734
      %v1763 = vunpack.c.l.b16 %v1735
      %v1764 = vunpack.c.l.b16 %v1736
      %v1765 = vunpack.c.l.b16 %v1737
      %v1766 = vunpack.c.l.b16 %v1738
      %v1767 = vunpack.c.l.b16 %v1739
      %v1768 = vunpack.c.l.b16 %v1740
      %v1769 = vunpack.c.l.b16 %v1741
      %v1770 = vunpack.c.l.b16 %v1742
      %v1771 = vunpack.c.l.b16 %v1743
      %v1772 = vunpack.c.l.b16 %v1744
      %v1773 = vpack.c.b16 %v1762, %v1761
      %v1774 = vpack.c.b16 %v1763, %v1763
      %v1775 = vpack.c.b16 %v1765, %v1764
      %v1776 = vpack.c.b16 %v1766, %v1766
      %v1777 = vpack.c.b16 %v1768, %v1767
      %v1778 = vpack.c.b16 %v1769, %v1769
      %v1779 = vpack.c.b16 %v1771, %v1770
      %v1780 = vpack.c.b16 %v1772, %v1772
      %v1781 = vpack.c.b16 %v1763, %v1762
      %v1782 = vpack.c.b16 %v1766, %v1765
      %v1783 = vpack.c.b16 %v1769, %v1768
      %v1784 = vpack.c.b16 %v1772, %v1771
      %v1786 = vshrl.u32 %v1781, 16
      %v1788 = vrot.slane %v1786, 4
      %v1789 = vshll.u32 %v1781, 16
      %v1791 = vrot.slane %v1789, 5
      %v1792 = vor.u32 %v1788, %v1791
      %v1794 = vshrl.u32 %v1782, 16
      %v1796 = vrot.slane %v1794, 4
      %v1797 = vshll.u32 %v1782, 16
      %v1799 = vrot.slane %v1797, 5
      %v1800 = vor.u32 %v1796, %v1799
      %v1802 = vshrl.u32 %v1783, 16
      %v1804 = vrot.slane %v1802, 4
      %v1805 = vshll.u32 %v1783, 16
      %v1807 = vrot.slane %v1805, 5
      %v1808 = vor.u32 %v1804, %v1807
      %v1810 = vshrl.u32 %v1784, 16
      %v1812 = vrot.slane %v1810, 4
      %v1813 = vshll.u32 %v1784, 16
      %v1815 = vrot.slane %v1813, 5
      %v1816 = vor.u32 %v1812, %v1815
      %v1821 = vunpack.c.l.b16 %v1745
      %v1822 = vunpack.c.l.b16 %v1746
      %v1823 = vunpack.c.l.b16 %v1747
      %v1824 = vunpack.c.l.b16 %v1748
      %v1825 = vpack.c.b16 %v1821, %v1821
      %v1826 = vpack.c.b16 %v1822, %v1822
      %v1827 = vpack.c.b16 %v1823, %v1823
      %v1828 = vpack.c.b16 %v1824, %v1824
      %v1829 = vrot.slane %v1781, 5
      %v1830 = vrot.slane %v1825, 5
      %v1831 = vsel %vm597, %v1829, %v1830
      %v1832 = vrot.slane %v1782, 5
      %v1833 = vrot.slane %v1826, 5
      %v1834 = vsel %vm597, %v1832, %v1833
      %v1835 = vrot.slane %v1783, 5
      %v1836 = vrot.slane %v1827, 5
      %v1837 = vsel %vm597, %v1835, %v1836
      %v1838 = vrot.slane %v1784, 5
      %v1839 = vrot.slane %v1828, 5
      %v1840 = vsel %vm597, %v1838, %v1839
      %v1842 = vshrl.u32 %v1773, 16
      %v1844 = vrot.slane %v1842, 3
      %v1845 = vshll.u32 %v1773, 16
      %v1847 = vrot.slane %v1845, 4
      %v1848 = vor.u32 %v1844, %v1847
      %v1850 = vshrl.u32 %v1774, 16
      %v1852 = vrot.slane %v1850, 3
      %v1853 = vshll.u32 %v1774, 16
      %v1855 = vrot.slane %v1853, 4
      %v1856 = vor.u32 %v1852, %v1855
      %v1857 = vsel %vm610, %v1848, %v1856
      %v1859 = vshrl.u32 %v1792, 16
      %v1861 = vrot.slane %v1859, 3
      %v1862 = vshll.u32 %v1792, 16
      %v1864 = vrot.slane %v1862, 4
      %v1865 = vor.u32 %v1861, %v1864
      %v1866 = vsel %vm610, %v1865, %v1865
      %v1868 = vshrl.u32 %v1829, 16
      %v1870 = vrot.slane %v1868, 3
      %v1871 = vshll.u32 %v1829, 16
      %v1873 = vrot.slane %v1871, 4
      %v1874 = vor.u32 %v1870, %v1873
      %v1876 = vshrl.u32 %v1831, 16
      %v1878 = vrot.slane %v1876, 3
      %v1879 = vshll.u32 %v1831, 16
      %v1881 = vrot.slane %v1879, 4
      %v1882 = vor.u32 %v1878, %v1881
      %v1883 = vsel %vm610, %v1874, %v1882
      %v1885 = vshrl.u32 %v1775, 16
      %v1887 = vrot.slane %v1885, 3
      %v1888 = vshll.u32 %v1775, 16
      %v1890 = vrot.slane %v1888, 4
      %v1891 = vor.u32 %v1887, %v1890
      %v1893 = vshrl.u32 %v1776, 16
      %v1895 = vrot.slane %v1893, 3
      %v1896 = vshll.u32 %v1776, 16
      %v1898 = vrot.slane %v1896, 4
      %v1899 = vor.u32 %v1895, %v1898
      %v1900 = vsel %vm610, %v1891, %v1899
      %v1902 = vshrl.u32 %v1800, 16
      %v1904 = vrot.slane %v1902, 3
      %v1905 = vshll.u32 %v1800, 16
      %v1907 = vrot.slane %v1905, 4
      %v1908 = vor.u32 %v1904, %v1907
      %v1909 = vsel %vm610, %v1908, %v1908
      %v1911 = vshrl.u32 %v1832, 16
      %v1913 = vrot.slane %v1911, 3
      %v1914 = vshll.u32 %v1832, 16
      %v1916 = vrot.slane %v1914, 4
      %v1917 = vor.u32 %v1913, %v1916
      %v1919 = vshrl.u32 %v1834, 16
      %v1921 = vrot.slane %v1919, 3
      %v1922 = vshll.u32 %v1834, 16
      %v1924 = vrot.slane %v1922, 4
      %v1925 = vor.u32 %v1921, %v1924
      %v1926 = vsel %vm610, %v1917, %v1925
      %v1928 = vshrl.u32 %v1777, 16
      %v1930 = vrot.slane %v1928, 3
      %v1931 = vshll.u32 %v1777, 16
      %v1933 = vrot.slane %v1931, 4
      %v1934 = vor.u32 %v1930, %v1933
      %v1936 = vshrl.u32 %v1778, 16
      %v1938 = vrot.slane %v1936, 3
      %v1939 = vshll.u32 %v1778, 16
      %v1941 = vrot.slane %v1939, 4
      %v1942 = vor.u32 %v1938, %v1941
      %v1943 = vsel %vm610, %v1934, %v1942
      %v1945 = vshrl.u32 %v1808, 16
      %v1947 = vrot.slane %v1945, 3
      %v1948 = vshll.u32 %v1808, 16
      %v1950 = vrot.slane %v1948, 4
      %v1951 = vor.u32 %v1947, %v1950
      %v1952 = vsel %vm610, %v1951, %v1951
      %v1954 = vshrl.u32 %v1835, 16
      %v1956 = vrot.slane %v1954, 3
      %v1957 = vshll.u32 %v1835, 16
      %v1959 = vrot.slane %v1957, 4
      %v1960 = vor.u32 %v1956, %v1959
      %v1962 = vshrl.u32 %v1837, 16
      %v1964 = vrot.slane %v1962, 3
      %v1965 = vshll.u32 %v1837, 16
      %v1967 = vrot.slane %v1965, 4
      %v1968 = vor.u32 %v1964, %v1967
      %v1969 = vsel %vm610, %v1960, %v1968
      %v1971 = vshrl.u32 %v1779, 16
      %v1973 = vrot.slane %v1971, 3
      %v1974 = vshll.u32 %v1779, 16
      %v1976 = vrot.slane %v1974, 4
      %v1977 = vor.u32 %v1973, %v1976
      %v1979 = vshrl.u32 %v1780, 16
      %v1981 = vrot.slane %v1979, 3
      %v1982 = vshll.u32 %v1780, 16
      %v1984 = vrot.slane %v1982, 4
      %v1985 = vor.u32 %v1981, %v1984
      %v1986 = vsel %vm610, %v1977, %v1985
      %v1988 = vshrl.u32 %v1816, 16
      %v1990 = vrot.slane %v1988, 3
      %v1991 = vshll.u32 %v1816, 16
      %v1993 = vrot.slane %v1991, 4
      %v1994 = vor.u32 %v1990, %v1993
      %v1995 = vsel %vm610, %v1994, %v1994
      %v1997 = vshrl.u32 %v1838, 16
      %v1999 = vrot.slane %v1997, 3
      %v2000 = vshll.u32 %v1838, 16
      %v2002 = vrot.slane %v2000, 4
      %v2003 = vor.u32 %v1999, %v2002
      %v2005 = vshrl.u32 %v1840, 16
      %v2007 = vrot.slane %v2005, 3
      %v2008 = vshll.u32 %v1840, 16
      %v2010 = vrot.slane %v2008, 4
      %v2011 = vor.u32 %v2007, %v2010
      %v2012 = vsel %vm610, %v2003, %v2011
      %s2025 = scalar_lea.vmem %s3, 384
      %v2026 = vld [vmem:[%s2025] sm:$0xf]
      %v2027 = vld [vmem:[%s2025 + $0x4] sm:$0xf]
      %v2028 = vld [vmem:[%s2025 + $0x8] sm:$0xf]
      %v2029 = vld [vmem:[%s2025 + $0xc] sm:$0xf]
      %v2030 = vld [vmem:[%s2025 + $0x10] sm:$0xf]
      %v2031 = vld [vmem:[%s2025 + $0x14] sm:$0xf]
      %v2032 = vld [vmem:[%s2025 + $0x18] sm:$0xf]
      %v2033 = vld [vmem:[%s2025 + $0x1c] sm:$0xf]
      %v2034 = vld [vmem:[%s2025 + $0x20] sm:$0xf]
      %v2035 = vld [vmem:[%s2025 + $0x24] sm:$0xf]
      %v2036 = vld [vmem:[%s2025 + $0x28] sm:$0xf]
      %v2037 = vld [vmem:[%s2025 + $0x2c] sm:$0xf]
      %v2038 = vld [vmem:[%s2025 + $0x30] sm:$0xf]
      %v2039 = vld [vmem:[%s2025 + $0x34] sm:$0xf]
      %v2040 = vld [vmem:[%s2025 + $0x38] sm:$0xf]
      %v2041 = vld [vmem:[%s2025 + $0x3c] sm:$0xf]
      %v2042 = vld [vmem:[%s2025 + $0x40] sm:$0xf]
      %v2043 = vld [vmem:[%s2025 + $0x44] sm:$0xf]
      %v2044 = vld [vmem:[%s2025 + $0x48] sm:$0xf]
      %v2045 = vld [vmem:[%s2025 + $0x4c] sm:$0xf]
      %v2046 = vld [vmem:[%s2025 + $0x50] sm:$0xf]
      %v2047 = vld [vmem:[%s2025 + $0x54] sm:$0xf]
      %v2048 = vld [vmem:[%s2025 + $0x58] sm:$0xf]
      %v2049 = vld [vmem:[%s2025 + $0x5c] sm:$0xf]
      %v2050 = vld [vmem:[%s2025 + $0x60] sm:$0xf]
      %v2051 = vld [vmem:[%s2025 + $0x64] sm:$0xf]
      %v2052 = vld [vmem:[%s2025 + $0x68] sm:$0xf]
      %v2053 = vld [vmem:[%s2025 + $0x6c] sm:$0xf]
      %v2054 = vld [vmem:[%s2025 + $0x70] sm:$0xf]
      %v2055 = vld [vmem:[%s2025 + $0x74] sm:$0xf]
      %v2056 = vld [vmem:[%s2025 + $0x78] sm:$0xf]
      %v2057 = vld [vmem:[%s2025 + $0x7c] sm:$0xf]
      %v2058 = vld [vmem:[%s2025 + $0x80] sm:$0xf]
      %v2059 = vld [vmem:[%s2025 + $0x84] sm:$0xf]
      %v2060 = vld [vmem:[%s2025 + $0x88] sm:$0xf]
      %v2061 = vld [vmem:[%s2025 + $0x8c] sm:$0xf]
      %v2062 = vld [vmem:[%s2025 + $0x90] sm:$0xf]
      %v2063 = vld [vmem:[%s2025 + $0x94] sm:$0xf]
      %v2064 = vld [vmem:[%s2025 + $0x98] sm:$0xf]
      %v2065 = vld [vmem:[%s2025 + $0x9c] sm:$0xf]
      %v2066 = vld [vmem:[%s2025 + $0xa0] sm:$0xf]
      %v2067 = vld [vmem:[%s2025 + $0xa4] sm:$0xf]
      %v2068 = vld [vmem:[%s2025 + $0xa8] sm:$0xf]
      %v2069 = vld [vmem:[%s2025 + $0xac] sm:$0xf]
      %v2070 = vld [vmem:[%s2025 + $0xb0] sm:$0xf]
      %v2071 = vld [vmem:[%s2025 + $0xb4] sm:$0xf]
      %v2072 = vld [vmem:[%s2025 + $0xb8] sm:$0xf]
      %v2073 = vld [vmem:[%s2025 + $0xbc] sm:$0xf]
      %v2122 = vunpack.c.l.b16 %v2026
      %v2123 = vunpack.c.l.b16 %v2027
      %v2124 = vunpack.c.l.b16 %v2028
      %v2125 = vunpack.c.l.b16 %v2029
      %v2126 = vunpack.c.l.b16 %v2030
      %v2127 = vunpack.c.l.b16 %v2031
      %v2128 = vunpack.c.l.b16 %v2032
      %v2129 = vunpack.c.l.b16 %v2033
      %v2130 = vunpack.c.l.b16 %v2034
      %v2131 = vunpack.c.l.b16 %v2035
      %v2132 = vunpack.c.l.b16 %v2036
      %v2133 = vunpack.c.l.b16 %v2037
      %v2134 = vunpack.c.l.b16 %v2038
      %v2135 = vunpack.c.l.b16 %v2039
      %v2136 = vunpack.c.l.b16 %v2040
      %v2137 = vunpack.c.l.b16 %v2041
      %v2138 = vunpack.c.l.b16 %v2042
      %v2139 = vunpack.c.l.b16 %v2043
      %v2140 = vunpack.c.l.b16 %v2044
      %v2141 = vunpack.c.l.b16 %v2045
      %v2142 = vunpack.c.l.b16 %v2046
      %v2143 = vunpack.c.l.b16 %v2047
      %v2144 = vunpack.c.l.b16 %v2048
      %v2145 = vunpack.c.l.b16 %v2049
      %v2146 = vunpack.c.l.b16 %v2050
      %v2147 = vunpack.c.l.b16 %v2051
      %v2148 = vunpack.c.l.b16 %v2052
      %v2149 = vunpack.c.l.b16 %v2053
      %v2150 = vunpack.c.l.b16 %v2054
      %v2151 = vunpack.c.l.b16 %v2055
      %v2152 = vunpack.c.l.b16 %v2056
      %v2153 = vunpack.c.l.b16 %v2057
      %v2154 = vunpack.c.l.b16 %v2058
      %v2155 = vunpack.c.l.b16 %v2059
      %v2156 = vunpack.c.l.b16 %v2060
      %v2157 = vunpack.c.l.b16 %v2061
      %v2158 = vunpack.c.l.b16 %v2062
      %v2159 = vunpack.c.l.b16 %v2063
      %v2160 = vunpack.c.l.b16 %v2064
      %v2161 = vunpack.c.l.b16 %v2065
      %v2162 = vunpack.c.l.b16 %v2066
      %v2163 = vunpack.c.l.b16 %v2067
      %v2164 = vunpack.c.l.b16 %v2068
      %v2165 = vunpack.c.l.b16 %v2069
      %v2166 = vunpack.c.l.b16 %v2070
      %v2167 = vunpack.c.l.b16 %v2071
      %v2168 = vunpack.c.l.b16 %v2072
      %v2169 = vunpack.c.l.b16 %v2073
      %v2170 = vpack.c.b16 %v2123, %v2122
      %v2171 = vpack.c.b16 %v2125, %v2124
      %v2172 = vpack.c.b16 %v2127, %v2126
      %v2173 = vpack.c.b16 %v2129, %v2128
      %v2174 = vpack.c.b16 %v2131, %v2130
      %v2175 = vpack.c.b16 %v2133, %v2132
      %v2176 = vpack.c.b16 %v2135, %v2134
      %v2177 = vpack.c.b16 %v2137, %v2136
      %v2178 = vpack.c.b16 %v2139, %v2138
      %v2179 = vpack.c.b16 %v2141, %v2140
      %v2180 = vpack.c.b16 %v2143, %v2142
      %v2181 = vpack.c.b16 %v2145, %v2144
      %v2182 = vpack.c.b16 %v2147, %v2146
      %v2183 = vpack.c.b16 %v2149, %v2148
      %v2184 = vpack.c.b16 %v2151, %v2150
      %v2185 = vpack.c.b16 %v2153, %v2152
      %v2186 = vpack.c.b16 %v2155, %v2154
      %v2187 = vpack.c.b16 %v2157, %v2156
      %v2188 = vpack.c.b16 %v2159, %v2158
      %v2189 = vpack.c.b16 %v2161, %v2160
      %v2190 = vpack.c.b16 %v2163, %v2162
      %v2191 = vpack.c.b16 %v2165, %v2164
      %v2192 = vpack.c.b16 %v2167, %v2166
      %v2193 = vpack.c.b16 %v2169, %v2168
      %2218 = vmatprep.subr.bf16.mxu0 0
      %2219 = vmatpush1.bf16.msra.mxu0 %v2170
      %2220 = vmatprep.subr.bf16.mxu0 0
      %2221 = vmatpush1.bf16.msra.mxu0 %v2171
      %2222 = vmatprep.subr.bf16.mxu0 0
      %2223 = vmatpush1.bf16.msra.mxu0 %v2172
      %2224 = vmatprep.subr.bf16.mxu0 0
      %2225 = vmatpush1.bf16.msra.mxu0 %v2173
      %2226 = vmatprep.subr.bf16.mxu0 0
      %2227 = vmatpush1.bf16.msra.mxu0 %v2174
      %2228 = vmatprep.subr.bf16.mxu0 0
      %2229 = vmatpush1.bf16.msra.mxu0 %v2175
      %2230 = vmatprep.subr.bf16.mxu0 0
      %2231 = vmatpush1.bf16.msra.mxu0 %v2176
      %2232 = vmatprep.subr.bf16.mxu0 0
      %2233 = vmatpush1.bf16.msra.mxu0 %v2177
      %2234 = vmatprep.subr.bf16.mxu0 0
      %2235 = vmatpush1.bf16.msra.mxu0 %v2178
      %2236 = vmatprep.subr.bf16.mxu0 0
      %2237 = vmatpush1.bf16.msra.mxu0 %v2179
      %2238 = vmatprep.subr.bf16.mxu0 0
      %2239 = vmatpush1.bf16.msra.mxu0 %v2180
      %2240 = vmatprep.subr.bf16.mxu0 0
      %2241 = vmatpush1.bf16.msra.mxu0 %v2181
      %2242 = vmatprep.subr.bf16.mxu0 0
      %2243 = vmatpush1.bf16.msra.mxu0 %v2182
      %2244 = vmatprep.subr.bf16.mxu0 0
      %2245 = vmatpush1.bf16.msra.mxu0 %v2183
      %2246 = vmatprep.subr.bf16.mxu0 0
      %2247 = vmatpush1.bf16.msra.mxu0 %v2184
      %2248 = vmatprep.subr.bf16.mxu0 0
      %2249 = vmatpush1.bf16.msra.mxu0 %v2185
      %2250 = vmatprep.mubr.bf16.mxu0 %v1866
      %2251 = vmatmul.mubr.bf16.gmra.mrb[0].mxu0 %v1857
      %v2252 = vpop.f32.mrb[0].mxu0
      %v2253 = vadd.f32 0.0, %v2252
      %v2254 = vpop.f32.mrb[0].mxu0
      %v2255 = vpop.f32.mrb[0].mxu0
      %v2256 = vadd.f32 0.0, %v2255
      %v2257 = vpop.f32.mrb[0].mxu0
      %2258 = vmatprep.mubr.bf16.mxu0 %v1909
      %2259 = vmatmul.mubr.bf16.gmra.mrb[0].mxu0 %v1900
      %v2260 = vpop.f32.mrb[0].mxu0
      %v2261 = vadd.f32 0.0, %v2260
      %v2262 = vpop.f32.mrb[0].mxu0
      %v2263 = vpop.f32.mrb[0].mxu0
      %v2264 = vadd.f32 0.0, %v2263
      %v2265 = vpop.f32.mrb[0].mxu0
      %2266 = vmatprep.mubr.bf16.mxu0 %v1952
      %2267 = vmatmul.mubr.bf16.gmra.mrb[0].mxu0 %v1943
      %v2268 = vpop.f32.mrb[0].mxu0
      %v2269 = vadd.f32 0.0, %v2268
      %v2270 = vpop.f32.mrb[0].mxu0
      %v2271 = vpop.f32.mrb[0].mxu0
      %v2272 = vadd.f32 0.0, %v2271
      %v2273 = vpop.f32.mrb[0].mxu0
      %2274 = vmatprep.mubr.bf16.mxu0 %v1995
      %2275 = vmatmul.mubr.bf16.gmra.mrb[0].mxu0 %v1986
      %v2276 = vpop.f32.mrb[0].mxu0
      %v2277 = vadd.f32 0.0, %v2276
      %v2278 = vpop.f32.mrb[0].mxu0
      %v2279 = vpop.f32.mrb[0].mxu0
      %v2280 = vadd.f32 0.0, %v2279
      %v2281 = vpop.f32.mrb[0].mxu0
      %2282 = vdwg.mxu0
      %2283 = vmatprep.subr.bf16.mxu0 0
      %2284 = vmatpush1.bf16.msra.mxu0 %v2186
      %2285 = vmatprep.subr.bf16.mxu0 0
      %2286 = vmatpush1.bf16.msra.mxu0 %v2187
      %2287 = vmatprep.subr.bf16.mxu0 0
      %2288 = vmatpush1.bf16.msra.mxu0 %v2188
      %2289 = vmatprep.subr.bf16.mxu0 0
      %2290 = vmatpush1.bf16.msra.mxu0 %v2189
      %2291 = vmatprep.subr.bf16.mxu0 0
      %2292 = vmatpush1.bf16.msra.mxu0 %v2190
      %2293 = vmatprep.subr.bf16.mxu0 0
      %2294 = vmatpush1.bf16.msra.mxu0 %v2191
      %2295 = vmatprep.subr.bf16.mxu0 0
      %2296 = vmatpush1.bf16.msra.mxu0 %v2192
      %2297 = vmatprep.subr.bf16.mxu0 0
      %2298 = vmatpush1.bf16.msra.mxu0 %v2193
      %2299 = vmatprep.subr.bf16.mxu0 0
      %2300 = vmatpush1.bf16.msra.mxu0 0
      %2301 = vmatprep.subr.bf16.mxu0 0
      %2302 = vmatpush1.bf16.msra.mxu0 0
      %2303 = vmatprep.subr.bf16.mxu0 0
      %2304 = vmatpush1.bf16.msra.mxu0 0
      %2305 = vmatprep.subr.bf16.mxu0 0
      %2306 = vmatpush1.bf16.msra.mxu0 0
      %2307 = vmatprep.subr.bf16.mxu0 0
      %2308 = vmatpush1.bf16.msra.mxu0 0
      %2309 = vmatprep.subr.bf16.mxu0 0
      %2310 = vmatpush1.bf16.msra.mxu0 0
      %2311 = vmatprep.subr.bf16.mxu0 0
      %2312 = vmatpush1.bf16.msra.mxu0 0
      %2313 = vmatprep.subr.bf16.mxu0 0
      %2314 = vmatpush1.bf16.msra.mxu0 0
      %2315 = vmatprep.mubr.bf16.mxu0 0
      %2316 = vmatmul.mubr.bf16.gmra.mrb[0].mxu0 %v1883
      %v2317 = vpop.f32.mrb[0].mxu0
      %v2318 = vadd.f32 %v2253, %v2317
      %v2319 = vpop.f32.mrb[0].mxu0
      %v2320 = vpop.f32.mrb[0].mxu0
      %v2321 = vadd.f32 %v2256, %v2320
      %v2322 = vpop.f32.mrb[0].mxu0
      %2323 = vmatprep.mubr.bf16.mxu0 0
      %2324 = vmatmul.mubr.bf16.gmra.mrb[0].mxu0 %v1926
      %v2325 = vpop.f32.mrb[0].mxu0
      %v2326 = vadd.f32 %v2261, %v2325
      %v2327 = vpop.f32.mrb[0].mxu0
      %v2328 = vpop.f32.mrb[0].mxu0
      %v2329 = vadd.f32 %v2264, %v2328
      %v2330 = vpop.f32.mrb[0].mxu0
      %2331 = vmatprep.mubr.bf16.mxu0 0
      %2332 = vmatmul.mubr.bf16.gmra.mrb[0].mxu0 %v1969
      %v2333 = vpop.f32.mrb[0].mxu0
      %v2334 = vadd.f32 %v2269, %v2333
      %v2335 = vpop.f32.mrb[0].mxu0
      %v2336 = vpop.f32.mrb[0].mxu0
      %v2337 = vadd.f32 %v2272, %v2336
      %v2338 = vpop.f32.mrb[0].mxu0
      %2339 = vmatprep.mubr.bf16.mxu0 0
      %2340 = vmatmul.mubr.bf16.gmra.mrb[0].mxu0 %v2012
      %v2341 = vpop.f32.mrb[0].mxu0
      %v2342 = vadd.f32 %v2277, %v2341
      %v2343 = vpop.f32.mrb[0].mxu0
      %v2344 = vpop.f32.mrb[0].mxu0
      %v2345 = vadd.f32 %v2280, %v2344
      %v2346 = vpop.f32.mrb[0].mxu0
      %2347 = vdwg.mxu0
      %v2348 = vadd.f32 %v1702, %v2318
      %v2349 = vadd.f32 %v1705, %v2321
      %v2350 = vadd.f32 %v1710, %v2326
      %v2351 = vadd.f32 %v1713, %v2329
      %v2352 = vadd.f32 %v1718, %v2334
      %v2353 = vadd.f32 %v1721, %v2337
      %v2354 = vadd.f32 %v1726, %v2342
      %v2355 = vadd.f32 %v1729, %v2345
      %v2357 = vlaneseq
      %v2358 = vshrl.u32 %v2357, 7
      %v2359 = vsub.s32 0, %v2358
      %v2360 = vrot.slane %v500, %v2359
      %v2362 = vadd.f32 %v2348, %v2360
      %v2363 = vadd.f32 %v2349, %v2360
      %v2364 = vadd.f32 %v2350, %v2360
      %v2365 = vadd.f32 %v2351, %v2360
      %v2366 = vadd.f32 %v2352, %v2360
      %v2367 = vadd.f32 %v2353, %v2360
      %v2368 = vadd.f32 %v2354, %v2360
      %v2369 = vadd.f32 %v2355, %v2360
      %v2370 = vpack.c.bf16 %v2363, %v2362
      %v2371 = vpack.c.bf16 %v2365, %v2364
      %v2372 = vpack.c.bf16 %v2367, %v2366
      %v2373 = vpack.c.bf16 %v2369, %v2368
      %v2378 = vunpack.c.l.b16 %v2370
      %v2379 = vunpack.c.h.b16 %v2370
      %v2380 = vunpack.c.l.b16 %v2371
      %v2381 = vunpack.c.h.b16 %v2371
      %v2382 = vunpack.c.l.b16 %v2372
      %v2383 = vunpack.c.h.b16 %v2372
      %v2384 = vunpack.c.l.b16 %v2373
      %v2385 = vunpack.c.h.b16 %v2373
      %v2386 = vpack.c.b16 %v2378, %v2378
      %v2387 = vpack.c.b16 %v2379, %v2379
      %v2388 = vpack.c.b16 %v2380, %v2380
      %v2389 = vpack.c.b16 %v2381, %v2381
      %v2390 = vpack.c.b16 %v2382, %v2382
      %v2391 = vpack.c.b16 %v2383, %v2383
      %v2392 = vpack.c.b16 %v2384, %v2384
      %v2393 = vpack.c.b16 %v2385, %v2385
      %2402 = vst [vmem:[%s288] sm:$0xf] %v2386
      %2403 = vst [vmem:[%s288 + $0x4] sm:$0xf] %v2387
      %2404 = vst [vmem:[%s288 + $0x8] sm:$0xf] %v2388
      %2405 = vst [vmem:[%s288 + $0xc] sm:$0xf] %v2389
      %2406 = vst [vmem:[%s288 + $0x10] sm:$0xf] %v2390
      %2407 = vst [vmem:[%s288 + $0x14] sm:$0xf] %v2391
      %2408 = vst [vmem:[%s288 + $0x18] sm:$0xf] %v2392
      %2409 = vst [vmem:[%s288 + $0x1c] sm:$0xf] %v2393
      %v2410 = vadd.f32 %v2362, %v2363
      %v2411 = vadd.f32 %v2410, %v2364
      %v2412 = vadd.f32 %v2411, %v2365
      %v2413 = vadd.f32 %v2412, %v2366
      %v2414 = vadd.f32 %v2413, %v2367
      %v2415 = vadd.f32 %v2414, %v2368
      %v2416 = vadd.f32 %v2415, %v2369
      %v2417 = vrot.slane %v2416, 4
      %v2418 = vadd.f32 %v2416, %v2417
      %v2419 = vrot.slane %v2418, 2
      %v2420 = vadd.f32 %v2418, %v2419
      %v2421 = vrot.slane %v2420, 1
      %v2422 = vadd.f32 %v2420, %v2421
      %v2423 = vmul.f32 %v2422, 0.015625
      %v2424 = vsub.f32 %v2362, %v2423
      %v2425 = vsub.f32 %v2363, %v2423
      %v2426 = vsub.f32 %v2364, %v2423
      %v2427 = vsub.f32 %v2365, %v2423
      %v2428 = vsub.f32 %v2366, %v2423
      %v2429 = vsub.f32 %v2367, %v2423
      %v2430 = vsub.f32 %v2368, %v2423
      %v2431 = vsub.f32 %v2369, %v2423
      %v2432 = vmul.f32 %v2424, %v2424
      %v2433 = vmul.f32 %v2425, %v2425
      %v2434 = vmul.f32 %v2426, %v2426
      %v2435 = vmul.f32 %v2427, %v2427
      %v2436 = vmul.f32 %v2428, %v2428
      %v2437 = vmul.f32 %v2429, %v2429
      %v2438 = vmul.f32 %v2430, %v2430
      %v2439 = vmul.f32 %v2431, %v2431
      %v2440 = vadd.f32 %v2432, %v2433
      %v2441 = vadd.f32 %v2440, %v2434
      %v2442 = vadd.f32 %v2441, %v2435
      %v2443 = vadd.f32 %v2442, %v2436
      %v2444 = vadd.f32 %v2443, %v2437
      %v2445 = vadd.f32 %v2444, %v2438
      %v2446 = vadd.f32 %v2445, %v2439
      %v2447 = vrot.slane %v2446, 4
      %v2448 = vadd.f32 %v2446, %v2447
      %v2449 = vrot.slane %v2448, 2
      %v2450 = vadd.f32 %v2448, %v2449
      %v2451 = vrot.slane %v2450, 1
      %v2452 = vadd.f32 %v2450, %v2451
      %vm2453 = vcmask 1040384
      %v2454 = vsel %vm2453, %v2423, %v2452
      %2455 = vst [vmem:[%s297] sm:$0x3] %v2454
      %s2456 = smul.u32 4, %s23
      %p2457 = scmp.lt.s32.totalorder %s22, 1
      %s2458 = scalar_select %p2457, %s22, 1
      %p2459 = scmp.lt.s32.totalorder %s2456, 15
      %s2460 = scalar_select %p2459, %s2456, 15
      %s2461 = smul.addr %s2460, 2
      %s2462 = smul.addr %s2458, 32
      %s2463 = sadd.s32 %s2461, %s2462
      %s2464 = smul.addr %s2463, 4
      %s2465 = scalar_lea.vmem %s5, %s2464
      %p2466 = scmp.lt.s32.totalorder %s22, 1
      %s2467 = scalar_select %p2466, %s22, 1
      %p2468 = scmp.lt.s32.totalorder %s23, 3
      %s2469 = scalar_select %p2468, %s23, 3
      %s2470 = smul.addr %s2467, 4
      %s2471 = sadd.s32 %s2469, %s2470
      %s2472 = smul.addr %s2471, 2
      %s2473 = scalar_lea.vmem %s6, %s2472
      // Predicated region
      $region41: #{residual_block_forward.4} parent=39 // pred_check
        %p2474 = pneg %p160
      $region42: #{residual_block_forward.4} parent=39 // pred_check_branch
        %2476 = sbr.rel (%p2474) target = $region44
      $region43: #{residual_block_forward.4} parent=39 // pred_region
        %s2477 = smul.u32 4, %s23
      $region44: #{residual_block_forward.4} parent=39 // pred_fallthru
        _
      // Predicated region
      $region45: #{residual_block_forward.4} parent=39 // pred_check
        %p2478 = pneg %p188
      $region46: #{residual_block_forward.4} parent=39 // pred_check_branch
        %2480 = sbr.rel (%p2478) target = $region48
      $region47: #{residual_block_forward.4} parent=39 // pred_region
        _
      $region48: #{residual_block_forward.4} parent=39 // pred_fallthru
        _
    $region40: #{residual_block_forward.4} parent=5 // pred_fallthru
      _
    %p2481 = scmp.le.s32.totalorder 2, %s13
    // Predicated region
    $region49: #{residual_block_forward.4} parent=5 // pred_check
      %p2482 = pneg %p2481
    $region50: #{residual_block_forward.4} parent=5 // pred_check_branch
      %2484 = sbr.rel (%p2482) target = $region52
    $region51: #{residual_block_forward.4} parent=5 // pred_region
      %s2485 = ssub.s32 %s13, 2
      // Predicated region
      $region53: #{residual_block_forward.4} parent=51 // pred_check
        %p2486 = pneg %p166
      $region54: #{residual_block_forward.4} parent=51 // pred_check_branch
        %2488 = sbr.rel (%p2486) target = $region56
      $region55: #{residual_block_forward.4} parent=51 // pred_region
        %s2489 = smul.u32 4, %s25
        %p2490 = scmp.lt.s32.totalorder %s24, 1
        %s2491 = scalar_select %p2490, %s24, 1
        %p2492 = scmp.lt.s32.totalorder %s2489, 15
        %s2493 = scalar_select %p2492, %s2489, 15
        %s2494 = smul.addr %s2493, 2
        %s2495 = smul.addr %s2491, 32
        %s2496 = sadd.s32 %s2494, %s2495
        %s2497 = smul.addr %s2496, 4
        %s2498 = scalar_lea.vmem %s5, %s2497
      $region56: #{residual_block_forward.4} parent=51 // pred_fallthru
        _
      // Predicated region
      $region57: #{residual_block_forward.4} parent=51 // pred_check
        %p2499 = pneg %p194
      $region58: #{residual_block_forward.4} parent=51 // pred_check_branch
        %2501 = sbr.rel (%p2499) target = $region60
      $region59: #{residual_block_forward.4} parent=51 // pred_region
        %p2502 = scmp.lt.s32.totalorder %s24, 1
        %s2503 = scalar_select %p2502, %s24, 1
        %p2504 = scmp.lt.s32.totalorder %s25, 3
        %s2505 = scalar_select %p2504, %s25, 3
        %s2506 = smul.addr %s2503, 4
        %s2507 = sadd.s32 %s2505, %s2506
        %s2508 = smul.addr %s2507, 2
        %s2509 = scalar_lea.vmem %s6, %s2508
      $region60: #{residual_block_forward.4} parent=51 // pred_fallthru
        _
    $region52: #{residual_block_forward.4} parent=5 // pred_fallthru
      _
  $region6: #{residual_block_forward.4} parent=0 // loop_footer
    %s17 = sadd.s32 1, %s13
  $region7: #{residual_block_forward.4} parent=0 // loop_footer_branch
    %12 = sbr.rel target = $region3
  $region8: #{residual_block_forward.4} parent=0 // loop_exit
    _

</llo_original>
